<compile_context>
chip_gen: v5e
topology: v5e:2x2
jax: 0.10.0
libtpu: 0.0.40
codegen_flags: <defaults>
</compile_context>

<pallas_src>
import functools

import jax
import jax.numpy as jnp
import numpy as np
from jax.experimental import pallas as pl
from jax.experimental.pallas import tpu as pltpu

D_IN = 5
H = 160
D_OUT = 1

GS = 256   # per-gate column stride (multiple of 128 -> lane-aligned gate slices)
           # (on v5e a 640-wide pack would save MXU column passes per step at the
           #  cost of unaligned gate slices; kept at 256 for free static slicing)
DP = 128   # D_out padded to one full lane width (lane-dense, unmasked output store)


def lstm_linear_kernel(x_ref, wih_ref, whh_ref, b_ref, wlin_ref, blin_ref,
                       out_ref, *, B, T):
    """Whole LSTM + Linear forward pass in one invocation, time-major rows.

    x_ref    : (T*B, D_in)  f32   inputs, time-major / batch-minor row order
    wih_ref  : (D_in, 4*GS) bf16  W_ih^T, gate columns (i, f, o, g), stride GS
    whh_ref  : (H, 4*GS)    bf16  W_hh^T, gate columns (i, f, o, g), stride GS
    b_ref    : (1, 4*GS)    f32   b_ih + b_hh, same packing
    wlin_ref : (H, DP)      bf16  W_linear^T, output columns zero-padded to DP
    blin_ref : (1, DP)      f32   b_linear, zero-padded to DP
    out_ref  : (T*B, DP)    f32   output slab; first D_out lanes hold the result
    """
    # ---- Input projection for ALL time steps at once (hoisted off the serial
    # critical path): one bf16 (T*B, D_in) @ (D_in, 4*GS) matmul, f32 accum. ----
    xp = jnp.dot(x_ref[...].astype(jnp.bfloat16), wih_ref[...],
                 preferred_element_type=jnp.float32) + b_ref[...]   # (T*B, 4*GS)

    # ---- Recurrence. T is small and static -> fully unrolled; h/c and the
    # collected hidden states stay register-resident (no per-step VMEM stores). ----
    h = jnp.zeros((B, H), jnp.float32)
    c = jnp.zeros((B, H), jnp.float32)
    hs = []
    for t in range(T):
        gates = xp[t * B:(t + 1) * B, :] + jnp.dot(
            h.astype(jnp.bfloat16), whh_ref[...],
            preferred_element_type=jnp.float32)                     # (B, 4*GS)
        # Gate order (i, f, o, g): ONE sigmoid launch covers i/f/o, ONE tanh
        # covers g; every slice start is a 128-lane boundary (free sub-view).
        sig = jax.nn.sigmoid(gates[:, 0:3 * GS])
        i_g = sig[:, 0 * GS:0 * GS + H]
        f_g = sig[:, 1 * GS:1 * GS + H]
        o_g = sig[:, 2 * GS:2 * GS + H]
        g_g = jnp.tanh(gates[:, 3 * GS:3 * GS + H])
        c = f_g * c + i_g * g_g
        h = o_g * jnp.tanh(c)
        hs.append(h)
        # TODO(synk): if T is ever scaled up (>32-64), switch to
        # lax.fori_loop-carried (h, c) with chunked hs writes to bound vreg
        # live ranges; at T=8 the full unroll is optimal.

    # ---- Output projection for ALL time steps at once, one lane-dense store. ----
    hs_all = jnp.concatenate(hs, axis=0)                            # (T*B, H) f32
    y = jnp.dot(hs_all.astype(jnp.bfloat16), wlin_ref[...],
                preferred_element_type=jnp.float32) + blin_ref[...]  # (T*B, DP)
    out_ref[...] = y


@jax.jit
def net_forward(x, packed_params):
    """x: (B, T, D_in) float32, batch_first like PyTorch. Returns (B, T, D_out)."""
    wih_p, whh_p, b_p, wlin_p, blin_p = packed_params
    B, T, _ = x.shape

    # Time-major row order: step t occupies rows [t*B, (t+1)*B) -> contiguous
    # static sublane slices inside the kernel, no in-kernel reshapes.
    x_tm = jnp.transpose(x, (1, 0, 2)).reshape(T * B, D_IN)

    kernel = functools.partial(lstm_linear_kernel, B=B, T=T)
    out = pl.pallas_call(
        kernel,
        out_shape=jax.ShapeDtypeStruct((T * B, DP), jnp.float32),
        in_specs=[pl.BlockSpec(memory_space=pltpu.MemorySpace.VMEM)] * 6,
        out_specs=pl.BlockSpec(memory_space=pltpu.MemorySpace.VMEM),
    )(x_tm, wih_p, whh_p, b_p, wlin_p, blin_p)

    # (T*B, DP) -> (B, T, D_out): tiny wrapper-side transpose + slice.
    return jnp.transpose(out.reshape(T, B, DP), (1, 0, 2))[:, :, :D_OUT]


def init_raw_params(key):
    """PyTorch-shaped parameters, uniform(-1/sqrt(H), 1/sqrt(H)) like nn.LSTM/Linear."""
    k = 1.0 / np.sqrt(H)
    ks = jax.random.split(key, 6)
    w_ih = jax.random.uniform(ks[0], (4 * H, D_IN), jnp.float32, -k, k)
    w_hh = jax.random.uniform(ks[1], (4 * H, H), jnp.float32, -k, k)
    b_ih = jax.random.uniform(ks[2], (4 * H,), jnp.float32, -k, k)
    b_hh = jax.random.uniform(ks[3], (4 * H,), jnp.float32, -k, k)
    w_lin = jax.random.uniform(ks[4], (D_OUT, H), jnp.float32, -k, k)
    b_lin = jax.random.uniform(ks[5], (D_OUT,), jnp.float32, -k, k)
    return (w_ih, w_hh, b_ih, b_hh, w_lin, b_lin)


def pack_params(raw):
    """Transpose + zero-pad parameters into the lane-aligned kernel layout.

    Weight matrices are stored in bfloat16 (MXU operands); biases stay f32
    (added to the f32 accumulator).
    """
    w_ih, w_hh, b_ih, b_hh, w_lin, b_lin = (np.asarray(p, np.float32) for p in raw)
    bias = b_ih + b_hh

    wih_p = np.zeros((D_IN, 4 * GS), np.float32)
    whh_p = np.zeros((H, 4 * GS), np.float32)
    b_p = np.zeros((1, 4 * GS), np.float32)
    # PyTorch row-block gate order is (i, f, g, o); repack columns as
    # (i, f, o, g) so one sigmoid covers the first three blocks and one tanh
    # covers the last.
    for dst, src in enumerate((0, 1, 3, 2)):
        wih_p[:, dst * GS:dst * GS + H] = w_ih[src * H:(src + 1) * H, :].T
        whh_p[:, dst * GS:dst * GS + H] = w_hh[src * H:(src + 1) * H, :].T
        b_p[0, dst * GS:dst * GS + H] = bias[src * H:(src + 1) * H]

    wlin_p = np.zeros((H, DP), np.float32)
    wlin_p[:, :D_OUT] = w_lin.T
    blin_p = np.zeros((1, DP), np.float32)
    blin_p[0, :D_OUT] = b_lin

    return (jnp.asarray(wih_p, jnp.bfloat16),
            jnp.asarray(whh_p, jnp.bfloat16),
            jnp.asarray(b_p, jnp.float32),
            jnp.asarray(wlin_p, jnp.bfloat16),
            jnp.asarray(blin_p, jnp.float32))


def net_forward_ref(x, raw):
    """Pure-JAX f32 reference with PyTorch LSTM semantics, for validation."""
    w_ih, w_hh, b_ih, b_hh, w_lin, b_lin = raw
    B, T, _ = x.shape

    def step(carry, x_t):
        h, c = carry
        gates = x_t @ w_ih.T + h @ w_hh.T + b_ih + b_hh
        i = jax.nn.sigmoid(gates[:, 0:H])
        f = jax.nn.sigmoid(gates[:, H:2 * H])
        g = jnp.tanh(gates[:, 2 * H:3 * H])
        o = jax.nn.sigmoid(gates[:, 3 * H:4 * H])
        c = f * c + i * g
        h = o * jnp.tanh(c)
        return (h, c), h

    h0 = jnp.zeros((B, H), jnp.float32)
    c0 = jnp.zeros((B, H), jnp.float32)
    _, hs = jax.lax.scan(step, (h0, c0), jnp.transpose(x, (1, 0, 2)))
    out = hs @ w_lin.T + b_lin               # (T, B, D_out)
    return jnp.transpose(out, (1, 0, 2))


if __name__ == "__main__":
    key = jax.random.PRNGKey(0)
    k_param, k_x = jax.random.split(key)

    B, T = 2, 8
    raw_params = init_raw_params(k_param)
    packed_params = pack_params(raw_params)
    x = jax.random.normal(k_x, (B, T, D_IN), jnp.float32)

    y = jax.block_until_ready(net_forward(x, packed_params))
    y_ref = jax.block_until_ready(net_forward_ref(x, raw_params))

    assert y.shape == (B, T, D_OUT)
    # Tolerance accounts for bf16 MXU operands (f32 accumulation) vs f32 reference.
    np.testing.assert_allclose(np.asarray(y), np.asarray(y_ref),
                               rtol=3e-2, atol=3e-2)

    print("KERNEL_OK")
</pallas_src>

<mosaic_0001>
module attributes {stable_mosaic.version = 11 : i64} {
  func.func @lstm_linear_kernel(%arg0: memref<16x5xf32, #tpu.memory_space<vmem>>, %arg1: memref<5x1024xbf16, #tpu.memory_space<vmem>>, %arg2: memref<160x1024xbf16, #tpu.memory_space<vmem>>, %arg3: memref<1x1024xf32, #tpu.memory_space<vmem>>, %arg4: memref<160x128xbf16, #tpu.memory_space<vmem>>, %arg5: memref<1x128xf32, #tpu.memory_space<vmem>>, %arg6: memref<16x128xf32, #tpu.memory_space<vmem>>) attributes {dimension_semantics = [], scalar_prefetch = 0 : i64, scratch_operands = 0 : i64, tpu.core_type = #tpu.core_type<tc>} {
    %c0 = arith.constant 0 : index
    %c0_0 = arith.constant 0 : index
    %0 = vector.load %arg0[%c0, %c0_0] : memref<16x5xf32, #tpu.memory_space<vmem>>, vector<16x5xf32>
    %1 = arith.truncf %0 : vector<16x5xf32> to vector<16x5xbf16>
    %c0_1 = arith.constant 0 : index
    %c0_2 = arith.constant 0 : index
    %2 = vector.load %arg1[%c0_1, %c0_2] : memref<5x1024xbf16, #tpu.memory_space<vmem>>, vector<5x1024xbf16>
    %cst = arith.constant dense<0.000000e+00> : vector<16x1024xf32>
    %3 = tpu.matmul %1, %2, %cst {dimension_numbers = #tpu.dot_dimension_numbers<[1], [0], [0], [1], [0, 0, 1, 1], [], []>} : vector<16x5xbf16>, vector<5x1024xbf16>, vector<16x1024xf32> -> vector<16x1024xf32>
    %c0_3 = arith.constant 0 : index
    %c0_4 = arith.constant 0 : index
    %4 = vector.load %arg3[%c0_3, %c0_4] : memref<1x1024xf32, #tpu.memory_space<vmem>>, vector<1x1024xf32>
    %5 = vector.broadcast %4 : vector<1x1024xf32> to vector<16x1024xf32>
    %6 = arith.addf %3, %5 : vector<16x1024xf32>
    %cst_5 = arith.constant 0.000000e+00 : f32
    %7 = vector.broadcast %cst_5 : f32 to vector<2x160xf32>
    %cst_6 = arith.constant 0.000000e+00 : f32
    %8 = vector.broadcast %cst_6 : f32 to vector<2x160xf32>
    %9 = vector.extract_strided_slice %6 {offsets = [0, 0], sizes = [2, 1024], strides = [1, 1]} : vector<16x1024xf32> to vector<2x1024xf32>
    %10 = arith.truncf %7 : vector<2x160xf32> to vector<2x160xbf16>
    %c0_7 = arith.constant 0 : index
    %c0_8 = arith.constant 0 : index
    %11 = vector.load %arg2[%c0_7, %c0_8] : memref<160x1024xbf16, #tpu.memory_space<vmem>>, vector<160x1024xbf16>
    %cst_9 = arith.constant dense<0.000000e+00> : vector<2x1024xf32>
    %12 = tpu.matmul %10, %11, %cst_9 {dimension_numbers = #tpu.dot_dimension_numbers<[1], [0], [0], [1], [0, 0, 1, 1], [], []>} : vector<2x160xbf16>, vector<160x1024xbf16>, vector<2x1024xf32> -> vector<2x1024xf32>
    %13 = arith.addf %9, %12 : vector<2x1024xf32>
    %14 = vector.extract_strided_slice %13 {offsets = [0, 0], sizes = [2, 768], strides = [1, 1]} : vector<2x1024xf32> to vector<2x768xf32>
    %15 = arith.negf %14 : vector<2x768xf32>
    %16 = math.exp %15 : vector<2x768xf32>
    %cst_10 = arith.constant 1.000000e+00 : f32
    %17 = vector.broadcast %cst_10 : f32 to vector<2x768xf32>
    %18 = arith.addf %17, %16 : vector<2x768xf32>
    %19 = arith.divf %17, %18 : vector<2x768xf32>
    %20 = vector.extract_strided_slice %19 {offsets = [0, 0], sizes = [2, 160], strides = [1, 1]} : vector<2x768xf32> to vector<2x160xf32>
    %21 = vector.extract_strided_slice %19 {offsets = [0, 256], sizes = [2, 160], strides = [1, 1]} : vector<2x768xf32> to vector<2x160xf32>
    %22 = vector.extract_strided_slice %19 {offsets = [0, 512], sizes = [2, 160], strides = [1, 1]} : vector<2x768xf32> to vector<2x160xf32>
    %23 = vector.extract_strided_slice %13 {offsets = [0, 768], sizes = [2, 160], strides = [1, 1]} : vector<2x1024xf32> to vector<2x160xf32>
    %24 = math.tanh %23 : vector<2x160xf32>
    %25 = arith.mulf %21, %8 : vector<2x160xf32>
    %26 = arith.mulf %20, %24 : vector<2x160xf32>
    %27 = arith.addf %25, %26 : vector<2x160xf32>
    %28 = math.tanh %27 : vector<2x160xf32>
    %29 = arith.mulf %22, %28 : vector<2x160xf32>
    %30 = vector.extract_strided_slice %6 {offsets = [2, 0], sizes = [2, 1024], strides = [1, 1]} : vector<16x1024xf32> to vector<2x1024xf32>
    %31 = arith.truncf %29 : vector<2x160xf32> to vector<2x160xbf16>
    %c0_11 = arith.constant 0 : index
    %c0_12 = arith.constant 0 : index
    %32 = vector.load %arg2[%c0_11, %c0_12] : memref<160x1024xbf16, #tpu.memory_space<vmem>>, vector<160x1024xbf16>
    %cst_13 = arith.constant dense<0.000000e+00> : vector<2x1024xf32>
    %33 = tpu.matmul %31, %32, %cst_13 {dimension_numbers = #tpu.dot_dimension_numbers<[1], [0], [0], [1], [0, 0, 1, 1], [], []>} : vector<2x160xbf16>, vector<160x1024xbf16>, vector<2x1024xf32> -> vector<2x1024xf32>
    %34 = arith.addf %30, %33 : vector<2x1024xf32>
    %35 = vector.extract_strided_slice %34 {offsets = [0, 0], sizes = [2, 768], strides = [1, 1]} : vector<2x1024xf32> to vector<2x768xf32>
    %36 = arith.negf %35 : vector<2x768xf32>
    %37 = math.exp %36 : vector<2x768xf32>
    %cst_14 = arith.constant 1.000000e+00 : f32
    %38 = vector.broadcast %cst_14 : f32 to vector<2x768xf32>
    %39 = arith.addf %38, %37 : vector<2x768xf32>
    %40 = arith.divf %38, %39 : vector<2x768xf32>
    %41 = vector.extract_strided_slice %40 {offsets = [0, 0], sizes = [2, 160], strides = [1, 1]} : vector<2x768xf32> to vector<2x160xf32>
    %42 = vector.extract_strided_slice %40 {offsets = [0, 256], sizes = [2, 160], strides = [1, 1]} : vector<2x768xf32> to vector<2x160xf32>
    %43 = vector.extract_strided_slice %40 {offsets = [0, 512], sizes = [2, 160], strides = [1, 1]} : vector<2x768xf32> to vector<2x160xf32>
    %44 = vector.extract_strided_slice %34 {offsets = [0, 768], sizes = [2, 160], strides = [1, 1]} : vector<2x1024xf32> to vector<2x160xf32>
    %45 = math.tanh %44 : vector<2x160xf32>
    %46 = arith.mulf %42, %27 : vector<2x160xf32>
    %47 = arith.mulf %41, %45 : vector<2x160xf32>
    %48 = arith.addf %46, %47 : vector<2x160xf32>
    %49 = math.tanh %48 : vector<2x160xf32>
    %50 = arith.mulf %43, %49 : vector<2x160xf32>
    %51 = vector.extract_strided_slice %6 {offsets = [4, 0], sizes = [2, 1024], strides = [1, 1]} : vector<16x1024xf32> to vector<2x1024xf32>
    %52 = arith.truncf %50 : vector<2x160xf32> to vector<2x160xbf16>
    %c0_15 = arith.constant 0 : index
    %c0_16 = arith.constant 0 : index
    %53 = vector.load %arg2[%c0_15, %c0_16] : memref<160x1024xbf16, #tpu.memory_space<vmem>>, vector<160x1024xbf16>
    %cst_17 = arith.constant dense<0.000000e+00> : vector<2x1024xf32>
    %54 = tpu.matmul %52, %53, %cst_17 {dimension_numbers = #tpu.dot_dimension_numbers<[1], [0], [0], [1], [0, 0, 1, 1], [], []>} : vector<2x160xbf16>, vector<160x1024xbf16>, vector<2x1024xf32> -> vector<2x1024xf32>
    %55 = arith.addf %51, %54 : vector<2x1024xf32>
    %56 = vector.extract_strided_slice %55 {offsets = [0, 0], sizes = [2, 768], strides = [1, 1]} : vector<2x1024xf32> to vector<2x768xf32>
    %57 = arith.negf %56 : vector<2x768xf32>
    %58 = math.exp %57 : vector<2x768xf32>
    %cst_18 = arith.constant 1.000000e+00 : f32
    %59 = vector.broadcast %cst_18 : f32 to vector<2x768xf32>
    %60 = arith.addf %59, %58 : vector<2x768xf32>
    %61 = arith.divf %59, %60 : vector<2x768xf32>
    %62 = vector.extract_strided_slice %61 {offsets = [0, 0], sizes = [2, 160], strides = [1, 1]} : vector<2x768xf32> to vector<2x160xf32>
    %63 = vector.extract_strided_slice %61 {offsets = [0, 256], sizes = [2, 160], strides = [1, 1]} : vector<2x768xf32> to vector<2x160xf32>
    %64 = vector.extract_strided_slice %61 {offsets = [0, 512], sizes = [2, 160], strides = [1, 1]} : vector<2x768xf32> to vector<2x160xf32>
    %65 = vector.extract_strided_slice %55 {offsets = [0, 768], sizes = [2, 160], strides = [1, 1]} : vector<2x1024xf32> to vector<2x160xf32>
    %66 = math.tanh %65 : vector<2x160xf32>
    %67 = arith.mulf %63, %48 : vector<2x160xf32>
    %68 = arith.mulf %62, %66 : vector<2x160xf32>
    %69 = arith.addf %67, %68 : vector<2x160xf32>
    %70 = math.tanh %69 : vector<2x160xf32>
    %71 = arith.mulf %64, %70 : vector<2x160xf32>
    %72 = vector.extract_strided_slice %6 {offsets = [6, 0], sizes = [2, 1024], strides = [1, 1]} : vector<16x1024xf32> to vector<2x1024xf32>
    %73 = arith.truncf %71 : vector<2x160xf32> to vector<2x160xbf16>
    %c0_19 = arith.constant 0 : index
    %c0_20 = arith.constant 0 : index
    %74 = vector.load %arg2[%c0_19, %c0_20] : memref<160x1024xbf16, #tpu.memory_space<vmem>>, vector<160x1024xbf16>
    %cst_21 = arith.constant dense<0.000000e+00> : vector<2x1024xf32>
    %75 = tpu.matmul %73, %74, %cst_21 {dimension_numbers = #tpu.dot_dimension_numbers<[1], [0], [0], [1], [0, 0, 1, 1], [], []>} : vector<2x160xbf16>, vector<160x1024xbf16>, vector<2x1024xf32> -> vector<2x1024xf32>
    %76 = arith.addf %72, %75 : vector<2x1024xf32>
    %77 = vector.extract_strided_slice %76 {offsets = [0, 0], sizes = [2, 768], strides = [1, 1]} : vector<2x1024xf32> to vector<2x768xf32>
    %78 = arith.negf %77 : vector<2x768xf32>
    %79 = math.exp %78 : vector<2x768xf32>
    %cst_22 = arith.constant 1.000000e+00 : f32
    %80 = vector.broadcast %cst_22 : f32 to vector<2x768xf32>
    %81 = arith.addf %80, %79 : vector<2x768xf32>
    %82 = arith.divf %80, %81 : vector<2x768xf32>
    %83 = vector.extract_strided_slice %82 {offsets = [0, 0], sizes = [2, 160], strides = [1, 1]} : vector<2x768xf32> to vector<2x160xf32>
    %84 = vector.extract_strided_slice %82 {offsets = [0, 256], sizes = [2, 160], strides = [1, 1]} : vector<2x768xf32> to vector<2x160xf32>
    %85 = vector.extract_strided_slice %82 {offsets = [0, 512], sizes = [2, 160], strides = [1, 1]} : vector<2x768xf32> to vector<2x160xf32>
    %86 = vector.extract_strided_slice %76 {offsets = [0, 768], sizes = [2, 160], strides = [1, 1]} : vector<2x1024xf32> to vector<2x160xf32>
    %87 = math.tanh %86 : vector<2x160xf32>
    %88 = arith.mulf %84, %69 : vector<2x160xf32>
    %89 = arith.mulf %83, %87 : vector<2x160xf32>
    %90 = arith.addf %88, %89 : vector<2x160xf32>
    %91 = math.tanh %90 : vector<2x160xf32>
    %92 = arith.mulf %85, %91 : vector<2x160xf32>
    %93 = vector.extract_strided_slice %6 {offsets = [8, 0], sizes = [2, 1024], strides = [1, 1]} : vector<16x1024xf32> to vector<2x1024xf32>
    %94 = arith.truncf %92 : vector<2x160xf32> to vector<2x160xbf16>
    %c0_23 = arith.constant 0 : index
    %c0_24 = arith.constant 0 : index
    %95 = vector.load %arg2[%c0_23, %c0_24] : memref<160x1024xbf16, #tpu.memory_space<vmem>>, vector<160x1024xbf16>
    %cst_25 = arith.constant dense<0.000000e+00> : vector<2x1024xf32>
    %96 = tpu.matmul %94, %95, %cst_25 {dimension_numbers = #tpu.dot_dimension_numbers<[1], [0], [0], [1], [0, 0, 1, 1], [], []>} : vector<2x160xbf16>, vector<160x1024xbf16>, vector<2x1024xf32> -> vector<2x1024xf32>
    %97 = arith.addf %93, %96 : vector<2x1024xf32>
    %98 = vector.extract_strided_slice %97 {offsets = [0, 0], sizes = [2, 768], strides = [1, 1]} : vector<2x1024xf32> to vector<2x768xf32>
    %99 = arith.negf %98 : vector<2x768xf32>
    %100 = math.exp %99 : vector<2x768xf32>
    %cst_26 = arith.constant 1.000000e+00 : f32
    %101 = vector.broadcast %cst_26 : f32 to vector<2x768xf32>
    %102 = arith.addf %101, %100 : vector<2x768xf32>
    %103 = arith.divf %101, %102 : vector<2x768xf32>
    %104 = vector.extract_strided_slice %103 {offsets = [0, 0], sizes = [2, 160], strides = [1, 1]} : vector<2x768xf32> to vector<2x160xf32>
    %105 = vector.extract_strided_slice %103 {offsets = [0, 256], sizes = [2, 160], strides = [1, 1]} : vector<2x768xf32> to vector<2x160xf32>
    %106 = vector.extract_strided_slice %103 {offsets = [0, 512], sizes = [2, 160], strides = [1, 1]} : vector<2x768xf32> to vector<2x160xf32>
    %107 = vector.extract_strided_slice %97 {offsets = [0, 768], sizes = [2, 160], strides = [1, 1]} : vector<2x1024xf32> to vector<2x160xf32>
    %108 = math.tanh %107 : vector<2x160xf32>
    %109 = arith.mulf %105, %90 : vector<2x160xf32>
    %110 = arith.mulf %104, %108 : vector<2x160xf32>
    %111 = arith.addf %109, %110 : vector<2x160xf32>
    %112 = math.tanh %111 : vector<2x160xf32>
    %113 = arith.mulf %106, %112 : vector<2x160xf32>
    %114 = vector.extract_strided_slice %6 {offsets = [10, 0], sizes = [2, 1024], strides = [1, 1]} : vector<16x1024xf32> to vector<2x1024xf32>
    %115 = arith.truncf %113 : vector<2x160xf32> to vector<2x160xbf16>
    %c0_27 = arith.constant 0 : index
    %c0_28 = arith.constant 0 : index
    %116 = vector.load %arg2[%c0_27, %c0_28] : memref<160x1024xbf16, #tpu.memory_space<vmem>>, vector<160x1024xbf16>
    %cst_29 = arith.constant dense<0.000000e+00> : vector<2x1024xf32>
    %117 = tpu.matmul %115, %116, %cst_29 {dimension_numbers = #tpu.dot_dimension_numbers<[1], [0], [0], [1], [0, 0, 1, 1], [], []>} : vector<2x160xbf16>, vector<160x1024xbf16>, vector<2x1024xf32> -> vector<2x1024xf32>
    %118 = arith.addf %114, %117 : vector<2x1024xf32>
    %119 = vector.extract_strided_slice %118 {offsets = [0, 0], sizes = [2, 768], strides = [1, 1]} : vector<2x1024xf32> to vector<2x768xf32>
    %120 = arith.negf %119 : vector<2x768xf32>
    %121 = math.exp %120 : vector<2x768xf32>
    %cst_30 = arith.constant 1.000000e+00 : f32
    %122 = vector.broadcast %cst_30 : f32 to vector<2x768xf32>
    %123 = arith.addf %122, %121 : vector<2x768xf32>
    %124 = arith.divf %122, %123 : vector<2x768xf32>
    %125 = vector.extract_strided_slice %124 {offsets = [0, 0], sizes = [2, 160], strides = [1, 1]} : vector<2x768xf32> to vector<2x160xf32>
    %126 = vector.extract_strided_slice %124 {offsets = [0, 256], sizes = [2, 160], strides = [1, 1]} : vector<2x768xf32> to vector<2x160xf32>
    %127 = vector.extract_strided_slice %124 {offsets = [0, 512], sizes = [2, 160], strides = [1, 1]} : vector<2x768xf32> to vector<2x160xf32>
    %128 = vector.extract_strided_slice %118 {offsets = [0, 768], sizes = [2, 160], strides = [1, 1]} : vector<2x1024xf32> to vector<2x160xf32>
    %129 = math.tanh %128 : vector<2x160xf32>
    %130 = arith.mulf %126, %111 : vector<2x160xf32>
    %131 = arith.mulf %125, %129 : vector<2x160xf32>
    %132 = arith.addf %130, %131 : vector<2x160xf32>
    %133 = math.tanh %132 : vector<2x160xf32>
    %134 = arith.mulf %127, %133 : vector<2x160xf32>
    %135 = vector.extract_strided_slice %6 {offsets = [12, 0], sizes = [2, 1024], strides = [1, 1]} : vector<16x1024xf32> to vector<2x1024xf32>
    %136 = arith.truncf %134 : vector<2x160xf32> to vector<2x160xbf16>
    %c0_31 = arith.constant 0 : index
    %c0_32 = arith.constant 0 : index
    %137 = vector.load %arg2[%c0_31, %c0_32] : memref<160x1024xbf16, #tpu.memory_space<vmem>>, vector<160x1024xbf16>
    %cst_33 = arith.constant dense<0.000000e+00> : vector<2x1024xf32>
    %138 = tpu.matmul %136, %137, %cst_33 {dimension_numbers = #tpu.dot_dimension_numbers<[1], [0], [0], [1], [0, 0, 1, 1], [], []>} : vector<2x160xbf16>, vector<160x1024xbf16>, vector<2x1024xf32> -> vector<2x1024xf32>
    %139 = arith.addf %135, %138 : vector<2x1024xf32>
    %140 = vector.extract_strided_slice %139 {offsets = [0, 0], sizes = [2, 768], strides = [1, 1]} : vector<2x1024xf32> to vector<2x768xf32>
    %141 = arith.negf %140 : vector<2x768xf32>
    %142 = math.exp %141 : vector<2x768xf32>
    %cst_34 = arith.constant 1.000000e+00 : f32
    %143 = vector.broadcast %cst_34 : f32 to vector<2x768xf32>
    %144 = arith.addf %143, %142 : vector<2x768xf32>
    %145 = arith.divf %143, %144 : vector<2x768xf32>
    %146 = vector.extract_strided_slice %145 {offsets = [0, 0], sizes = [2, 160], strides = [1, 1]} : vector<2x768xf32> to vector<2x160xf32>
    %147 = vector.extract_strided_slice %145 {offsets = [0, 256], sizes = [2, 160], strides = [1, 1]} : vector<2x768xf32> to vector<2x160xf32>
    %148 = vector.extract_strided_slice %145 {offsets = [0, 512], sizes = [2, 160], strides = [1, 1]} : vector<2x768xf32> to vector<2x160xf32>
    %149 = vector.extract_strided_slice %139 {offsets = [0, 768], sizes = [2, 160], strides = [1, 1]} : vector<2x1024xf32> to vector<2x160xf32>
    %150 = math.tanh %149 : vector<2x160xf32>
    %151 = arith.mulf %147, %132 : vector<2x160xf32>
    %152 = arith.mulf %146, %150 : vector<2x160xf32>
    %153 = arith.addf %151, %152 : vector<2x160xf32>
    %154 = math.tanh %153 : vector<2x160xf32>
    %155 = arith.mulf %148, %154 : vector<2x160xf32>
    %156 = vector.extract_strided_slice %6 {offsets = [14, 0], sizes = [2, 1024], strides = [1, 1]} : vector<16x1024xf32> to vector<2x1024xf32>
    %157 = arith.truncf %155 : vector<2x160xf32> to vector<2x160xbf16>
    %c0_35 = arith.constant 0 : index
    %c0_36 = arith.constant 0 : index
    %158 = vector.load %arg2[%c0_35, %c0_36] : memref<160x1024xbf16, #tpu.memory_space<vmem>>, vector<160x1024xbf16>
    %cst_37 = arith.constant dense<0.000000e+00> : vector<2x1024xf32>
    %159 = tpu.matmul %157, %158, %cst_37 {dimension_numbers = #tpu.dot_dimension_numbers<[1], [0], [0], [1], [0, 0, 1, 1], [], []>} : vector<2x160xbf16>, vector<160x1024xbf16>, vector<2x1024xf32> -> vector<2x1024xf32>
    %160 = arith.addf %156, %159 : vector<2x1024xf32>
    %161 = vector.extract_strided_slice %160 {offsets = [0, 0], sizes = [2, 768], strides = [1, 1]} : vector<2x1024xf32> to vector<2x768xf32>
    %162 = arith.negf %161 : vector<2x768xf32>
    %163 = math.exp %162 : vector<2x768xf32>
    %cst_38 = arith.constant 1.000000e+00 : f32
    %164 = vector.broadcast %cst_38 : f32 to vector<2x768xf32>
    %165 = arith.addf %164, %163 : vector<2x768xf32>
    %166 = arith.divf %164, %165 : vector<2x768xf32>
    %167 = vector.extract_strided_slice %166 {offsets = [0, 0], sizes = [2, 160], strides = [1, 1]} : vector<2x768xf32> to vector<2x160xf32>
    %168 = vector.extract_strided_slice %166 {offsets = [0, 256], sizes = [2, 160], strides = [1, 1]} : vector<2x768xf32> to vector<2x160xf32>
    %169 = vector.extract_strided_slice %166 {offsets = [0, 512], sizes = [2, 160], strides = [1, 1]} : vector<2x768xf32> to vector<2x160xf32>
    %170 = vector.extract_strided_slice %160 {offsets = [0, 768], sizes = [2, 160], strides = [1, 1]} : vector<2x1024xf32> to vector<2x160xf32>
    %171 = math.tanh %170 : vector<2x160xf32>
    %172 = arith.mulf %168, %153 : vector<2x160xf32>
    %173 = arith.mulf %167, %171 : vector<2x160xf32>
    %174 = arith.addf %172, %173 : vector<2x160xf32>
    %175 = math.tanh %174 : vector<2x160xf32>
    %176 = arith.mulf %169, %175 : vector<2x160xf32>
    %177 = tpu.concatenate %29, %50, %71, %92, %113, %134, %155, %176 in 0 : vector<2x160xf32>, vector<2x160xf32>, vector<2x160xf32>, vector<2x160xf32>, vector<2x160xf32>, vector<2x160xf32>, vector<2x160xf32>, vector<2x160xf32> -> vector<16x160xf32>
    %178 = arith.truncf %177 : vector<16x160xf32> to vector<16x160xbf16>
    %c0_39 = arith.constant 0 : index
    %c0_40 = arith.constant 0 : index
    %179 = vector.load %arg4[%c0_39, %c0_40] : memref<160x128xbf16, #tpu.memory_space<vmem>>, vector<160x128xbf16>
    %cst_41 = arith.constant dense<0.000000e+00> : vector<16x128xf32>
    %180 = tpu.matmul %178, %179, %cst_41 {dimension_numbers = #tpu.dot_dimension_numbers<[1], [0], [0], [1], [0, 0, 1, 1], [], []>} : vector<16x160xbf16>, vector<160x128xbf16>, vector<16x128xf32> -> vector<16x128xf32>
    %c0_42 = arith.constant 0 : index
    %c0_43 = arith.constant 0 : index
    %181 = vector.load %arg5[%c0_42, %c0_43] : memref<1x128xf32, #tpu.memory_space<vmem>>, vector<1x128xf32>
    %182 = vector.broadcast %181 : vector<1x128xf32> to vector<16x128xf32>
    %183 = arith.addf %180, %182 : vector<16x128xf32>
    %c0_44 = arith.constant 0 : index
    %c0_45 = arith.constant 0 : index
    %184 = vector.load %arg6[%c0_44, %c0_45] : memref<16x128xf32, #tpu.memory_space<vmem>>, vector<16x128xf32>
    tpu.vector_store %arg6[%c0_44, %c0_45], %183 {strides = array<i32>} : memref<16x128xf32, #tpu.memory_space<vmem>>, vector<16x128xf32>,
    return
  }
}

</mosaic_0001>

<llo_original>
// kernel: net_forward.1
$region0: #{net_forward.1}
  #allocation0 [shape = 'u32[]', space=smem, size = 0x4, offset = 0x4, fixed_abs, tag = 'smem constant byte address 0x4 - core index']
  #allocation1 [shape = 'u32[72,128]{1,0:T(1,128)}', space=vmem, size = 0x9000, scoped, tag = 'internal scratch']
  %s0 = inlined_call_operand.vmem [shape: f32[16,5], index: 0, kind: input, shape index: {}]
  %s1 = inlined_call_operand.hbm [shape: bf16[5,1024], index: 1, kind: input, shape index: {}]
  %s2 = inlined_call_operand.hbm [shape: bf16[160,1024], index: 2, kind: input, shape index: {}]
  %s3 = inlined_call_operand.vmem [shape: f32[1,1024], index: 3, kind: input, shape index: {}]
  %s4 = inlined_call_operand.hbm [shape: bf16[160,128], index: 4, kind: input, shape index: {}]
  %s5 = inlined_call_operand.vmem [shape: f32[1,128], index: 5, kind: input, shape index: {}]
  %s6 = inlined_call_operand.vmem [shape: f32[16,128], index: 6, kind: output, shape index: {}]
  %s7 = sld [smem:[#allocation0]]
  $region46: #{net_forward.1} parent=0
    _
  %s9 = ssub.s32 1, %s7
  %s10 = scalar_select 0, %s9, %s7
  $region1: #{net_forward.1} parent=0
    #allocation2 [shape = 'u8[16384]{0}', space=vmem, size = 0x4000, scoped, tag = 'input window, operand 1, single buffered']
    #allocation3 [shape = 's32[1]{0}', space=sflag, size = 0x4, scoped, tag = 'scoped memory for net_forward.1']
    #allocation4 [shape = 'u8[327680]{0}', space=vmem, size = 0x50000, scoped, tag = 'input window, operand 2, single buffered']
    #allocation5 [shape = 's32[1]{0}', space=sflag, size = 0x4, scoped, tag = 'scoped memory for net_forward.1']
    #allocation6 [shape = 'u8[40960]{0}', space=vmem, size = 0xa000, scoped, tag = 'input window, operand 4, single buffered']
    %11 = vsyncpa [#allocation3], 0
    %12 = vsyncpa [#allocation5], 0
    // Predicated region
    $region2: #{net_forward.1} parent=1 // pred_check
      _
    $region3: #{net_forward.1} parent=1 // pred_check_branch
      %14 = sbr.rel (0) target = $region5
    $region4: #{net_forward.1} parent=1 // pred_region
      _
    $region5: #{net_forward.1} parent=1 // pred_fallthru
      _
    // Predicated region
    $region6: #{net_forward.1} parent=1 // pred_check
      _
    $region7: #{net_forward.1} parent=1 // pred_check_branch
      %16 = sbr.rel (0) target = $region9
    $region8: #{net_forward.1} parent=1 // pred_region
      %18 = vsyncadd [#allocation3], 0
      %s20 = sshll.u32 %s1, 4
      %s21 = int_to_ptr.hbm [resolvable:$true] %s20
      %s22 = sshll.u32 [#allocation2], 4
      %s23 = int_to_ptr.vmem [resolvable:$true] %s22
      %25 = dma.hbm_to_vmem [thread:$0]  %s21, 512, %s23, [#allocation3]
    $region9: #{net_forward.1} parent=1 // pred_fallthru
      _
    // Predicated region
    $region10: #{net_forward.1} parent=1 // pred_check
      _
    $region11: #{net_forward.1} parent=1 // pred_check_branch
      %27 = sbr.rel (0) target = $region13
    $region12: #{net_forward.1} parent=1 // pred_region
      %29 = vsyncadd [#allocation5], 0
      %s30 = sshll.u32 %s2, 4
      %s31 = int_to_ptr.hbm [resolvable:$true] %s30
      %s32 = sshll.u32 [#allocation4], 4
      %s33 = int_to_ptr.vmem [resolvable:$true] %s32
      %38 = dma.hbm_to_vmem [thread:$0]  %s31, 10240, %s33, [#allocation5], 512, 512, 32
    $region13: #{net_forward.1} parent=1 // pred_fallthru
      _
    // Predicated region
    $region14: #{net_forward.1} parent=1 // pred_check
      _
    $region15: #{net_forward.1} parent=1 // pred_check_branch
      %40 = sbr.rel (0) target = $region17
    $region16: #{net_forward.1} parent=1 // pred_region
      _
    $region17: #{net_forward.1} parent=1 // pred_fallthru
      _
    // Predicated region
    $region18: #{net_forward.1} parent=1 // pred_check
      _
    $region19: #{net_forward.1} parent=1 // pred_check_branch
      %42 = sbr.rel (0) target = $region21
    $region20: #{net_forward.1} parent=1 // pred_region
      %44 = vsyncadd [#allocation5], 0
      %s45 = sshll.u32 %s4, 4
      %s46 = int_to_ptr.hbm [resolvable:$true] %s45
      %s47 = sshll.u32 [#allocation6], 4
      %s48 = int_to_ptr.vmem [resolvable:$true] %s47
      %53 = dma.hbm_to_vmem [thread:$0]  %s46, 1280, %s48, [#allocation5], 64, 64, 4
    $region21: #{net_forward.1} parent=1 // pred_fallthru
      _
    // Predicated region
    $region22: #{net_forward.1} parent=1 // pred_check
      _
    $region23: #{net_forward.1} parent=1 // pred_check_branch
      %55 = sbr.rel (0) target = $region25
    $region24: #{net_forward.1} parent=1 // pred_region
      _
    $region25: #{net_forward.1} parent=1 // pred_fallthru
      _
    // Predicated region
    $region26: #{net_forward.1} parent=1 // pred_check
      _
    $region27: #{net_forward.1} parent=1 // pred_check_branch
      %57 = sbr.rel (0) target = $region29
    $region28: #{net_forward.1} parent=1 // pred_region
      %59 = dma.done [#allocation3], 512
    $region29: #{net_forward.1} parent=1 // pred_fallthru
      _
    // Predicated region
    $region30: #{net_forward.1} parent=1 // pred_check
      _
    $region31: #{net_forward.1} parent=1 // pred_check_branch
      %61 = sbr.rel (0) target = $region33
    $region32: #{net_forward.1} parent=1 // pred_region
      %63 = dma.done [#allocation5], 10240
    $region33: #{net_forward.1} parent=1 // pred_fallthru
      _
    // Predicated region
    $region34: #{net_forward.1} parent=1 // pred_check
      _
    $region35: #{net_forward.1} parent=1 // pred_check_branch
      %65 = sbr.rel (0) target = $region37
    $region36: #{net_forward.1} parent=1 // pred_region
      %67 = dma.done [#allocation5], 1280
    $region37: #{net_forward.1} parent=1 // pred_fallthru
      _
    %v69 = vld [vmem:[%s0] sm:$0xff]
    %v70 = vld [vmem:[%s0 + $0x8] sm:$0xff]
    %v71 = vpack.c.bf16 %v70, %v69
    %v72 = vld [vmem:[#allocation2] sm:$0x77]
    %v73 = vld [vmem:[#allocation2 + $0x8] sm:$0x77]
    %v74 = vld [vmem:[#allocation2 + $0x10] sm:$0x77]
    %v75 = vld [vmem:[#allocation2 + $0x18] sm:$0x77]
    %v76 = vld [vmem:[%s3] sm:$0xff]
    %v78 = vperm.slane %v76, 0
    %v79 = vperm.slane %v76, 1
    %v80 = vperm.slane %v76, 2
    %v81 = vperm.slane %v76, 3
    %v82 = vperm.slane %v76, 4
    %v83 = vperm.slane %v76, 5
    %v84 = vperm.slane %v76, 6
    %v85 = vperm.slane %v76, 7
    %v98 = vunpack.c.l.b16 %v72
    %v99 = vunpack.c.h.b16 %v72
    %v100 = vunpack.c.l.b16 %v73
    %v101 = vunpack.c.h.b16 %v73
    %v102 = vunpack.c.l.b16 %v74
    %v103 = vunpack.c.h.b16 %v74
    %v104 = vunpack.c.l.b16 %v75
    %v105 = vunpack.c.h.b16 %v75
    %v106 = vpack.c.b16 %v98, %v98
    %v107 = vpack.c.b16 %v99, %v99
    %v108 = vpack.c.b16 %v100, %v100
    %v109 = vpack.c.b16 %v101, %v101
    %v110 = vpack.c.b16 %v102, %v102
    %v111 = vpack.c.b16 %v103, %v103
    %v112 = vpack.c.b16 %v104, %v104
    %v113 = vpack.c.b16 %v105, %v105
    %vm114 = vcmask 39936
    %v116 = vsel %vm114, %v71, 0
    %vm118 = vcmask 1041408
    %vm119 = vcmask 1042432
    %v120 = vsel %vm118, 4294967295, 65535
    %v121 = vsel %vm119, %v120, 0
    %v123 = vand.u32 %v106, %v121
    %v126 = vand.u32 %v107, %v121
    %v129 = vand.u32 %v108, %v121
    %v132 = vand.u32 %v109, %v121
    %v135 = vand.u32 %v110, %v121
    %v138 = vand.u32 %v111, %v121
    %v141 = vand.u32 %v112, %v121
    %v144 = vand.u32 %v113, %v121
    %146 = vmatpush.bf16.msra.mxu0 0
    %147 = vmatpush.bf16.msra.mxu0 0
    %148 = vmatpush.bf16.msra.mxu0 0
    %149 = vmatpush.bf16.msra.mxu0 0
    %150 = vmatpush.bf16.msra.mxu0 0
    %151 = vmatpush.bf16.msra.mxu0 0
    %152 = vmatpush.bf16.msra.mxu0 0
    %153 = vmatpush.bf16.msra.mxu0 %v123
    %154 = vmatmul.bf16.gmra.mxu0 %v116
    %v155 = vpop.f32.mrf.mxu0
    %v156 = vadd.f32 %v78, %v155
    %v157 = vpop.f32.mrf.mxu0
    %v158 = vadd.f32 %v78, %v157
    %159 = vdwg.mxu0
    %160 = vmatpush.bf16.msra.mxu0 0
    %161 = vmatpush.bf16.msra.mxu0 0
    %162 = vmatpush.bf16.msra.mxu0 0
    %163 = vmatpush.bf16.msra.mxu0 0
    %164 = vmatpush.bf16.msra.mxu0 0
    %165 = vmatpush.bf16.msra.mxu0 0
    %166 = vmatpush.bf16.msra.mxu0 0
    %167 = vmatpush.bf16.msra.mxu0 %v126
    %168 = vmatmul.bf16.gmra.mxu0 %v116
    %v169 = vpop.f32.mrf.mxu0
    %v170 = vadd.f32 %v79, %v169
    %v171 = vpop.f32.mrf.mxu0
    %v172 = vadd.f32 %v79, %v171
    %173 = vdwg.mxu0
    %174 = vmatpush.bf16.msra.mxu0 0
    %175 = vmatpush.bf16.msra.mxu0 0
    %176 = vmatpush.bf16.msra.mxu0 0
    %177 = vmatpush.bf16.msra.mxu0 0
    %178 = vmatpush.bf16.msra.mxu0 0
    %179 = vmatpush.bf16.msra.mxu0 0
    %180 = vmatpush.bf16.msra.mxu0 0
    %181 = vmatpush.bf16.msra.mxu0 %v129
    %182 = vmatmul.bf16.gmra.mxu0 %v116
    %v183 = vpop.f32.mrf.mxu0
    %v184 = vadd.f32 %v80, %v183
    %v185 = vpop.f32.mrf.mxu0
    %v186 = vadd.f32 %v80, %v185
    %187 = vdwg.mxu0
    %188 = vmatpush.bf16.msra.mxu0 0
    %189 = vmatpush.bf16.msra.mxu0 0
    %190 = vmatpush.bf16.msra.mxu0 0
    %191 = vmatpush.bf16.msra.mxu0 0
    %192 = vmatpush.bf16.msra.mxu0 0
    %193 = vmatpush.bf16.msra.mxu0 0
    %194 = vmatpush.bf16.msra.mxu0 0
    %195 = vmatpush.bf16.msra.mxu0 %v132
    %196 = vmatmul.bf16.gmra.mxu0 %v116
    %v197 = vpop.f32.mrf.mxu0
    %v198 = vadd.f32 %v81, %v197
    %v199 = vpop.f32.mrf.mxu0
    %v200 = vadd.f32 %v81, %v199
    %201 = vdwg.mxu0
    %202 = vmatpush.bf16.msra.mxu0 0
    %203 = vmatpush.bf16.msra.mxu0 0
    %204 = vmatpush.bf16.msra.mxu0 0
    %205 = vmatpush.bf16.msra.mxu0 0
    %206 = vmatpush.bf16.msra.mxu0 0
    %207 = vmatpush.bf16.msra.mxu0 0
    %208 = vmatpush.bf16.msra.mxu0 0
    %209 = vmatpush.bf16.msra.mxu0 %v135
    %210 = vmatmul.bf16.gmra.mxu0 %v116
    %v211 = vpop.f32.mrf.mxu0
    %v212 = vadd.f32 %v82, %v211
    %v213 = vpop.f32.mrf.mxu0
    %v214 = vadd.f32 %v82, %v213
    %215 = vdwg.mxu0
    %216 = vmatpush.bf16.msra.mxu0 0
    %217 = vmatpush.bf16.msra.mxu0 0
    %218 = vmatpush.bf16.msra.mxu0 0
    %219 = vmatpush.bf16.msra.mxu0 0
    %220 = vmatpush.bf16.msra.mxu0 0
    %221 = vmatpush.bf16.msra.mxu0 0
    %222 = vmatpush.bf16.msra.mxu0 0
    %223 = vmatpush.bf16.msra.mxu0 %v138
    %224 = vmatmul.bf16.gmra.mxu0 %v116
    %v225 = vpop.f32.mrf.mxu0
    %v226 = vadd.f32 %v83, %v225
    %v227 = vpop.f32.mrf.mxu0
    %v228 = vadd.f32 %v83, %v227
    %229 = vdwg.mxu0
    %230 = vmatpush.bf16.msra.mxu0 0
    %231 = vmatpush.bf16.msra.mxu0 0
    %232 = vmatpush.bf16.msra.mxu0 0
    %233 = vmatpush.bf16.msra.mxu0 0
    %234 = vmatpush.bf16.msra.mxu0 0
    %235 = vmatpush.bf16.msra.mxu0 0
    %236 = vmatpush.bf16.msra.mxu0 0
    %237 = vmatpush.bf16.msra.mxu0 %v141
    %238 = vmatmul.bf16.gmra.mxu0 %v116
    %v239 = vpop.f32.mrf.mxu0
    %v240 = vadd.f32 %v84, %v239
    %v241 = vpop.f32.mrf.mxu0
    %v242 = vadd.f32 %v84, %v241
    %243 = vdwg.mxu0
    %244 = vmatpush.bf16.msra.mxu0 0
    %245 = vmatpush.bf16.msra.mxu0 0
    %246 = vmatpush.bf16.msra.mxu0 0
    %247 = vmatpush.bf16.msra.mxu0 0
    %248 = vmatpush.bf16.msra.mxu0 0
    %249 = vmatpush.bf16.msra.mxu0 0
    %250 = vmatpush.bf16.msra.mxu0 0
    %251 = vmatpush.bf16.msra.mxu0 %v144
    %252 = vmatmul.bf16.gmra.mxu0 %v116
    %v253 = vpop.f32.mrf.mxu0
    %v254 = vadd.f32 %v85, %v253
    %v255 = vpop.f32.mrf.mxu0
    %v256 = vadd.f32 %v85, %v255
    %257 = vdwg.mxu0
    %v258 = vld [vmem:[#allocation4] sm:$0xff]
    %v259 = vld [vmem:[#allocation4 + $0x8] sm:$0xff]
    %v260 = vld [vmem:[#allocation4 + $0x10] sm:$0xff]
    %v261 = vld [vmem:[#allocation4 + $0x18] sm:$0xff]
    %v262 = vld [vmem:[#allocation4 + $0x20] sm:$0xff]
    %v263 = vld [vmem:[#allocation4 + $0x28] sm:$0xff]
    %v264 = vld [vmem:[#allocation4 + $0x30] sm:$0xff]
    %v265 = vld [vmem:[#allocation4 + $0x38] sm:$0xff]
    %v266 = vld [vmem:[#allocation4 + $0x40] sm:$0xff]
    %v267 = vld [vmem:[#allocation4 + $0x48] sm:$0xff]
    %v268 = vld [vmem:[#allocation4 + $0x50] sm:$0xff]
    %v269 = vld [vmem:[#allocation4 + $0x58] sm:$0xff]
    %v270 = vld [vmem:[#allocation4 + $0x60] sm:$0xff]
    %v271 = vld [vmem:[#allocation4 + $0x68] sm:$0xff]
    %v272 = vld [vmem:[#allocation4 + $0x70] sm:$0xff]
    %v273 = vld [vmem:[#allocation4 + $0x78] sm:$0xff]
    %v274 = vld [vmem:[#allocation4 + $0x80] sm:$0xff]
    %v275 = vld [vmem:[#allocation4 + $0x88] sm:$0xff]
    %v276 = vld [vmem:[#allocation4 + $0x90] sm:$0xff]
    %v277 = vld [vmem:[#allocation4 + $0x98] sm:$0xff]
    %v278 = vld [vmem:[#allocation4 + $0xa0] sm:$0xff]
    %v279 = vld [vmem:[#allocation4 + $0xa8] sm:$0xff]
    %v280 = vld [vmem:[#allocation4 + $0xb0] sm:$0xff]
    %v281 = vld [vmem:[#allocation4 + $0xb8] sm:$0xff]
    %v282 = vld [vmem:[#allocation4 + $0xc0] sm:$0xff]
    %v283 = vld [vmem:[#allocation4 + $0xc8] sm:$0xff]
    %v284 = vld [vmem:[#allocation4 + $0xd0] sm:$0xff]
    %v285 = vld [vmem:[#allocation4 + $0xd8] sm:$0xff]
    %v286 = vld [vmem:[#allocation4 + $0xe0] sm:$0xff]
    %v287 = vld [vmem:[#allocation4 + $0xe8] sm:$0xff]
    %v288 = vld [vmem:[#allocation4 + $0xf0] sm:$0xff]
    %v289 = vld [vmem:[#allocation4 + $0xf8] sm:$0xff]
    %v290 = vld [vmem:[#allocation4 + $0x100] sm:$0xff]
    %v291 = vld [vmem:[#allocation4 + $0x108] sm:$0xff]
    %v292 = vld [vmem:[#allocation4 + $0x110] sm:$0xff]
    %v293 = vld [vmem:[#allocation4 + $0x118] sm:$0xff]
    %v294 = vld [vmem:[#allocation4 + $0x120] sm:$0xff]
    %v295 = vld [vmem:[#allocation4 + $0x128] sm:$0xff]
    %v296 = vld [vmem:[#allocation4 + $0x130] sm:$0xff]
    %v297 = vld [vmem:[#allocation4 + $0x138] sm:$0xff]
    %v298 = vld [vmem:[#allocation4 + $0x140] sm:$0xff]
    %v299 = vld [vmem:[#allocation4 + $0x148] sm:$0xff]
    %v300 = vld [vmem:[#allocation4 + $0x150] sm:$0xff]
    %v301 = vld [vmem:[#allocation4 + $0x158] sm:$0xff]
    %v302 = vld [vmem:[#allocation4 + $0x160] sm:$0xff]
    %v303 = vld [vmem:[#allocation4 + $0x168] sm:$0xff]
    %v304 = vld [vmem:[#allocation4 + $0x170] sm:$0xff]
    %v305 = vld [vmem:[#allocation4 + $0x178] sm:$0xff]
    %v306 = vld [vmem:[#allocation4 + $0x180] sm:$0xff]
    %v307 = vld [vmem:[#allocation4 + $0x188] sm:$0xff]
    %v308 = vld [vmem:[#allocation4 + $0x190] sm:$0xff]
    %v309 = vld [vmem:[#allocation4 + $0x198] sm:$0xff]
    %v310 = vld [vmem:[#allocation4 + $0x1a0] sm:$0xff]
    %v311 = vld [vmem:[#allocation4 + $0x1a8] sm:$0xff]
    %v312 = vld [vmem:[#allocation4 + $0x1b0] sm:$0xff]
    %v313 = vld [vmem:[#allocation4 + $0x1b8] sm:$0xff]
    %v314 = vld [vmem:[#allocation4 + $0x1c0] sm:$0xff]
    %v315 = vld [vmem:[#allocation4 + $0x1c8] sm:$0xff]
    %v316 = vld [vmem:[#allocation4 + $0x1d0] sm:$0xff]
    %v317 = vld [vmem:[#allocation4 + $0x1d8] sm:$0xff]
    %v318 = vld [vmem:[#allocation4 + $0x1e0] sm:$0xff]
    %v319 = vld [vmem:[#allocation4 + $0x1e8] sm:$0xff]
    %v320 = vld [vmem:[#allocation4 + $0x1f0] sm:$0xff]
    %v321 = vld [vmem:[#allocation4 + $0x1f8] sm:$0xff]
    %v322 = vld [vmem:[#allocation4 + $0x200] sm:$0xff]
    %v323 = vld [vmem:[#allocation4 + $0x208] sm:$0xff]
    %v324 = vld [vmem:[#allocation4 + $0x210] sm:$0xff]
    %v325 = vld [vmem:[#allocation4 + $0x218] sm:$0xff]
    %v326 = vld [vmem:[#allocation4 + $0x220] sm:$0xff]
    %v327 = vld [vmem:[#allocation4 + $0x228] sm:$0xff]
    %v328 = vld [vmem:[#allocation4 + $0x230] sm:$0xff]
    %v329 = vld [vmem:[#allocation4 + $0x238] sm:$0xff]
    %v330 = vld [vmem:[#allocation4 + $0x240] sm:$0xff]
    %v331 = vld [vmem:[#allocation4 + $0x248] sm:$0xff]
    %v332 = vld [vmem:[#allocation4 + $0x250] sm:$0xff]
    %v333 = vld [vmem:[#allocation4 + $0x258] sm:$0xff]
    %v334 = vld [vmem:[#allocation4 + $0x260] sm:$0xff]
    %v335 = vld [vmem:[#allocation4 + $0x268] sm:$0xff]
    %v336 = vld [vmem:[#allocation4 + $0x270] sm:$0xff]
    %v337 = vld [vmem:[#allocation4 + $0x278] sm:$0xff]
    %v418 = vunpack.c.l.b16 %v258
    %v419 = vunpack.c.h.b16 %v258
    %v420 = vunpack.c.l.b16 %v259
    %v421 = vunpack.c.h.b16 %v259
    %v422 = vunpack.c.l.b16 %v260
    %v423 = vunpack.c.h.b16 %v260
    %v424 = vunpack.c.l.b16 %v261
    %v425 = vunpack.c.h.b16 %v261
    %v426 = vunpack.c.l.b16 %v262
    %v427 = vunpack.c.h.b16 %v262
    %v428 = vunpack.c.l.b16 %v263
    %v429 = vunpack.c.h.b16 %v263
    %v430 = vunpack.c.l.b16 %v264
    %v431 = vunpack.c.h.b16 %v264
    %v432 = vunpack.c.l.b16 %v265
    %v433 = vunpack.c.h.b16 %v265
    %v434 = vunpack.c.l.b16 %v266
    %v435 = vunpack.c.h.b16 %v266
    %v436 = vunpack.c.l.b16 %v267
    %v437 = vunpack.c.h.b16 %v267
    %v438 = vunpack.c.l.b16 %v268
    %v439 = vunpack.c.h.b16 %v268
    %v440 = vunpack.c.l.b16 %v269
    %v441 = vunpack.c.h.b16 %v269
    %v442 = vunpack.c.l.b16 %v270
    %v443 = vunpack.c.h.b16 %v270
    %v444 = vunpack.c.l.b16 %v271
    %v445 = vunpack.c.h.b16 %v271
    %v446 = vunpack.c.l.b16 %v272
    %v447 = vunpack.c.h.b16 %v272
    %v448 = vunpack.c.l.b16 %v273
    %v449 = vunpack.c.h.b16 %v273
    %v450 = vunpack.c.l.b16 %v274
    %v451 = vunpack.c.h.b16 %v274
    %v452 = vunpack.c.l.b16 %v275
    %v453 = vunpack.c.h.b16 %v275
    %v454 = vunpack.c.l.b16 %v276
    %v455 = vunpack.c.h.b16 %v276
    %v456 = vunpack.c.l.b16 %v277
    %v457 = vunpack.c.h.b16 %v277
    %v458 = vunpack.c.l.b16 %v278
    %v459 = vunpack.c.h.b16 %v278
    %v460 = vunpack.c.l.b16 %v279
    %v461 = vunpack.c.h.b16 %v279
    %v462 = vunpack.c.l.b16 %v280
    %v463 = vunpack.c.h.b16 %v280
    %v464 = vunpack.c.l.b16 %v281
    %v465 = vunpack.c.h.b16 %v281
    %v466 = vunpack.c.l.b16 %v282
    %v467 = vunpack.c.h.b16 %v282
    %v468 = vunpack.c.l.b16 %v283
    %v469 = vunpack.c.h.b16 %v283
    %v470 = vunpack.c.l.b16 %v284
    %v471 = vunpack.c.h.b16 %v284
    %v472 = vunpack.c.l.b16 %v285
    %v473 = vunpack.c.h.b16 %v285
    %v474 = vunpack.c.l.b16 %v286
    %v475 = vunpack.c.h.b16 %v286
    %v476 = vunpack.c.l.b16 %v287
    %v477 = vunpack.c.h.b16 %v287
    %v478 = vunpack.c.l.b16 %v288
    %v479 = vunpack.c.h.b16 %v288
    %v480 = vunpack.c.l.b16 %v289
    %v481 = vunpack.c.h.b16 %v289
    %v482 = vunpack.c.l.b16 %v290
    %v483 = vunpack.c.h.b16 %v290
    %v484 = vunpack.c.l.b16 %v291
    %v485 = vunpack.c.h.b16 %v291
    %v486 = vunpack.c.l.b16 %v292
    %v487 = vunpack.c.h.b16 %v292
    %v488 = vunpack.c.l.b16 %v293
    %v489 = vunpack.c.h.b16 %v293
    %v490 = vunpack.c.l.b16 %v294
    %v491 = vunpack.c.h.b16 %v294
    %v492 = vunpack.c.l.b16 %v295
    %v493 = vunpack.c.h.b16 %v295
    %v494 = vunpack.c.l.b16 %v296
    %v495 = vunpack.c.h.b16 %v296
    %v496 = vunpack.c.l.b16 %v297
    %v497 = vunpack.c.h.b16 %v297
    %v498 = vunpack.c.l.b16 %v298
    %v499 = vunpack.c.h.b16 %v298
    %v500 = vunpack.c.l.b16 %v299
    %v501 = vunpack.c.h.b16 %v299
    %v502 = vunpack.c.l.b16 %v300
    %v503 = vunpack.c.h.b16 %v300
    %v504 = vunpack.c.l.b16 %v301
    %v505 = vunpack.c.h.b16 %v301
    %v506 = vunpack.c.l.b16 %v302
    %v507 = vunpack.c.h.b16 %v302
    %v508 = vunpack.c.l.b16 %v303
    %v509 = vunpack.c.h.b16 %v303
    %v510 = vunpack.c.l.b16 %v304
    %v511 = vunpack.c.h.b16 %v304
    %v512 = vunpack.c.l.b16 %v305
    %v513 = vunpack.c.h.b16 %v305
    %v514 = vunpack.c.l.b16 %v306
    %v515 = vunpack.c.h.b16 %v306
    %v516 = vunpack.c.l.b16 %v307
    %v517 = vunpack.c.h.b16 %v307
    %v518 = vunpack.c.l.b16 %v308
    %v519 = vunpack.c.h.b16 %v308
    %v520 = vunpack.c.l.b16 %v309
    %v521 = vunpack.c.h.b16 %v309
    %v522 = vunpack.c.l.b16 %v310
    %v523 = vunpack.c.h.b16 %v310
    %v524 = vunpack.c.l.b16 %v311
    %v525 = vunpack.c.h.b16 %v311
    %v526 = vunpack.c.l.b16 %v312
    %v527 = vunpack.c.h.b16 %v312
    %v528 = vunpack.c.l.b16 %v313
    %v529 = vunpack.c.h.b16 %v313
    %v530 = vunpack.c.l.b16 %v314
    %v531 = vunpack.c.h.b16 %v314
    %v532 = vunpack.c.l.b16 %v315
    %v533 = vunpack.c.h.b16 %v315
    %v534 = vunpack.c.l.b16 %v316
    %v535 = vunpack.c.h.b16 %v316
    %v536 = vunpack.c.l.b16 %v317
    %v537 = vunpack.c.h.b16 %v317
    %v538 = vunpack.c.l.b16 %v318
    %v539 = vunpack.c.h.b16 %v318
    %v540 = vunpack.c.l.b16 %v319
    %v541 = vunpack.c.h.b16 %v319
    %v542 = vunpack.c.l.b16 %v320
    %v543 = vunpack.c.h.b16 %v320
    %v544 = vunpack.c.l.b16 %v321
    %v545 = vunpack.c.h.b16 %v321
    %v546 = vunpack.c.l.b16 %v322
    %v547 = vunpack.c.h.b16 %v322
    %v548 = vunpack.c.l.b16 %v323
    %v549 = vunpack.c.h.b16 %v323
    %v550 = vunpack.c.l.b16 %v324
    %v551 = vunpack.c.h.b16 %v324
    %v552 = vunpack.c.l.b16 %v325
    %v553 = vunpack.c.h.b16 %v325
    %v554 = vunpack.c.l.b16 %v326
    %v555 = vunpack.c.h.b16 %v326
    %v556 = vunpack.c.l.b16 %v327
    %v557 = vunpack.c.h.b16 %v327
    %v558 = vunpack.c.l.b16 %v328
    %v559 = vunpack.c.h.b16 %v328
    %v560 = vunpack.c.l.b16 %v329
    %v561 = vunpack.c.h.b16 %v329
    %v562 = vunpack.c.l.b16 %v330
    %v563 = vunpack.c.h.b16 %v330
    %v564 = vunpack.c.l.b16 %v331
    %v565 = vunpack.c.h.b16 %v331
    %v566 = vunpack.c.l.b16 %v332
    %v567 = vunpack.c.h.b16 %v332
    %v568 = vunpack.c.l.b16 %v333
    %v569 = vunpack.c.h.b16 %v333
    %v570 = vunpack.c.l.b16 %v334
    %v571 = vunpack.c.h.b16 %v334
    %v572 = vunpack.c.l.b16 %v335
    %v573 = vunpack.c.h.b16 %v335
    %v574 = vunpack.c.l.b16 %v336
    %v575 = vunpack.c.h.b16 %v336
    %v576 = vunpack.c.l.b16 %v337
    %v577 = vunpack.c.h.b16 %v337
    %v578 = vpack.c.b16 %v426, %v418
    %v579 = vpack.c.b16 %v427, %v419
    %v580 = vpack.c.b16 %v428, %v420
    %v581 = vpack.c.b16 %v429, %v421
    %v582 = vpack.c.b16 %v430, %v422
    %v583 = vpack.c.b16 %v431, %v423
    %v584 = vpack.c.b16 %v432, %v424
    %v585 = vpack.c.b16 %v433, %v425
    %v586 = vpack.c.b16 %v442, %v434
    %v587 = vpack.c.b16 %v443, %v435
    %v588 = vpack.c.b16 %v444, %v436
    %v589 = vpack.c.b16 %v445, %v437
    %v590 = vpack.c.b16 %v446, %v438
    %v591 = vpack.c.b16 %v447, %v439
    %v592 = vpack.c.b16 %v448, %v440
    %v593 = vpack.c.b16 %v449, %v441
    %v594 = vpack.c.b16 %v458, %v450
    %v595 = vpack.c.b16 %v459, %v451
    %v596 = vpack.c.b16 %v460, %v452
    %v597 = vpack.c.b16 %v461, %v453
    %v598 = vpack.c.b16 %v462, %v454
    %v599 = vpack.c.b16 %v463, %v455
    %v600 = vpack.c.b16 %v464, %v456
    %v601 = vpack.c.b16 %v465, %v457
    %v602 = vpack.c.b16 %v474, %v466
    %v603 = vpack.c.b16 %v475, %v467
    %v604 = vpack.c.b16 %v476, %v468
    %v605 = vpack.c.b16 %v477, %v469
    %v606 = vpack.c.b16 %v478, %v470
    %v607 = vpack.c.b16 %v479, %v471
    %v608 = vpack.c.b16 %v480, %v472
    %v609 = vpack.c.b16 %v481, %v473
    %v610 = vpack.c.b16 %v490, %v482
    %v611 = vpack.c.b16 %v491, %v483
    %v612 = vpack.c.b16 %v492, %v484
    %v613 = vpack.c.b16 %v493, %v485
    %v614 = vpack.c.b16 %v494, %v486
    %v615 = vpack.c.b16 %v495, %v487
    %v616 = vpack.c.b16 %v496, %v488
    %v617 = vpack.c.b16 %v497, %v489
    %v618 = vpack.c.b16 %v506, %v498
    %v619 = vpack.c.b16 %v507, %v499
    %v620 = vpack.c.b16 %v508, %v500
    %v621 = vpack.c.b16 %v509, %v501
    %v622 = vpack.c.b16 %v510, %v502
    %v623 = vpack.c.b16 %v511, %v503
    %v624 = vpack.c.b16 %v512, %v504
    %v625 = vpack.c.b16 %v513, %v505
    %v626 = vpack.c.b16 %v522, %v514
    %v627 = vpack.c.b16 %v523, %v515
    %v628 = vpack.c.b16 %v524, %v516
    %v629 = vpack.c.b16 %v525, %v517
    %v630 = vpack.c.b16 %v526, %v518
    %v631 = vpack.c.b16 %v527, %v519
    %v632 = vpack.c.b16 %v528, %v520
    %v633 = vpack.c.b16 %v529, %v521
    %v634 = vpack.c.b16 %v538, %v530
    %v635 = vpack.c.b16 %v539, %v531
    %v636 = vpack.c.b16 %v540, %v532
    %v637 = vpack.c.b16 %v541, %v533
    %v638 = vpack.c.b16 %v542, %v534
    %v639 = vpack.c.b16 %v543, %v535
    %v640 = vpack.c.b16 %v544, %v536
    %v641 = vpack.c.b16 %v545, %v537
    %v642 = vpack.c.b16 %v554, %v546
    %v643 = vpack.c.b16 %v555, %v547
    %v644 = vpack.c.b16 %v556, %v548
    %v645 = vpack.c.b16 %v557, %v549
    %v646 = vpack.c.b16 %v558, %v550
    %v647 = vpack.c.b16 %v559, %v551
    %v648 = vpack.c.b16 %v560, %v552
    %v649 = vpack.c.b16 %v561, %v553
    %v650 = vpack.c.b16 %v570, %v562
    %v651 = vpack.c.b16 %v571, %v563
    %v652 = vpack.c.b16 %v572, %v564
    %v653 = vpack.c.b16 %v573, %v565
    %v654 = vpack.c.b16 %v574, %v566
    %v655 = vpack.c.b16 %v575, %v567
    %v656 = vpack.c.b16 %v576, %v568
    %v657 = vpack.c.b16 %v577, %v569
    %vm738 = vcmask 261120
    %v740 = vsel %vm738, 0, 0
    %742 = vmatpush.bf16.msra.mxu0 %v634
    %743 = vmatpush.bf16.msra.mxu0 %v626
    %744 = vmatpush.bf16.msra.mxu0 %v618
    %745 = vmatpush.bf16.msra.mxu0 %v610
    %746 = vmatpush.bf16.msra.mxu0 %v602
    %747 = vmatpush.bf16.msra.mxu0 %v594
    %748 = vmatpush.bf16.msra.mxu0 %v586
    %749 = vmatpush.bf16.msra.mxu0 %v578
    %750 = vmatmul.bf16.gmra.mxu0 0
    %v751 = vpop.f32.mrf.mxu0
    %v752 = vadd.f32 0.0, %v751
    %v753 = vpop.f32.mrf.mxu0
    %754 = vdwg.mxu0
    %755 = vmatpush.bf16.msra.mxu0 0
    %756 = vmatpush.bf16.msra.mxu0 0
    %757 = vmatpush.bf16.msra.mxu0 0
    %758 = vmatpush.bf16.msra.mxu0 0
    %759 = vmatpush.bf16.msra.mxu0 0
    %760 = vmatpush.bf16.msra.mxu0 0
    %761 = vmatpush.bf16.msra.mxu0 %v650
    %762 = vmatpush.bf16.msra.mxu0 %v642
    %763 = vmatmul.bf16.gmra.mxu0 %v740
    %v764 = vpop.f32.mrf.mxu0
    %v765 = vadd.f32 %v752, %v764
    %v766 = vpop.f32.mrf.mxu0
    %767 = vdwg.mxu0
    %768 = vmatpush.bf16.msra.mxu0 %v635
    %769 = vmatpush.bf16.msra.mxu0 %v627
    %770 = vmatpush.bf16.msra.mxu0 %v619
    %771 = vmatpush.bf16.msra.mxu0 %v611
    %772 = vmatpush.bf16.msra.mxu0 %v603
    %773 = vmatpush.bf16.msra.mxu0 %v595
    %774 = vmatpush.bf16.msra.mxu0 %v587
    %775 = vmatpush.bf16.msra.mxu0 %v579
    %776 = vmatmul.bf16.gmra.mxu0 0
    %v777 = vpop.f32.mrf.mxu0
    %v778 = vadd.f32 0.0, %v777
    %v779 = vpop.f32.mrf.mxu0
    %780 = vdwg.mxu0
    %781 = vmatpush.bf16.msra.mxu0 0
    %782 = vmatpush.bf16.msra.mxu0 0
    %783 = vmatpush.bf16.msra.mxu0 0
    %784 = vmatpush.bf16.msra.mxu0 0
    %785 = vmatpush.bf16.msra.mxu0 0
    %786 = vmatpush.bf16.msra.mxu0 0
    %787 = vmatpush.bf16.msra.mxu0 %v651
    %788 = vmatpush.bf16.msra.mxu0 %v643
    %789 = vmatmul.bf16.gmra.mxu0 %v740
    %v790 = vpop.f32.mrf.mxu0
    %v791 = vadd.f32 %v778, %v790
    %v792 = vpop.f32.mrf.mxu0
    %793 = vdwg.mxu0
    %794 = vmatpush.bf16.msra.mxu0 %v636
    %795 = vmatpush.bf16.msra.mxu0 %v628
    %796 = vmatpush.bf16.msra.mxu0 %v620
    %797 = vmatpush.bf16.msra.mxu0 %v612
    %798 = vmatpush.bf16.msra.mxu0 %v604
    %799 = vmatpush.bf16.msra.mxu0 %v596
    %800 = vmatpush.bf16.msra.mxu0 %v588
    %801 = vmatpush.bf16.msra.mxu0 %v580
    %802 = vmatmul.bf16.gmra.mxu0 0
    %v803 = vpop.f32.mrf.mxu0
    %v804 = vadd.f32 0.0, %v803
    %v805 = vpop.f32.mrf.mxu0
    %806 = vdwg.mxu0
    %807 = vmatpush.bf16.msra.mxu0 0
    %808 = vmatpush.bf16.msra.mxu0 0
    %809 = vmatpush.bf16.msra.mxu0 0
    %810 = vmatpush.bf16.msra.mxu0 0
    %811 = vmatpush.bf16.msra.mxu0 0
    %812 = vmatpush.bf16.msra.mxu0 0
    %813 = vmatpush.bf16.msra.mxu0 %v652
    %814 = vmatpush.bf16.msra.mxu0 %v644
    %815 = vmatmul.bf16.gmra.mxu0 %v740
    %v816 = vpop.f32.mrf.mxu0
    %v817 = vadd.f32 %v804, %v816
    %v818 = vpop.f32.mrf.mxu0
    %819 = vdwg.mxu0
    %820 = vmatpush.bf16.msra.mxu0 %v637
    %821 = vmatpush.bf16.msra.mxu0 %v629
    %822 = vmatpush.bf16.msra.mxu0 %v621
    %823 = vmatpush.bf16.msra.mxu0 %v613
    %824 = vmatpush.bf16.msra.mxu0 %v605
    %825 = vmatpush.bf16.msra.mxu0 %v597
    %826 = vmatpush.bf16.msra.mxu0 %v589
    %827 = vmatpush.bf16.msra.mxu0 %v581
    %828 = vmatmul.bf16.gmra.mxu0 0
    %v829 = vpop.f32.mrf.mxu0
    %v830 = vadd.f32 0.0, %v829
    %v831 = vpop.f32.mrf.mxu0
    %832 = vdwg.mxu0
    %833 = vmatpush.bf16.msra.mxu0 0
    %834 = vmatpush.bf16.msra.mxu0 0
    %835 = vmatpush.bf16.msra.mxu0 0
    %836 = vmatpush.bf16.msra.mxu0 0
    %837 = vmatpush.bf16.msra.mxu0 0
    %838 = vmatpush.bf16.msra.mxu0 0
    %839 = vmatpush.bf16.msra.mxu0 %v653
    %840 = vmatpush.bf16.msra.mxu0 %v645
    %841 = vmatmul.bf16.gmra.mxu0 %v740
    %v842 = vpop.f32.mrf.mxu0
    %v843 = vadd.f32 %v830, %v842
    %v844 = vpop.f32.mrf.mxu0
    %845 = vdwg.mxu0
    %846 = vmatpush.bf16.msra.mxu0 %v638
    %847 = vmatpush.bf16.msra.mxu0 %v630
    %848 = vmatpush.bf16.msra.mxu0 %v622
    %849 = vmatpush.bf16.msra.mxu0 %v614
    %850 = vmatpush.bf16.msra.mxu0 %v606
    %851 = vmatpush.bf16.msra.mxu0 %v598
    %852 = vmatpush.bf16.msra.mxu0 %v590
    %853 = vmatpush.bf16.msra.mxu0 %v582
    %854 = vmatmul.bf16.gmra.mxu0 0
    %v855 = vpop.f32.mrf.mxu0
    %v856 = vadd.f32 0.0, %v855
    %v857 = vpop.f32.mrf.mxu0
    %858 = vdwg.mxu0
    %859 = vmatpush.bf16.msra.mxu0 0
    %860 = vmatpush.bf16.msra.mxu0 0
    %861 = vmatpush.bf16.msra.mxu0 0
    %862 = vmatpush.bf16.msra.mxu0 0
    %863 = vmatpush.bf16.msra.mxu0 0
    %864 = vmatpush.bf16.msra.mxu0 0
    %865 = vmatpush.bf16.msra.mxu0 %v654
    %866 = vmatpush.bf16.msra.mxu0 %v646
    %867 = vmatmul.bf16.gmra.mxu0 %v740
    %v868 = vpop.f32.mrf.mxu0
    %v869 = vadd.f32 %v856, %v868
    %v870 = vpop.f32.mrf.mxu0
    %871 = vdwg.mxu0
    %872 = vmatpush.bf16.msra.mxu0 %v639
    %873 = vmatpush.bf16.msra.mxu0 %v631
    %874 = vmatpush.bf16.msra.mxu0 %v623
    %875 = vmatpush.bf16.msra.mxu0 %v615
    %876 = vmatpush.bf16.msra.mxu0 %v607
    %877 = vmatpush.bf16.msra.mxu0 %v599
    %878 = vmatpush.bf16.msra.mxu0 %v591
    %879 = vmatpush.bf16.msra.mxu0 %v583
    %880 = vmatmul.bf16.gmra.mxu0 0
    %v881 = vpop.f32.mrf.mxu0
    %v882 = vadd.f32 0.0, %v881
    %v883 = vpop.f32.mrf.mxu0
    %884 = vdwg.mxu0
    %885 = vmatpush.bf16.msra.mxu0 0
    %886 = vmatpush.bf16.msra.mxu0 0
    %887 = vmatpush.bf16.msra.mxu0 0
    %888 = vmatpush.bf16.msra.mxu0 0
    %889 = vmatpush.bf16.msra.mxu0 0
    %890 = vmatpush.bf16.msra.mxu0 0
    %891 = vmatpush.bf16.msra.mxu0 %v655
    %892 = vmatpush.bf16.msra.mxu0 %v647
    %893 = vmatmul.bf16.gmra.mxu0 %v740
    %v894 = vpop.f32.mrf.mxu0
    %v895 = vadd.f32 %v882, %v894
    %v896 = vpop.f32.mrf.mxu0
    %897 = vdwg.mxu0
    %898 = vmatpush.bf16.msra.mxu0 %v640
    %899 = vmatpush.bf16.msra.mxu0 %v632
    %900 = vmatpush.bf16.msra.mxu0 %v624
    %901 = vmatpush.bf16.msra.mxu0 %v616
    %902 = vmatpush.bf16.msra.mxu0 %v608
    %903 = vmatpush.bf16.msra.mxu0 %v600
    %904 = vmatpush.bf16.msra.mxu0 %v592
    %905 = vmatpush.bf16.msra.mxu0 %v584
    %906 = vmatmul.bf16.gmra.mxu0 0
    %v907 = vpop.f32.mrf.mxu0
    %v908 = vadd.f32 0.0, %v907
    %v909 = vpop.f32.mrf.mxu0
    %910 = vdwg.mxu0
    %911 = vmatpush.bf16.msra.mxu0 0
    %912 = vmatpush.bf16.msra.mxu0 0
    %913 = vmatpush.bf16.msra.mxu0 0
    %914 = vmatpush.bf16.msra.mxu0 0
    %915 = vmatpush.bf16.msra.mxu0 0
    %916 = vmatpush.bf16.msra.mxu0 0
    %917 = vmatpush.bf16.msra.mxu0 %v656
    %918 = vmatpush.bf16.msra.mxu0 %v648
    %919 = vmatmul.bf16.gmra.mxu0 %v740
    %v920 = vpop.f32.mrf.mxu0
    %v921 = vadd.f32 %v908, %v920
    %v922 = vpop.f32.mrf.mxu0
    %923 = vdwg.mxu0
    %924 = vmatpush.bf16.msra.mxu0 %v641
    %925 = vmatpush.bf16.msra.mxu0 %v633
    %926 = vmatpush.bf16.msra.mxu0 %v625
    %927 = vmatpush.bf16.msra.mxu0 %v617
    %928 = vmatpush.bf16.msra.mxu0 %v609
    %929 = vmatpush.bf16.msra.mxu0 %v601
    %930 = vmatpush.bf16.msra.mxu0 %v593
    %931 = vmatpush.bf16.msra.mxu0 %v585
    %932 = vmatmul.bf16.gmra.mxu0 0
    %v933 = vpop.f32.mrf.mxu0
    %v934 = vadd.f32 0.0, %v933
    %v935 = vpop.f32.mrf.mxu0
    %936 = vdwg.mxu0
    %937 = vmatpush.bf16.msra.mxu0 0
    %938 = vmatpush.bf16.msra.mxu0 0
    %939 = vmatpush.bf16.msra.mxu0 0
    %940 = vmatpush.bf16.msra.mxu0 0
    %941 = vmatpush.bf16.msra.mxu0 0
    %942 = vmatpush.bf16.msra.mxu0 0
    %943 = vmatpush.bf16.msra.mxu0 %v657
    %944 = vmatpush.bf16.msra.mxu0 %v649
    %945 = vmatmul.bf16.gmra.mxu0 %v740
    %v946 = vpop.f32.mrf.mxu0
    %v947 = vadd.f32 %v934, %v946
    %v948 = vpop.f32.mrf.mxu0
    %949 = vdwg.mxu0
    %v950 = vadd.f32 %v156, %v765
    %v951 = vadd.f32 %v170, %v791
    %v952 = vadd.f32 %v184, %v817
    %v953 = vadd.f32 %v198, %v843
    %v954 = vadd.f32 %v212, %v869
    %v955 = vadd.f32 %v226, %v895
    %v956 = vadd.f32 %v240, %v921
    %v957 = vadd.f32 %v254, %v947
    %v958 = vxor.u32 %v950, 2147483648
    %v959 = vxor.u32 %v951, 2147483648
    %v960 = vxor.u32 %v952, 2147483648
    %v961 = vxor.u32 %v953, 2147483648
    %v962 = vxor.u32 %v954, 2147483648
    %v963 = vxor.u32 %v955, 2147483648
    %v964 = vmul.f32 %v958, 1.442695
    %v965 = vpow.pop %v964
    %v966 = vmul.f32 %v959, 1.442695
    %v967 = vpow.pop %v966
    %v968 = vmul.f32 %v960, 1.442695
    %v969 = vpow.pop %v968
    %v970 = vmul.f32 %v961, 1.442695
    %v971 = vpow.pop %v970
    %v972 = vmul.f32 %v962, 1.442695
    %v973 = vpow.pop %v972
    %v974 = vmul.f32 %v963, 1.442695
    %v975 = vpow.pop %v974
    %v976 = vadd.f32 %v965, 1.0
    %v977 = vadd.f32 %v967, 1.0
    %v978 = vadd.f32 %v969, 1.0
    %v979 = vadd.f32 %v971, 1.0
    %v980 = vadd.f32 %v973, 1.0
    %v981 = vadd.f32 %v975, 1.0
    %v982 = vrcp.pop %v976
    %v983 = vmul.f32 %v976, %v982
    %v984 = vsub.f32 1.0, %v983
    %v985 = vmul.f32 %v982, %v984
    %v986 = vadd.f32 %v982, %v985
    %vm987 = vweird.f32 %v976
    %vm988 = vweird.f32 %v982
    %vm989 = vmor %vm987, %vm988
    %v990 = vsel %vm989, %v982, %v986
    %v991 = vand.u32 2147483647, %v976
    %vm992 = vcmp.eq.f32.partialorder %v991, 8.507059e+37
    %v993 = vand.u32 %v976, 2147483648
    %v994 = vor.u32 1.1754944e-38, %v993
    %v995 = vsel %vm992, %v994, %v990
    %v996 = vmul.f32 1.0, %v995
    %v997 = vrcp.pop %v977
    %v998 = vmul.f32 %v977, %v997
    %v999 = vsub.f32 1.0, %v998
    %v1000 = vmul.f32 %v997, %v999
    %v1001 = vadd.f32 %v997, %v1000
    %vm1002 = vweird.f32 %v977
    %vm1003 = vweird.f32 %v997
    %vm1004 = vmor %vm1002, %vm1003
    %v1005 = vsel %vm1004, %v997, %v1001
    %v1006 = vand.u32 2147483647, %v977
    %vm1007 = vcmp.eq.f32.partialorder %v1006, 8.507059e+37
    %v1008 = vand.u32 %v977, 2147483648
    %v1009 = vor.u32 1.1754944e-38, %v1008
    %v1010 = vsel %vm1007, %v1009, %v1005
    %v1011 = vmul.f32 1.0, %v1010
    %v1012 = vrcp.pop %v978
    %v1013 = vmul.f32 %v978, %v1012
    %v1014 = vsub.f32 1.0, %v1013
    %v1015 = vmul.f32 %v1012, %v1014
    %v1016 = vadd.f32 %v1012, %v1015
    %vm1017 = vweird.f32 %v978
    %vm1018 = vweird.f32 %v1012
    %vm1019 = vmor %vm1017, %vm1018
    %v1020 = vsel %vm1019, %v1012, %v1016
    %v1021 = vand.u32 2147483647, %v978
    %vm1022 = vcmp.eq.f32.partialorder %v1021, 8.507059e+37
    %v1023 = vand.u32 %v978, 2147483648
    %v1024 = vor.u32 1.1754944e-38, %v1023
    %v1025 = vsel %vm1022, %v1024, %v1020
    %v1026 = vmul.f32 1.0, %v1025
    %v1027 = vrcp.pop %v979
    %v1028 = vmul.f32 %v979, %v1027
    %v1029 = vsub.f32 1.0, %v1028
    %v1030 = vmul.f32 %v1027, %v1029
    %v1031 = vadd.f32 %v1027, %v1030
    %vm1032 = vweird.f32 %v979
    %vm1033 = vweird.f32 %v1027
    %vm1034 = vmor %vm1032, %vm1033
    %v1035 = vsel %vm1034, %v1027, %v1031
    %v1036 = vand.u32 2147483647, %v979
    %vm1037 = vcmp.eq.f32.partialorder %v1036, 8.507059e+37
    %v1038 = vand.u32 %v979, 2147483648
    %v1039 = vor.u32 1.1754944e-38, %v1038
    %v1040 = vsel %vm1037, %v1039, %v1035
    %v1041 = vmul.f32 1.0, %v1040
    %v1042 = vrcp.pop %v980
    %v1043 = vmul.f32 %v980, %v1042
    %v1044 = vsub.f32 1.0, %v1043
    %v1045 = vmul.f32 %v1042, %v1044
    %v1046 = vadd.f32 %v1042, %v1045
    %vm1047 = vweird.f32 %v980
    %vm1048 = vweird.f32 %v1042
    %vm1049 = vmor %vm1047, %vm1048
    %v1050 = vsel %vm1049, %v1042, %v1046
    %v1051 = vand.u32 2147483647, %v980
    %vm1052 = vcmp.eq.f32.partialorder %v1051, 8.507059e+37
    %v1053 = vand.u32 %v980, 2147483648
    %v1054 = vor.u32 1.1754944e-38, %v1053
    %v1055 = vsel %vm1052, %v1054, %v1050
    %v1056 = vmul.f32 1.0, %v1055
    %v1057 = vrcp.pop %v981
    %v1058 = vmul.f32 %v981, %v1057
    %v1059 = vsub.f32 1.0, %v1058
    %v1060 = vmul.f32 %v1057, %v1059
    %v1061 = vadd.f32 %v1057, %v1060
    %vm1062 = vweird.f32 %v981
    %vm1063 = vweird.f32 %v1057
    %vm1064 = vmor %vm1062, %vm1063
    %v1065 = vsel %vm1064, %v1057, %v1061
    %v1066 = vand.u32 2147483647, %v981
    %vm1067 = vcmp.eq.f32.partialorder %v1066, 8.507059e+37
    %v1068 = vand.u32 %v981, 2147483648
    %v1069 = vor.u32 1.1754944e-38, %v1068
    %v1070 = vsel %vm1067, %v1069, %v1065
    %v1071 = vmul.f32 1.0, %v1070
    %v1072 = vtanh.pop %v956
    %v1073 = vtanh.pop %v957
    %v1074 = vmul.f32 %v1026, 0.0
    %v1075 = vmul.f32 %v1041, 0.0
    %v1076 = vmul.f32 %v996, %v1072
    %v1077 = vmul.f32 %v1011, %v1073
    %v1078 = vadd.f32 %v1074, %v1076
    %v1079 = vadd.f32 %v1075, %v1077
    %v1080 = vtanh.pop %v1078
    %v1081 = vtanh.pop %v1079
    %v1082 = vmul.f32 %v1056, %v1080
    %v1083 = vmul.f32 %v1071, %v1081
    %v1084 = vpack.c.bf16 %v1082, %v1082
    %v1085 = vpack.c.bf16 %v1083, %v1083
    %v1087 = vsel %vm738, %v1085, 0
    %1089 = vmatpush.bf16.msra.mxu0 %v634
    %1090 = vmatpush.bf16.msra.mxu0 %v626
    %1091 = vmatpush.bf16.msra.mxu0 %v618
    %1092 = vmatpush.bf16.msra.mxu0 %v610
    %1093 = vmatpush.bf16.msra.mxu0 %v602
    %1094 = vmatpush.bf16.msra.mxu0 %v594
    %1095 = vmatpush.bf16.msra.mxu0 %v586
    %1096 = vmatpush.bf16.msra.mxu0 %v578
    %1097 = vmatmul.bf16.gmra.mxu0 %v1084
    %v1098 = vpop.f32.mrf.mxu0
    %v1099 = vadd.f32 0.0, %v1098
    %v1100 = vpop.f32.mrf.mxu0
    %1101 = vdwg.mxu0
    %1102 = vmatpush.bf16.msra.mxu0 0
    %1103 = vmatpush.bf16.msra.mxu0 0
    %1104 = vmatpush.bf16.msra.mxu0 0
    %1105 = vmatpush.bf16.msra.mxu0 0
    %1106 = vmatpush.bf16.msra.mxu0 0
    %1107 = vmatpush.bf16.msra.mxu0 0
    %1108 = vmatpush.bf16.msra.mxu0 %v650
    %1109 = vmatpush.bf16.msra.mxu0 %v642
    %1110 = vmatmul.bf16.gmra.mxu0 %v1087
    %v1111 = vpop.f32.mrf.mxu0
    %v1112 = vadd.f32 %v1099, %v1111
    %v1113 = vpop.f32.mrf.mxu0
    %1114 = vdwg.mxu0
    %1115 = vmatpush.bf16.msra.mxu0 %v635
    %1116 = vmatpush.bf16.msra.mxu0 %v627
    %1117 = vmatpush.bf16.msra.mxu0 %v619
    %1118 = vmatpush.bf16.msra.mxu0 %v611
    %1119 = vmatpush.bf16.msra.mxu0 %v603
    %1120 = vmatpush.bf16.msra.mxu0 %v595
    %1121 = vmatpush.bf16.msra.mxu0 %v587
    %1122 = vmatpush.bf16.msra.mxu0 %v579
    %1123 = vmatmul.bf16.gmra.mxu0 %v1084
    %v1124 = vpop.f32.mrf.mxu0
    %v1125 = vadd.f32 0.0, %v1124
    %v1126 = vpop.f32.mrf.mxu0
    %1127 = vdwg.mxu0
    %1128 = vmatpush.bf16.msra.mxu0 0
    %1129 = vmatpush.bf16.msra.mxu0 0
    %1130 = vmatpush.bf16.msra.mxu0 0
    %1131 = vmatpush.bf16.msra.mxu0 0
    %1132 = vmatpush.bf16.msra.mxu0 0
    %1133 = vmatpush.bf16.msra.mxu0 0
    %1134 = vmatpush.bf16.msra.mxu0 %v651
    %1135 = vmatpush.bf16.msra.mxu0 %v643
    %1136 = vmatmul.bf16.gmra.mxu0 %v1087
    %v1137 = vpop.f32.mrf.mxu0
    %v1138 = vadd.f32 %v1125, %v1137
    %v1139 = vpop.f32.mrf.mxu0
    %1140 = vdwg.mxu0
    %1141 = vmatpush.bf16.msra.mxu0 %v636
    %1142 = vmatpush.bf16.msra.mxu0 %v628
    %1143 = vmatpush.bf16.msra.mxu0 %v620
    %1144 = vmatpush.bf16.msra.mxu0 %v612
    %1145 = vmatpush.bf16.msra.mxu0 %v604
    %1146 = vmatpush.bf16.msra.mxu0 %v596
    %1147 = vmatpush.bf16.msra.mxu0 %v588
    %1148 = vmatpush.bf16.msra.mxu0 %v580
    %1149 = vmatmul.bf16.gmra.mxu0 %v1084
    %v1150 = vpop.f32.mrf.mxu0
    %v1151 = vadd.f32 0.0, %v1150
    %v1152 = vpop.f32.mrf.mxu0
    %1153 = vdwg.mxu0
    %1154 = vmatpush.bf16.msra.mxu0 0
    %1155 = vmatpush.bf16.msra.mxu0 0
    %1156 = vmatpush.bf16.msra.mxu0 0
    %1157 = vmatpush.bf16.msra.mxu0 0
    %1158 = vmatpush.bf16.msra.mxu0 0
    %1159 = vmatpush.bf16.msra.mxu0 0
    %1160 = vmatpush.bf16.msra.mxu0 %v652
    %1161 = vmatpush.bf16.msra.mxu0 %v644
    %1162 = vmatmul.bf16.gmra.mxu0 %v1087
    %v1163 = vpop.f32.mrf.mxu0
    %v1164 = vadd.f32 %v1151, %v1163
    %v1165 = vpop.f32.mrf.mxu0
    %1166 = vdwg.mxu0
    %1167 = vmatpush.bf16.msra.mxu0 %v637
    %1168 = vmatpush.bf16.msra.mxu0 %v629
    %1169 = vmatpush.bf16.msra.mxu0 %v621
    %1170 = vmatpush.bf16.msra.mxu0 %v613
    %1171 = vmatpush.bf16.msra.mxu0 %v605
    %1172 = vmatpush.bf16.msra.mxu0 %v597
    %1173 = vmatpush.bf16.msra.mxu0 %v589
    %1174 = vmatpush.bf16.msra.mxu0 %v581
    %1175 = vmatmul.bf16.gmra.mxu0 %v1084
    %v1176 = vpop.f32.mrf.mxu0
    %v1177 = vadd.f32 0.0, %v1176
    %v1178 = vpop.f32.mrf.mxu0
    %1179 = vdwg.mxu0
    %1180 = vmatpush.bf16.msra.mxu0 0
    %1181 = vmatpush.bf16.msra.mxu0 0
    %1182 = vmatpush.bf16.msra.mxu0 0
    %1183 = vmatpush.bf16.msra.mxu0 0
    %1184 = vmatpush.bf16.msra.mxu0 0
    %1185 = vmatpush.bf16.msra.mxu0 0
    %1186 = vmatpush.bf16.msra.mxu0 %v653
    %1187 = vmatpush.bf16.msra.mxu0 %v645
    %1188 = vmatmul.bf16.gmra.mxu0 %v1087
    %v1189 = vpop.f32.mrf.mxu0
    %v1190 = vadd.f32 %v1177, %v1189
    %v1191 = vpop.f32.mrf.mxu0
    %1192 = vdwg.mxu0
    %1193 = vmatpush.bf16.msra.mxu0 %v638
    %1194 = vmatpush.bf16.msra.mxu0 %v630
    %1195 = vmatpush.bf16.msra.mxu0 %v622
    %1196 = vmatpush.bf16.msra.mxu0 %v614
    %1197 = vmatpush.bf16.msra.mxu0 %v606
    %1198 = vmatpush.bf16.msra.mxu0 %v598
    %1199 = vmatpush.bf16.msra.mxu0 %v590
    %1200 = vmatpush.bf16.msra.mxu0 %v582
    %1201 = vmatmul.bf16.gmra.mxu0 %v1084
    %v1202 = vpop.f32.mrf.mxu0
    %v1203 = vadd.f32 0.0, %v1202
    %v1204 = vpop.f32.mrf.mxu0
    %1205 = vdwg.mxu0
    %1206 = vmatpush.bf16.msra.mxu0 0
    %1207 = vmatpush.bf16.msra.mxu0 0
    %1208 = vmatpush.bf16.msra.mxu0 0
    %1209 = vmatpush.bf16.msra.mxu0 0
    %1210 = vmatpush.bf16.msra.mxu0 0
    %1211 = vmatpush.bf16.msra.mxu0 0
    %1212 = vmatpush.bf16.msra.mxu0 %v654
    %1213 = vmatpush.bf16.msra.mxu0 %v646
    %1214 = vmatmul.bf16.gmra.mxu0 %v1087
    %v1215 = vpop.f32.mrf.mxu0
    %v1216 = vadd.f32 %v1203, %v1215
    %v1217 = vpop.f32.mrf.mxu0
    %1218 = vdwg.mxu0
    %1219 = vmatpush.bf16.msra.mxu0 %v639
    %1220 = vmatpush.bf16.msra.mxu0 %v631
    %1221 = vmatpush.bf16.msra.mxu0 %v623
    %1222 = vmatpush.bf16.msra.mxu0 %v615
    %1223 = vmatpush.bf16.msra.mxu0 %v607
    %1224 = vmatpush.bf16.msra.mxu0 %v599
    %1225 = vmatpush.bf16.msra.mxu0 %v591
    %1226 = vmatpush.bf16.msra.mxu0 %v583
    %1227 = vmatmul.bf16.gmra.mxu0 %v1084
    %v1228 = vpop.f32.mrf.mxu0
    %v1229 = vadd.f32 0.0, %v1228
    %v1230 = vpop.f32.mrf.mxu0
    %1231 = vdwg.mxu0
    %1232 = vmatpush.bf16.msra.mxu0 0
    %1233 = vmatpush.bf16.msra.mxu0 0
    %1234 = vmatpush.bf16.msra.mxu0 0
    %1235 = vmatpush.bf16.msra.mxu0 0
    %1236 = vmatpush.bf16.msra.mxu0 0
    %1237 = vmatpush.bf16.msra.mxu0 0
    %1238 = vmatpush.bf16.msra.mxu0 %v655
    %1239 = vmatpush.bf16.msra.mxu0 %v647
    %1240 = vmatmul.bf16.gmra.mxu0 %v1087
    %v1241 = vpop.f32.mrf.mxu0
    %v1242 = vadd.f32 %v1229, %v1241
    %v1243 = vpop.f32.mrf.mxu0
    %1244 = vdwg.mxu0
    %1245 = vmatpush.bf16.msra.mxu0 %v640
    %1246 = vmatpush.bf16.msra.mxu0 %v632
    %1247 = vmatpush.bf16.msra.mxu0 %v624
    %1248 = vmatpush.bf16.msra.mxu0 %v616
    %1249 = vmatpush.bf16.msra.mxu0 %v608
    %1250 = vmatpush.bf16.msra.mxu0 %v600
    %1251 = vmatpush.bf16.msra.mxu0 %v592
    %1252 = vmatpush.bf16.msra.mxu0 %v584
    %1253 = vmatmul.bf16.gmra.mxu0 %v1084
    %v1254 = vpop.f32.mrf.mxu0
    %v1255 = vadd.f32 0.0, %v1254
    %v1256 = vpop.f32.mrf.mxu0
    %1257 = vdwg.mxu0
    %1258 = vmatpush.bf16.msra.mxu0 0
    %1259 = vmatpush.bf16.msra.mxu0 0
    %1260 = vmatpush.bf16.msra.mxu0 0
    %1261 = vmatpush.bf16.msra.mxu0 0
    %1262 = vmatpush.bf16.msra.mxu0 0
    %1263 = vmatpush.bf16.msra.mxu0 0
    %1264 = vmatpush.bf16.msra.mxu0 %v656
    %1265 = vmatpush.bf16.msra.mxu0 %v648
    %1266 = vmatmul.bf16.gmra.mxu0 %v1087
    %v1267 = vpop.f32.mrf.mxu0
    %v1268 = vadd.f32 %v1255, %v1267
    %v1269 = vpop.f32.mrf.mxu0
    %1270 = vdwg.mxu0
    %1271 = vmatpush.bf16.msra.mxu0 %v641
    %1272 = vmatpush.bf16.msra.mxu0 %v633
    %1273 = vmatpush.bf16.msra.mxu0 %v625
    %1274 = vmatpush.bf16.msra.mxu0 %v617
    %1275 = vmatpush.bf16.msra.mxu0 %v609
    %1276 = vmatpush.bf16.msra.mxu0 %v601
    %1277 = vmatpush.bf16.msra.mxu0 %v593
    %1278 = vmatpush.bf16.msra.mxu0 %v585
    %1279 = vmatmul.bf16.gmra.mxu0 %v1084
    %v1280 = vpop.f32.mrf.mxu0
    %v1281 = vadd.f32 0.0, %v1280
    %v1282 = vpop.f32.mrf.mxu0
    %1283 = vdwg.mxu0
    %1284 = vmatpush.bf16.msra.mxu0 0
    %1285 = vmatpush.bf16.msra.mxu0 0
    %1286 = vmatpush.bf16.msra.mxu0 0
    %1287 = vmatpush.bf16.msra.mxu0 0
    %1288 = vmatpush.bf16.msra.mxu0 0
    %1289 = vmatpush.bf16.msra.mxu0 0
    %1290 = vmatpush.bf16.msra.mxu0 %v657
    %1291 = vmatpush.bf16.msra.mxu0 %v649
    %1292 = vmatmul.bf16.gmra.mxu0 %v1087
    %v1293 = vpop.f32.mrf.mxu0
    %v1294 = vadd.f32 %v1281, %v1293
    %v1295 = vpop.f32.mrf.mxu0
    %1296 = vdwg.mxu0
    %v1305 = vrot.slane %v1112, 6
    %v1306 = vrot.slane %v1138, 6
    %v1307 = vrot.slane %v1164, 6
    %v1308 = vrot.slane %v1190, 6
    %v1309 = vrot.slane %v1216, 6
    %v1310 = vrot.slane %v1242, 6
    %v1311 = vrot.slane %v1268, 6
    %v1312 = vrot.slane %v1294, 6
    %v1321 = vadd.f32 %v156, %v1305
    %v1322 = vadd.f32 %v170, %v1306
    %v1323 = vadd.f32 %v184, %v1307
    %v1324 = vadd.f32 %v198, %v1308
    %v1325 = vadd.f32 %v212, %v1309
    %v1326 = vadd.f32 %v226, %v1310
    %v1327 = vadd.f32 %v240, %v1311
    %v1328 = vadd.f32 %v254, %v1312
    %v1329 = vxor.u32 %v1321, 2147483648
    %v1330 = vxor.u32 %v1322, 2147483648
    %v1331 = vxor.u32 %v1323, 2147483648
    %v1332 = vxor.u32 %v1324, 2147483648
    %v1333 = vxor.u32 %v1325, 2147483648
    %v1334 = vxor.u32 %v1326, 2147483648
    %v1335 = vmul.f32 %v1329, 1.442695
    %v1336 = vpow.pop %v1335
    %v1337 = vmul.f32 %v1330, 1.442695
    %v1338 = vpow.pop %v1337
    %v1339 = vmul.f32 %v1331, 1.442695
    %v1340 = vpow.pop %v1339
    %v1341 = vmul.f32 %v1332, 1.442695
    %v1342 = vpow.pop %v1341
    %v1343 = vmul.f32 %v1333, 1.442695
    %v1344 = vpow.pop %v1343
    %v1345 = vmul.f32 %v1334, 1.442695
    %v1346 = vpow.pop %v1345
    %v1347 = vadd.f32 %v1336, 1.0
    %v1348 = vadd.f32 %v1338, 1.0
    %v1349 = vadd.f32 %v1340, 1.0
    %v1350 = vadd.f32 %v1342, 1.0
    %v1351 = vadd.f32 %v1344, 1.0
    %v1352 = vadd.f32 %v1346, 1.0
    %v1353 = vrcp.pop %v1347
    %v1354 = vmul.f32 %v1347, %v1353
    %v1355 = vsub.f32 1.0, %v1354
    %v1356 = vmul.f32 %v1353, %v1355
    %v1357 = vadd.f32 %v1353, %v1356
    %vm1358 = vweird.f32 %v1347
    %vm1359 = vweird.f32 %v1353
    %vm1360 = vmor %vm1358, %vm1359
    %v1361 = vsel %vm1360, %v1353, %v1357
    %v1362 = vand.u32 2147483647, %v1347
    %vm1363 = vcmp.eq.f32.partialorder %v1362, 8.507059e+37
    %v1364 = vand.u32 %v1347, 2147483648
    %v1365 = vor.u32 1.1754944e-38, %v1364
    %v1366 = vsel %vm1363, %v1365, %v1361
    %v1367 = vmul.f32 1.0, %v1366
    %v1368 = vrcp.pop %v1348
    %v1369 = vmul.f32 %v1348, %v1368
    %v1370 = vsub.f32 1.0, %v1369
    %v1371 = vmul.f32 %v1368, %v1370
    %v1372 = vadd.f32 %v1368, %v1371
    %vm1373 = vweird.f32 %v1348
    %vm1374 = vweird.f32 %v1368
    %vm1375 = vmor %vm1373, %vm1374
    %v1376 = vsel %vm1375, %v1368, %v1372
    %v1377 = vand.u32 2147483647, %v1348
    %vm1378 = vcmp.eq.f32.partialorder %v1377, 8.507059e+37
    %v1379 = vand.u32 %v1348, 2147483648
    %v1380 = vor.u32 1.1754944e-38, %v1379
    %v1381 = vsel %vm1378, %v1380, %v1376
    %v1382 = vmul.f32 1.0, %v1381
    %v1383 = vrcp.pop %v1349
    %v1384 = vmul.f32 %v1349, %v1383
    %v1385 = vsub.f32 1.0, %v1384
    %v1386 = vmul.f32 %v1383, %v1385
    %v1387 = vadd.f32 %v1383, %v1386
    %vm1388 = vweird.f32 %v1349
    %vm1389 = vweird.f32 %v1383
    %vm1390 = vmor %vm1388, %vm1389
    %v1391 = vsel %vm1390, %v1383, %v1387
    %v1392 = vand.u32 2147483647, %v1349
    %vm1393 = vcmp.eq.f32.partialorder %v1392, 8.507059e+37
    %v1394 = vand.u32 %v1349, 2147483648
    %v1395 = vor.u32 1.1754944e-38, %v1394
    %v1396 = vsel %vm1393, %v1395, %v1391
    %v1397 = vmul.f32 1.0, %v1396
    %v1398 = vrcp.pop %v1350
    %v1399 = vmul.f32 %v1350, %v1398
    %v1400 = vsub.f32 1.0, %v1399
    %v1401 = vmul.f32 %v1398, %v1400
    %v1402 = vadd.f32 %v1398, %v1401
    %vm1403 = vweird.f32 %v1350
    %vm1404 = vweird.f32 %v1398
    %vm1405 = vmor %vm1403, %vm1404
    %v1406 = vsel %vm1405, %v1398, %v1402
    %v1407 = vand.u32 2147483647, %v1350
    %vm1408 = vcmp.eq.f32.partialorder %v1407, 8.507059e+37
    %v1409 = vand.u32 %v1350, 2147483648
    %v1410 = vor.u32 1.1754944e-38, %v1409
    %v1411 = vsel %vm1408, %v1410, %v1406
    %v1412 = vmul.f32 1.0, %v1411
    %v1413 = vrcp.pop %v1351
    %v1414 = vmul.f32 %v1351, %v1413
    %v1415 = vsub.f32 1.0, %v1414
    %v1416 = vmul.f32 %v1413, %v1415
    %v1417 = vadd.f32 %v1413, %v1416
    %vm1418 = vweird.f32 %v1351
    %vm1419 = vweird.f32 %v1413
    %vm1420 = vmor %vm1418, %vm1419
    %v1421 = vsel %vm1420, %v1413, %v1417
    %v1422 = vand.u32 2147483647, %v1351
    %vm1423 = vcmp.eq.f32.partialorder %v1422, 8.507059e+37
    %v1424 = vand.u32 %v1351, 2147483648
    %v1425 = vor.u32 1.1754944e-38, %v1424
    %v1426 = vsel %vm1423, %v1425, %v1421
    %v1427 = vmul.f32 1.0, %v1426
    %v1428 = vrcp.pop %v1352
    %v1429 = vmul.f32 %v1352, %v1428
    %v1430 = vsub.f32 1.0, %v1429
    %v1431 = vmul.f32 %v1428, %v1430
    %v1432 = vadd.f32 %v1428, %v1431
    %vm1433 = vweird.f32 %v1352
    %vm1434 = vweird.f32 %v1428
    %vm1435 = vmor %vm1433, %vm1434
    %v1436 = vsel %vm1435, %v1428, %v1432
    %v1437 = vand.u32 2147483647, %v1352
    %vm1438 = vcmp.eq.f32.partialorder %v1437, 8.507059e+37
    %v1439 = vand.u32 %v1352, 2147483648
    %v1440 = vor.u32 1.1754944e-38, %v1439
    %v1441 = vsel %vm1438, %v1440, %v1436
    %v1442 = vmul.f32 1.0, %v1441
    %v1443 = vtanh.pop %v1327
    %v1444 = vtanh.pop %v1328
    %v1447 = vrot.slane %v1078, 6
    %v1448 = vrot.slane %v1079, 6
    %v1451 = vmul.f32 %v1397, %v1447
    %v1452 = vmul.f32 %v1412, %v1448
    %v1453 = vmul.f32 %v1367, %v1443
    %v1454 = vmul.f32 %v1382, %v1444
    %v1455 = vadd.f32 %v1451, %v1453
    %v1456 = vadd.f32 %v1452, %v1454
    %v1457 = vtanh.pop %v1455
    %v1458 = vtanh.pop %v1456
    %v1459 = vmul.f32 %v1427, %v1457
    %v1460 = vmul.f32 %v1442, %v1458
    %v1461 = vpack.c.bf16 %v1459, %v1459
    %v1462 = vpack.c.bf16 %v1460, %v1460
    %v1465 = vrot.slane %v1461, 1
    %v1466 = vrot.slane %v1462, 1
    %v1469 = vsel %vm738, %v1466, 0
    %1471 = vmatpush.bf16.msra.mxu0 %v634
    %1472 = vmatpush.bf16.msra.mxu0 %v626
    %1473 = vmatpush.bf16.msra.mxu0 %v618
    %1474 = vmatpush.bf16.msra.mxu0 %v610
    %1475 = vmatpush.bf16.msra.mxu0 %v602
    %1476 = vmatpush.bf16.msra.mxu0 %v594
    %1477 = vmatpush.bf16.msra.mxu0 %v586
    %1478 = vmatpush.bf16.msra.mxu0 %v578
    %1479 = vmatmul.bf16.gmra.mxu0 %v1465
    %v1480 = vpop.f32.mrf.mxu0
    %v1481 = vadd.f32 0.0, %v1480
    %v1482 = vpop.f32.mrf.mxu0
    %1483 = vdwg.mxu0
    %1484 = vmatpush.bf16.msra.mxu0 0
    %1485 = vmatpush.bf16.msra.mxu0 0
    %1486 = vmatpush.bf16.msra.mxu0 0
    %1487 = vmatpush.bf16.msra.mxu0 0
    %1488 = vmatpush.bf16.msra.mxu0 0
    %1489 = vmatpush.bf16.msra.mxu0 0
    %1490 = vmatpush.bf16.msra.mxu0 %v650
    %1491 = vmatpush.bf16.msra.mxu0 %v642
    %1492 = vmatmul.bf16.gmra.mxu0 %v1469
    %v1493 = vpop.f32.mrf.mxu0
    %v1494 = vadd.f32 %v1481, %v1493
    %v1495 = vpop.f32.mrf.mxu0
    %1496 = vdwg.mxu0
    %1497 = vmatpush.bf16.msra.mxu0 %v635
    %1498 = vmatpush.bf16.msra.mxu0 %v627
    %1499 = vmatpush.bf16.msra.mxu0 %v619
    %1500 = vmatpush.bf16.msra.mxu0 %v611
    %1501 = vmatpush.bf16.msra.mxu0 %v603
    %1502 = vmatpush.bf16.msra.mxu0 %v595
    %1503 = vmatpush.bf16.msra.mxu0 %v587
    %1504 = vmatpush.bf16.msra.mxu0 %v579
    %1505 = vmatmul.bf16.gmra.mxu0 %v1465
    %v1506 = vpop.f32.mrf.mxu0
    %v1507 = vadd.f32 0.0, %v1506
    %v1508 = vpop.f32.mrf.mxu0
    %1509 = vdwg.mxu0
    %1510 = vmatpush.bf16.msra.mxu0 0
    %1511 = vmatpush.bf16.msra.mxu0 0
    %1512 = vmatpush.bf16.msra.mxu0 0
    %1513 = vmatpush.bf16.msra.mxu0 0
    %1514 = vmatpush.bf16.msra.mxu0 0
    %1515 = vmatpush.bf16.msra.mxu0 0
    %1516 = vmatpush.bf16.msra.mxu0 %v651
    %1517 = vmatpush.bf16.msra.mxu0 %v643
    %1518 = vmatmul.bf16.gmra.mxu0 %v1469
    %v1519 = vpop.f32.mrf.mxu0
    %v1520 = vadd.f32 %v1507, %v1519
    %v1521 = vpop.f32.mrf.mxu0
    %1522 = vdwg.mxu0
    %1523 = vmatpush.bf16.msra.mxu0 %v636
    %1524 = vmatpush.bf16.msra.mxu0 %v628
    %1525 = vmatpush.bf16.msra.mxu0 %v620
    %1526 = vmatpush.bf16.msra.mxu0 %v612
    %1527 = vmatpush.bf16.msra.mxu0 %v604
    %1528 = vmatpush.bf16.msra.mxu0 %v596
    %1529 = vmatpush.bf16.msra.mxu0 %v588
    %1530 = vmatpush.bf16.msra.mxu0 %v580
    %1531 = vmatmul.bf16.gmra.mxu0 %v1465
    %v1532 = vpop.f32.mrf.mxu0
    %v1533 = vadd.f32 0.0, %v1532
    %v1534 = vpop.f32.mrf.mxu0
    %1535 = vdwg.mxu0
    %1536 = vmatpush.bf16.msra.mxu0 0
    %1537 = vmatpush.bf16.msra.mxu0 0
    %1538 = vmatpush.bf16.msra.mxu0 0
    %1539 = vmatpush.bf16.msra.mxu0 0
    %1540 = vmatpush.bf16.msra.mxu0 0
    %1541 = vmatpush.bf16.msra.mxu0 0
    %1542 = vmatpush.bf16.msra.mxu0 %v652
    %1543 = vmatpush.bf16.msra.mxu0 %v644
    %1544 = vmatmul.bf16.gmra.mxu0 %v1469
    %v1545 = vpop.f32.mrf.mxu0
    %v1546 = vadd.f32 %v1533, %v1545
    %v1547 = vpop.f32.mrf.mxu0
    %1548 = vdwg.mxu0
    %1549 = vmatpush.bf16.msra.mxu0 %v637
    %1550 = vmatpush.bf16.msra.mxu0 %v629
    %1551 = vmatpush.bf16.msra.mxu0 %v621
    %1552 = vmatpush.bf16.msra.mxu0 %v613
    %1553 = vmatpush.bf16.msra.mxu0 %v605
    %1554 = vmatpush.bf16.msra.mxu0 %v597
    %1555 = vmatpush.bf16.msra.mxu0 %v589
    %1556 = vmatpush.bf16.msra.mxu0 %v581
    %1557 = vmatmul.bf16.gmra.mxu0 %v1465
    %v1558 = vpop.f32.mrf.mxu0
    %v1559 = vadd.f32 0.0, %v1558
    %v1560 = vpop.f32.mrf.mxu0
    %1561 = vdwg.mxu0
    %1562 = vmatpush.bf16.msra.mxu0 0
    %1563 = vmatpush.bf16.msra.mxu0 0
    %1564 = vmatpush.bf16.msra.mxu0 0
    %1565 = vmatpush.bf16.msra.mxu0 0
    %1566 = vmatpush.bf16.msra.mxu0 0
    %1567 = vmatpush.bf16.msra.mxu0 0
    %1568 = vmatpush.bf16.msra.mxu0 %v653
    %1569 = vmatpush.bf16.msra.mxu0 %v645
    %1570 = vmatmul.bf16.gmra.mxu0 %v1469
    %v1571 = vpop.f32.mrf.mxu0
    %v1572 = vadd.f32 %v1559, %v1571
    %v1573 = vpop.f32.mrf.mxu0
    %1574 = vdwg.mxu0
    %1575 = vmatpush.bf16.msra.mxu0 %v638
    %1576 = vmatpush.bf16.msra.mxu0 %v630
    %1577 = vmatpush.bf16.msra.mxu0 %v622
    %1578 = vmatpush.bf16.msra.mxu0 %v614
    %1579 = vmatpush.bf16.msra.mxu0 %v606
    %1580 = vmatpush.bf16.msra.mxu0 %v598
    %1581 = vmatpush.bf16.msra.mxu0 %v590
    %1582 = vmatpush.bf16.msra.mxu0 %v582
    %1583 = vmatmul.bf16.gmra.mxu0 %v1465
    %v1584 = vpop.f32.mrf.mxu0
    %v1585 = vadd.f32 0.0, %v1584
    %v1586 = vpop.f32.mrf.mxu0
    %1587 = vdwg.mxu0
    %1588 = vmatpush.bf16.msra.mxu0 0
    %1589 = vmatpush.bf16.msra.mxu0 0
    %1590 = vmatpush.bf16.msra.mxu0 0
    %1591 = vmatpush.bf16.msra.mxu0 0
    %1592 = vmatpush.bf16.msra.mxu0 0
    %1593 = vmatpush.bf16.msra.mxu0 0
    %1594 = vmatpush.bf16.msra.mxu0 %v654
    %1595 = vmatpush.bf16.msra.mxu0 %v646
    %1596 = vmatmul.bf16.gmra.mxu0 %v1469
    %v1597 = vpop.f32.mrf.mxu0
    %v1598 = vadd.f32 %v1585, %v1597
    %v1599 = vpop.f32.mrf.mxu0
    %1600 = vdwg.mxu0
    %1601 = vmatpush.bf16.msra.mxu0 %v639
    %1602 = vmatpush.bf16.msra.mxu0 %v631
    %1603 = vmatpush.bf16.msra.mxu0 %v623
    %1604 = vmatpush.bf16.msra.mxu0 %v615
    %1605 = vmatpush.bf16.msra.mxu0 %v607
    %1606 = vmatpush.bf16.msra.mxu0 %v599
    %1607 = vmatpush.bf16.msra.mxu0 %v591
    %1608 = vmatpush.bf16.msra.mxu0 %v583
    %1609 = vmatmul.bf16.gmra.mxu0 %v1465
    %v1610 = vpop.f32.mrf.mxu0
    %v1611 = vadd.f32 0.0, %v1610
    %v1612 = vpop.f32.mrf.mxu0
    %1613 = vdwg.mxu0
    %1614 = vmatpush.bf16.msra.mxu0 0
    %1615 = vmatpush.bf16.msra.mxu0 0
    %1616 = vmatpush.bf16.msra.mxu0 0
    %1617 = vmatpush.bf16.msra.mxu0 0
    %1618 = vmatpush.bf16.msra.mxu0 0
    %1619 = vmatpush.bf16.msra.mxu0 0
    %1620 = vmatpush.bf16.msra.mxu0 %v655
    %1621 = vmatpush.bf16.msra.mxu0 %v647
    %1622 = vmatmul.bf16.gmra.mxu0 %v1469
    %v1623 = vpop.f32.mrf.mxu0
    %v1624 = vadd.f32 %v1611, %v1623
    %v1625 = vpop.f32.mrf.mxu0
    %1626 = vdwg.mxu0
    %1627 = vmatpush.bf16.msra.mxu0 %v640
    %1628 = vmatpush.bf16.msra.mxu0 %v632
    %1629 = vmatpush.bf16.msra.mxu0 %v624
    %1630 = vmatpush.bf16.msra.mxu0 %v616
    %1631 = vmatpush.bf16.msra.mxu0 %v608
    %1632 = vmatpush.bf16.msra.mxu0 %v600
    %1633 = vmatpush.bf16.msra.mxu0 %v592
    %1634 = vmatpush.bf16.msra.mxu0 %v584
    %1635 = vmatmul.bf16.gmra.mxu0 %v1465
    %v1636 = vpop.f32.mrf.mxu0
    %v1637 = vadd.f32 0.0, %v1636
    %v1638 = vpop.f32.mrf.mxu0
    %1639 = vdwg.mxu0
    %1640 = vmatpush.bf16.msra.mxu0 0
    %1641 = vmatpush.bf16.msra.mxu0 0
    %1642 = vmatpush.bf16.msra.mxu0 0
    %1643 = vmatpush.bf16.msra.mxu0 0
    %1644 = vmatpush.bf16.msra.mxu0 0
    %1645 = vmatpush.bf16.msra.mxu0 0
    %1646 = vmatpush.bf16.msra.mxu0 %v656
    %1647 = vmatpush.bf16.msra.mxu0 %v648
    %1648 = vmatmul.bf16.gmra.mxu0 %v1469
    %v1649 = vpop.f32.mrf.mxu0
    %v1650 = vadd.f32 %v1637, %v1649
    %v1651 = vpop.f32.mrf.mxu0
    %1652 = vdwg.mxu0
    %1653 = vmatpush.bf16.msra.mxu0 %v641
    %1654 = vmatpush.bf16.msra.mxu0 %v633
    %1655 = vmatpush.bf16.msra.mxu0 %v625
    %1656 = vmatpush.bf16.msra.mxu0 %v617
    %1657 = vmatpush.bf16.msra.mxu0 %v609
    %1658 = vmatpush.bf16.msra.mxu0 %v601
    %1659 = vmatpush.bf16.msra.mxu0 %v593
    %1660 = vmatpush.bf16.msra.mxu0 %v585
    %1661 = vmatmul.bf16.gmra.mxu0 %v1465
    %v1662 = vpop.f32.mrf.mxu0
    %v1663 = vadd.f32 0.0, %v1662
    %v1664 = vpop.f32.mrf.mxu0
    %1665 = vdwg.mxu0
    %1666 = vmatpush.bf16.msra.mxu0 0
    %1667 = vmatpush.bf16.msra.mxu0 0
    %1668 = vmatpush.bf16.msra.mxu0 0
    %1669 = vmatpush.bf16.msra.mxu0 0
    %1670 = vmatpush.bf16.msra.mxu0 0
    %1671 = vmatpush.bf16.msra.mxu0 0
    %1672 = vmatpush.bf16.msra.mxu0 %v657
    %1673 = vmatpush.bf16.msra.mxu0 %v649
    %1674 = vmatmul.bf16.gmra.mxu0 %v1469
    %v1675 = vpop.f32.mrf.mxu0
    %v1676 = vadd.f32 %v1663, %v1675
    %v1677 = vpop.f32.mrf.mxu0
    %1678 = vdwg.mxu0
    %v1687 = vrot.slane %v1494, 4
    %v1688 = vrot.slane %v1520, 4
    %v1689 = vrot.slane %v1546, 4
    %v1690 = vrot.slane %v1572, 4
    %v1691 = vrot.slane %v1598, 4
    %v1692 = vrot.slane %v1624, 4
    %v1693 = vrot.slane %v1650, 4
    %v1694 = vrot.slane %v1676, 4
    %v1703 = vadd.f32 %v156, %v1687
    %v1704 = vadd.f32 %v170, %v1688
    %v1705 = vadd.f32 %v184, %v1689
    %v1706 = vadd.f32 %v198, %v1690
    %v1707 = vadd.f32 %v212, %v1691
    %v1708 = vadd.f32 %v226, %v1692
    %v1709 = vadd.f32 %v240, %v1693
    %v1710 = vadd.f32 %v254, %v1694
    %v1711 = vxor.u32 %v1703, 2147483648
    %v1712 = vxor.u32 %v1704, 2147483648
    %v1713 = vxor.u32 %v1705, 2147483648
    %v1714 = vxor.u32 %v1706, 2147483648
    %v1715 = vxor.u32 %v1707, 2147483648
    %v1716 = vxor.u32 %v1708, 2147483648
    %v1717 = vmul.f32 %v1711, 1.442695
    %v1718 = vpow.pop %v1717
    %v1719 = vmul.f32 %v1712, 1.442695
    %v1720 = vpow.pop %v1719
    %v1721 = vmul.f32 %v1713, 1.442695
    %v1722 = vpow.pop %v1721
    %v1723 = vmul.f32 %v1714, 1.442695
    %v1724 = vpow.pop %v1723
    %v1725 = vmul.f32 %v1715, 1.442695
    %v1726 = vpow.pop %v1725
    %v1727 = vmul.f32 %v1716, 1.442695
    %v1728 = vpow.pop %v1727
    %v1729 = vadd.f32 %v1718, 1.0
    %v1730 = vadd.f32 %v1720, 1.0
    %v1731 = vadd.f32 %v1722, 1.0
    %v1732 = vadd.f32 %v1724, 1.0
    %v1733 = vadd.f32 %v1726, 1.0
    %v1734 = vadd.f32 %v1728, 1.0
    %v1735 = vrcp.pop %v1729
    %v1736 = vmul.f32 %v1729, %v1735
    %v1737 = vsub.f32 1.0, %v1736
    %v1738 = vmul.f32 %v1735, %v1737
    %v1739 = vadd.f32 %v1735, %v1738
    %vm1740 = vweird.f32 %v1729
    %vm1741 = vweird.f32 %v1735
    %vm1742 = vmor %vm1740, %vm1741
    %v1743 = vsel %vm1742, %v1735, %v1739
    %v1744 = vand.u32 2147483647, %v1729
    %vm1745 = vcmp.eq.f32.partialorder %v1744, 8.507059e+37
    %v1746 = vand.u32 %v1729, 2147483648
    %v1747 = vor.u32 1.1754944e-38, %v1746
    %v1748 = vsel %vm1745, %v1747, %v1743
    %v1749 = vmul.f32 1.0, %v1748
    %v1750 = vrcp.pop %v1730
    %v1751 = vmul.f32 %v1730, %v1750
    %v1752 = vsub.f32 1.0, %v1751
    %v1753 = vmul.f32 %v1750, %v1752
    %v1754 = vadd.f32 %v1750, %v1753
    %vm1755 = vweird.f32 %v1730
    %vm1756 = vweird.f32 %v1750
    %vm1757 = vmor %vm1755, %vm1756
    %v1758 = vsel %vm1757, %v1750, %v1754
    %v1759 = vand.u32 2147483647, %v1730
    %vm1760 = vcmp.eq.f32.partialorder %v1759, 8.507059e+37
    %v1761 = vand.u32 %v1730, 2147483648
    %v1762 = vor.u32 1.1754944e-38, %v1761
    %v1763 = vsel %vm1760, %v1762, %v1758
    %v1764 = vmul.f32 1.0, %v1763
    %v1765 = vrcp.pop %v1731
    %v1766 = vmul.f32 %v1731, %v1765
    %v1767 = vsub.f32 1.0, %v1766
    %v1768 = vmul.f32 %v1765, %v1767
    %v1769 = vadd.f32 %v1765, %v1768
    %vm1770 = vweird.f32 %v1731
    %vm1771 = vweird.f32 %v1765
    %vm1772 = vmor %vm1770, %vm1771
    %v1773 = vsel %vm1772, %v1765, %v1769
    %v1774 = vand.u32 2147483647, %v1731
    %vm1775 = vcmp.eq.f32.partialorder %v1774, 8.507059e+37
    %v1776 = vand.u32 %v1731, 2147483648
    %v1777 = vor.u32 1.1754944e-38, %v1776
    %v1778 = vsel %vm1775, %v1777, %v1773
    %v1779 = vmul.f32 1.0, %v1778
    %v1780 = vrcp.pop %v1732
    %v1781 = vmul.f32 %v1732, %v1780
    %v1782 = vsub.f32 1.0, %v1781
    %v1783 = vmul.f32 %v1780, %v1782
    %v1784 = vadd.f32 %v1780, %v1783
    %vm1785 = vweird.f32 %v1732
    %vm1786 = vweird.f32 %v1780
    %vm1787 = vmor %vm1785, %vm1786
    %v1788 = vsel %vm1787, %v1780, %v1784
    %v1789 = vand.u32 2147483647, %v1732
    %vm1790 = vcmp.eq.f32.partialorder %v1789, 8.507059e+37
    %v1791 = vand.u32 %v1732, 2147483648
    %v1792 = vor.u32 1.1754944e-38, %v1791
    %v1793 = vsel %vm1790, %v1792, %v1788
    %v1794 = vmul.f32 1.0, %v1793
    %v1795 = vrcp.pop %v1733
    %v1796 = vmul.f32 %v1733, %v1795
    %v1797 = vsub.f32 1.0, %v1796
    %v1798 = vmul.f32 %v1795, %v1797
    %v1799 = vadd.f32 %v1795, %v1798
    %vm1800 = vweird.f32 %v1733
    %vm1801 = vweird.f32 %v1795
    %vm1802 = vmor %vm1800, %vm1801
    %v1803 = vsel %vm1802, %v1795, %v1799
    %v1804 = vand.u32 2147483647, %v1733
    %vm1805 = vcmp.eq.f32.partialorder %v1804, 8.507059e+37
    %v1806 = vand.u32 %v1733, 2147483648
    %v1807 = vor.u32 1.1754944e-38, %v1806
    %v1808 = vsel %vm1805, %v1807, %v1803
    %v1809 = vmul.f32 1.0, %v1808
    %v1810 = vrcp.pop %v1734
    %v1811 = vmul.f32 %v1734, %v1810
    %v1812 = vsub.f32 1.0, %v1811
    %v1813 = vmul.f32 %v1810, %v1812
    %v1814 = vadd.f32 %v1810, %v1813
    %vm1815 = vweird.f32 %v1734
    %vm1816 = vweird.f32 %v1810
    %vm1817 = vmor %vm1815, %vm1816
    %v1818 = vsel %vm1817, %v1810, %v1814
    %v1819 = vand.u32 2147483647, %v1734
    %vm1820 = vcmp.eq.f32.partialorder %v1819, 8.507059e+37
    %v1821 = vand.u32 %v1734, 2147483648
    %v1822 = vor.u32 1.1754944e-38, %v1821
    %v1823 = vsel %vm1820, %v1822, %v1818
    %v1824 = vmul.f32 1.0, %v1823
    %v1825 = vtanh.pop %v1709
    %v1826 = vtanh.pop %v1710
    %v1829 = vrot.slane %v1455, 6
    %v1830 = vrot.slane %v1456, 6
    %v1833 = vmul.f32 %v1779, %v1829
    %v1834 = vmul.f32 %v1794, %v1830
    %v1835 = vmul.f32 %v1749, %v1825
    %v1836 = vmul.f32 %v1764, %v1826
    %v1837 = vadd.f32 %v1833, %v1835
    %v1838 = vadd.f32 %v1834, %v1836
    %v1839 = vtanh.pop %v1837
    %v1840 = vtanh.pop %v1838
    %v1841 = vmul.f32 %v1809, %v1839
    %v1842 = vmul.f32 %v1824, %v1840
    %v1843 = vpack.c.bf16 %v1841, %v1841
    %v1844 = vpack.c.bf16 %v1842, %v1842
    %v1847 = vrot.slane %v1843, 2
    %v1848 = vrot.slane %v1844, 2
    %v1851 = vsel %vm738, %v1848, 0
    %1853 = vmatpush.bf16.msra.mxu0 %v634
    %1854 = vmatpush.bf16.msra.mxu0 %v626
    %1855 = vmatpush.bf16.msra.mxu0 %v618
    %1856 = vmatpush.bf16.msra.mxu0 %v610
    %1857 = vmatpush.bf16.msra.mxu0 %v602
    %1858 = vmatpush.bf16.msra.mxu0 %v594
    %1859 = vmatpush.bf16.msra.mxu0 %v586
    %1860 = vmatpush.bf16.msra.mxu0 %v578
    %1861 = vmatmul.bf16.gmra.mxu0 %v1847
    %v1862 = vpop.f32.mrf.mxu0
    %v1863 = vadd.f32 0.0, %v1862
    %v1864 = vpop.f32.mrf.mxu0
    %1865 = vdwg.mxu0
    %1866 = vmatpush.bf16.msra.mxu0 0
    %1867 = vmatpush.bf16.msra.mxu0 0
    %1868 = vmatpush.bf16.msra.mxu0 0
    %1869 = vmatpush.bf16.msra.mxu0 0
    %1870 = vmatpush.bf16.msra.mxu0 0
    %1871 = vmatpush.bf16.msra.mxu0 0
    %1872 = vmatpush.bf16.msra.mxu0 %v650
    %1873 = vmatpush.bf16.msra.mxu0 %v642
    %1874 = vmatmul.bf16.gmra.mxu0 %v1851
    %v1875 = vpop.f32.mrf.mxu0
    %v1876 = vadd.f32 %v1863, %v1875
    %v1877 = vpop.f32.mrf.mxu0
    %1878 = vdwg.mxu0
    %1879 = vmatpush.bf16.msra.mxu0 %v635
    %1880 = vmatpush.bf16.msra.mxu0 %v627
    %1881 = vmatpush.bf16.msra.mxu0 %v619
    %1882 = vmatpush.bf16.msra.mxu0 %v611
    %1883 = vmatpush.bf16.msra.mxu0 %v603
    %1884 = vmatpush.bf16.msra.mxu0 %v595
    %1885 = vmatpush.bf16.msra.mxu0 %v587
    %1886 = vmatpush.bf16.msra.mxu0 %v579
    %1887 = vmatmul.bf16.gmra.mxu0 %v1847
    %v1888 = vpop.f32.mrf.mxu0
    %v1889 = vadd.f32 0.0, %v1888
    %v1890 = vpop.f32.mrf.mxu0
    %1891 = vdwg.mxu0
    %1892 = vmatpush.bf16.msra.mxu0 0
    %1893 = vmatpush.bf16.msra.mxu0 0
    %1894 = vmatpush.bf16.msra.mxu0 0
    %1895 = vmatpush.bf16.msra.mxu0 0
    %1896 = vmatpush.bf16.msra.mxu0 0
    %1897 = vmatpush.bf16.msra.mxu0 0
    %1898 = vmatpush.bf16.msra.mxu0 %v651
    %1899 = vmatpush.bf16.msra.mxu0 %v643
    %1900 = vmatmul.bf16.gmra.mxu0 %v1851
    %v1901 = vpop.f32.mrf.mxu0
    %v1902 = vadd.f32 %v1889, %v1901
    %v1903 = vpop.f32.mrf.mxu0
    %1904 = vdwg.mxu0
    %1905 = vmatpush.bf16.msra.mxu0 %v636
    %1906 = vmatpush.bf16.msra.mxu0 %v628
    %1907 = vmatpush.bf16.msra.mxu0 %v620
    %1908 = vmatpush.bf16.msra.mxu0 %v612
    %1909 = vmatpush.bf16.msra.mxu0 %v604
    %1910 = vmatpush.bf16.msra.mxu0 %v596
    %1911 = vmatpush.bf16.msra.mxu0 %v588
    %1912 = vmatpush.bf16.msra.mxu0 %v580
    %1913 = vmatmul.bf16.gmra.mxu0 %v1847
    %v1914 = vpop.f32.mrf.mxu0
    %v1915 = vadd.f32 0.0, %v1914
    %v1916 = vpop.f32.mrf.mxu0
    %1917 = vdwg.mxu0
    %1918 = vmatpush.bf16.msra.mxu0 0
    %1919 = vmatpush.bf16.msra.mxu0 0
    %1920 = vmatpush.bf16.msra.mxu0 0
    %1921 = vmatpush.bf16.msra.mxu0 0
    %1922 = vmatpush.bf16.msra.mxu0 0
    %1923 = vmatpush.bf16.msra.mxu0 0
    %1924 = vmatpush.bf16.msra.mxu0 %v652
    %1925 = vmatpush.bf16.msra.mxu0 %v644
    %1926 = vmatmul.bf16.gmra.mxu0 %v1851
    %v1927 = vpop.f32.mrf.mxu0
    %v1928 = vadd.f32 %v1915, %v1927
    %v1929 = vpop.f32.mrf.mxu0
    %1930 = vdwg.mxu0
    %1931 = vmatpush.bf16.msra.mxu0 %v637
    %1932 = vmatpush.bf16.msra.mxu0 %v629
    %1933 = vmatpush.bf16.msra.mxu0 %v621
    %1934 = vmatpush.bf16.msra.mxu0 %v613
    %1935 = vmatpush.bf16.msra.mxu0 %v605
    %1936 = vmatpush.bf16.msra.mxu0 %v597
    %1937 = vmatpush.bf16.msra.mxu0 %v589
    %1938 = vmatpush.bf16.msra.mxu0 %v581
    %1939 = vmatmul.bf16.gmra.mxu0 %v1847
    %v1940 = vpop.f32.mrf.mxu0
    %v1941 = vadd.f32 0.0, %v1940
    %v1942 = vpop.f32.mrf.mxu0
    %1943 = vdwg.mxu0
    %1944 = vmatpush.bf16.msra.mxu0 0
    %1945 = vmatpush.bf16.msra.mxu0 0
    %1946 = vmatpush.bf16.msra.mxu0 0
    %1947 = vmatpush.bf16.msra.mxu0 0
    %1948 = vmatpush.bf16.msra.mxu0 0
    %1949 = vmatpush.bf16.msra.mxu0 0
    %1950 = vmatpush.bf16.msra.mxu0 %v653
    %1951 = vmatpush.bf16.msra.mxu0 %v645
    %1952 = vmatmul.bf16.gmra.mxu0 %v1851
    %v1953 = vpop.f32.mrf.mxu0
    %v1954 = vadd.f32 %v1941, %v1953
    %v1955 = vpop.f32.mrf.mxu0
    %1956 = vdwg.mxu0
    %1957 = vmatpush.bf16.msra.mxu0 %v638
    %1958 = vmatpush.bf16.msra.mxu0 %v630
    %1959 = vmatpush.bf16.msra.mxu0 %v622
    %1960 = vmatpush.bf16.msra.mxu0 %v614
    %1961 = vmatpush.bf16.msra.mxu0 %v606
    %1962 = vmatpush.bf16.msra.mxu0 %v598
    %1963 = vmatpush.bf16.msra.mxu0 %v590
    %1964 = vmatpush.bf16.msra.mxu0 %v582
    %1965 = vmatmul.bf16.gmra.mxu0 %v1847
    %v1966 = vpop.f32.mrf.mxu0
    %v1967 = vadd.f32 0.0, %v1966
    %v1968 = vpop.f32.mrf.mxu0
    %1969 = vdwg.mxu0
    %1970 = vmatpush.bf16.msra.mxu0 0
    %1971 = vmatpush.bf16.msra.mxu0 0
    %1972 = vmatpush.bf16.msra.mxu0 0
    %1973 = vmatpush.bf16.msra.mxu0 0
    %1974 = vmatpush.bf16.msra.mxu0 0
    %1975 = vmatpush.bf16.msra.mxu0 0
    %1976 = vmatpush.bf16.msra.mxu0 %v654
    %1977 = vmatpush.bf16.msra.mxu0 %v646
    %1978 = vmatmul.bf16.gmra.mxu0 %v1851
    %v1979 = vpop.f32.mrf.mxu0
    %v1980 = vadd.f32 %v1967, %v1979
    %v1981 = vpop.f32.mrf.mxu0
    %1982 = vdwg.mxu0
    %1983 = vmatpush.bf16.msra.mxu0 %v639
    %1984 = vmatpush.bf16.msra.mxu0 %v631
    %1985 = vmatpush.bf16.msra.mxu0 %v623
    %1986 = vmatpush.bf16.msra.mxu0 %v615
    %1987 = vmatpush.bf16.msra.mxu0 %v607
    %1988 = vmatpush.bf16.msra.mxu0 %v599
    %1989 = vmatpush.bf16.msra.mxu0 %v591
    %1990 = vmatpush.bf16.msra.mxu0 %v583
    %1991 = vmatmul.bf16.gmra.mxu0 %v1847
    %v1992 = vpop.f32.mrf.mxu0
    %v1993 = vadd.f32 0.0, %v1992
    %v1994 = vpop.f32.mrf.mxu0
    %1995 = vdwg.mxu0
    %1996 = vmatpush.bf16.msra.mxu0 0
    %1997 = vmatpush.bf16.msra.mxu0 0
    %1998 = vmatpush.bf16.msra.mxu0 0
    %1999 = vmatpush.bf16.msra.mxu0 0
    %2000 = vmatpush.bf16.msra.mxu0 0
    %2001 = vmatpush.bf16.msra.mxu0 0
    %2002 = vmatpush.bf16.msra.mxu0 %v655
    %2003 = vmatpush.bf16.msra.mxu0 %v647
    %2004 = vmatmul.bf16.gmra.mxu0 %v1851
    %v2005 = vpop.f32.mrf.mxu0
    %v2006 = vadd.f32 %v1993, %v2005
    %v2007 = vpop.f32.mrf.mxu0
    %2008 = vdwg.mxu0
    %2009 = vmatpush.bf16.msra.mxu0 %v640
    %2010 = vmatpush.bf16.msra.mxu0 %v632
    %2011 = vmatpush.bf16.msra.mxu0 %v624
    %2012 = vmatpush.bf16.msra.mxu0 %v616
    %2013 = vmatpush.bf16.msra.mxu0 %v608
    %2014 = vmatpush.bf16.msra.mxu0 %v600
    %2015 = vmatpush.bf16.msra.mxu0 %v592
    %2016 = vmatpush.bf16.msra.mxu0 %v584
    %2017 = vmatmul.bf16.gmra.mxu0 %v1847
    %v2018 = vpop.f32.mrf.mxu0
    %v2019 = vadd.f32 0.0, %v2018
    %v2020 = vpop.f32.mrf.mxu0
    %2021 = vdwg.mxu0
    %2022 = vmatpush.bf16.msra.mxu0 0
    %2023 = vmatpush.bf16.msra.mxu0 0
    %2024 = vmatpush.bf16.msra.mxu0 0
    %2025 = vmatpush.bf16.msra.mxu0 0
    %2026 = vmatpush.bf16.msra.mxu0 0
    %2027 = vmatpush.bf16.msra.mxu0 0
    %2028 = vmatpush.bf16.msra.mxu0 %v656
    %2029 = vmatpush.bf16.msra.mxu0 %v648
    %2030 = vmatmul.bf16.gmra.mxu0 %v1851
    %v2031 = vpop.f32.mrf.mxu0
    %v2032 = vadd.f32 %v2019, %v2031
    %v2033 = vpop.f32.mrf.mxu0
    %2034 = vdwg.mxu0
    %2035 = vmatpush.bf16.msra.mxu0 %v641
    %2036 = vmatpush.bf16.msra.mxu0 %v633
    %2037 = vmatpush.bf16.msra.mxu0 %v625
    %2038 = vmatpush.bf16.msra.mxu0 %v617
    %2039 = vmatpush.bf16.msra.mxu0 %v609
    %2040 = vmatpush.bf16.msra.mxu0 %v601
    %2041 = vmatpush.bf16.msra.mxu0 %v593
    %2042 = vmatpush.bf16.msra.mxu0 %v585
    %2043 = vmatmul.bf16.gmra.mxu0 %v1847
    %v2044 = vpop.f32.mrf.mxu0
    %v2045 = vadd.f32 0.0, %v2044
    %v2046 = vpop.f32.mrf.mxu0
    %2047 = vdwg.mxu0
    %2048 = vmatpush.bf16.msra.mxu0 0
    %2049 = vmatpush.bf16.msra.mxu0 0
    %2050 = vmatpush.bf16.msra.mxu0 0
    %2051 = vmatpush.bf16.msra.mxu0 0
    %2052 = vmatpush.bf16.msra.mxu0 0
    %2053 = vmatpush.bf16.msra.mxu0 0
    %2054 = vmatpush.bf16.msra.mxu0 %v657
    %2055 = vmatpush.bf16.msra.mxu0 %v649
    %2056 = vmatmul.bf16.gmra.mxu0 %v1851
    %v2057 = vpop.f32.mrf.mxu0
    %v2058 = vadd.f32 %v2045, %v2057
    %v2059 = vpop.f32.mrf.mxu0
    %2060 = vdwg.mxu0
    %v2069 = vrot.slane %v1876, 2
    %v2070 = vrot.slane %v1902, 2
    %v2071 = vrot.slane %v1928, 2
    %v2072 = vrot.slane %v1954, 2
    %v2073 = vrot.slane %v1980, 2
    %v2074 = vrot.slane %v2006, 2
    %v2075 = vrot.slane %v2032, 2
    %v2076 = vrot.slane %v2058, 2
    %v2085 = vadd.f32 %v156, %v2069
    %v2086 = vadd.f32 %v170, %v2070
    %v2087 = vadd.f32 %v184, %v2071
    %v2088 = vadd.f32 %v198, %v2072
    %v2089 = vadd.f32 %v212, %v2073
    %v2090 = vadd.f32 %v226, %v2074
    %v2091 = vadd.f32 %v240, %v2075
    %v2092 = vadd.f32 %v254, %v2076
    %v2093 = vxor.u32 %v2085, 2147483648
    %v2094 = vxor.u32 %v2086, 2147483648
    %v2095 = vxor.u32 %v2087, 2147483648
    %v2096 = vxor.u32 %v2088, 2147483648
    %v2097 = vxor.u32 %v2089, 2147483648
    %v2098 = vxor.u32 %v2090, 2147483648
    %v2099 = vmul.f32 %v2093, 1.442695
    %v2100 = vpow.pop %v2099
    %v2101 = vmul.f32 %v2094, 1.442695
    %v2102 = vpow.pop %v2101
    %v2103 = vmul.f32 %v2095, 1.442695
    %v2104 = vpow.pop %v2103
    %v2105 = vmul.f32 %v2096, 1.442695
    %v2106 = vpow.pop %v2105
    %v2107 = vmul.f32 %v2097, 1.442695
    %v2108 = vpow.pop %v2107
    %v2109 = vmul.f32 %v2098, 1.442695
    %v2110 = vpow.pop %v2109
    %v2111 = vadd.f32 %v2100, 1.0
    %v2112 = vadd.f32 %v2102, 1.0
    %v2113 = vadd.f32 %v2104, 1.0
    %v2114 = vadd.f32 %v2106, 1.0
    %v2115 = vadd.f32 %v2108, 1.0
    %v2116 = vadd.f32 %v2110, 1.0
    %v2117 = vrcp.pop %v2111
    %v2118 = vmul.f32 %v2111, %v2117
    %v2119 = vsub.f32 1.0, %v2118
    %v2120 = vmul.f32 %v2117, %v2119
    %v2121 = vadd.f32 %v2117, %v2120
    %vm2122 = vweird.f32 %v2111
    %vm2123 = vweird.f32 %v2117
    %vm2124 = vmor %vm2122, %vm2123
    %v2125 = vsel %vm2124, %v2117, %v2121
    %v2126 = vand.u32 2147483647, %v2111
    %vm2127 = vcmp.eq.f32.partialorder %v2126, 8.507059e+37
    %v2128 = vand.u32 %v2111, 2147483648
    %v2129 = vor.u32 1.1754944e-38, %v2128
    %v2130 = vsel %vm2127, %v2129, %v2125
    %v2131 = vmul.f32 1.0, %v2130
    %v2132 = vrcp.pop %v2112
    %v2133 = vmul.f32 %v2112, %v2132
    %v2134 = vsub.f32 1.0, %v2133
    %v2135 = vmul.f32 %v2132, %v2134
    %v2136 = vadd.f32 %v2132, %v2135
    %vm2137 = vweird.f32 %v2112
    %vm2138 = vweird.f32 %v2132
    %vm2139 = vmor %vm2137, %vm2138
    %v2140 = vsel %vm2139, %v2132, %v2136
    %v2141 = vand.u32 2147483647, %v2112
    %vm2142 = vcmp.eq.f32.partialorder %v2141, 8.507059e+37
    %v2143 = vand.u32 %v2112, 2147483648
    %v2144 = vor.u32 1.1754944e-38, %v2143
    %v2145 = vsel %vm2142, %v2144, %v2140
    %v2146 = vmul.f32 1.0, %v2145
    %v2147 = vrcp.pop %v2113
    %v2148 = vmul.f32 %v2113, %v2147
    %v2149 = vsub.f32 1.0, %v2148
    %v2150 = vmul.f32 %v2147, %v2149
    %v2151 = vadd.f32 %v2147, %v2150
    %vm2152 = vweird.f32 %v2113
    %vm2153 = vweird.f32 %v2147
    %vm2154 = vmor %vm2152, %vm2153
    %v2155 = vsel %vm2154, %v2147, %v2151
    %v2156 = vand.u32 2147483647, %v2113
    %vm2157 = vcmp.eq.f32.partialorder %v2156, 8.507059e+37
    %v2158 = vand.u32 %v2113, 2147483648
    %v2159 = vor.u32 1.1754944e-38, %v2158
    %v2160 = vsel %vm2157, %v2159, %v2155
    %v2161 = vmul.f32 1.0, %v2160
    %v2162 = vrcp.pop %v2114
    %v2163 = vmul.f32 %v2114, %v2162
    %v2164 = vsub.f32 1.0, %v2163
    %v2165 = vmul.f32 %v2162, %v2164
    %v2166 = vadd.f32 %v2162, %v2165
    %vm2167 = vweird.f32 %v2114
    %vm2168 = vweird.f32 %v2162
    %vm2169 = vmor %vm2167, %vm2168
    %v2170 = vsel %vm2169, %v2162, %v2166
    %v2171 = vand.u32 2147483647, %v2114
    %vm2172 = vcmp.eq.f32.partialorder %v2171, 8.507059e+37
    %v2173 = vand.u32 %v2114, 2147483648
    %v2174 = vor.u32 1.1754944e-38, %v2173
    %v2175 = vsel %vm2172, %v2174, %v2170
    %v2176 = vmul.f32 1.0, %v2175
    %v2177 = vrcp.pop %v2115
    %v2178 = vmul.f32 %v2115, %v2177
    %v2179 = vsub.f32 1.0, %v2178
    %v2180 = vmul.f32 %v2177, %v2179
    %v2181 = vadd.f32 %v2177, %v2180
    %vm2182 = vweird.f32 %v2115
    %vm2183 = vweird.f32 %v2177
    %vm2184 = vmor %vm2182, %vm2183
    %v2185 = vsel %vm2184, %v2177, %v2181
    %v2186 = vand.u32 2147483647, %v2115
    %vm2187 = vcmp.eq.f32.partialorder %v2186, 8.507059e+37
    %v2188 = vand.u32 %v2115, 2147483648
    %v2189 = vor.u32 1.1754944e-38, %v2188
    %v2190 = vsel %vm2187, %v2189, %v2185
    %v2191 = vmul.f32 1.0, %v2190
    %v2192 = vrcp.pop %v2116
    %v2193 = vmul.f32 %v2116, %v2192
    %v2194 = vsub.f32 1.0, %v2193
    %v2195 = vmul.f32 %v2192, %v2194
    %v2196 = vadd.f32 %v2192, %v2195
    %vm2197 = vweird.f32 %v2116
    %vm2198 = vweird.f32 %v2192
    %vm2199 = vmor %vm2197, %vm2198
    %v2200 = vsel %vm2199, %v2192, %v2196
    %v2201 = vand.u32 2147483647, %v2116
    %vm2202 = vcmp.eq.f32.partialorder %v2201, 8.507059e+37
    %v2203 = vand.u32 %v2116, 2147483648
    %v2204 = vor.u32 1.1754944e-38, %v2203
    %v2205 = vsel %vm2202, %v2204, %v2200
    %v2206 = vmul.f32 1.0, %v2205
    %v2207 = vtanh.pop %v2091
    %v2208 = vtanh.pop %v2092
    %v2211 = vrot.slane %v1837, 6
    %v2212 = vrot.slane %v1838, 6
    %v2215 = vmul.f32 %v2161, %v2211
    %v2216 = vmul.f32 %v2176, %v2212
    %v2217 = vmul.f32 %v2131, %v2207
    %v2218 = vmul.f32 %v2146, %v2208
    %v2219 = vadd.f32 %v2215, %v2217
    %v2220 = vadd.f32 %v2216, %v2218
    %v2221 = vtanh.pop %v2219
    %v2222 = vtanh.pop %v2220
    %v2223 = vmul.f32 %v2191, %v2221
    %v2224 = vmul.f32 %v2206, %v2222
    %v2225 = vpack.c.bf16 %v2223, %v2223
    %v2226 = vpack.c.bf16 %v2224, %v2224
    %v2229 = vrot.slane %v2225, 3
    %v2230 = vrot.slane %v2226, 3
    %v2233 = vsel %vm738, %v2230, 0
    %2235 = vmatpush.bf16.msra.mxu0 %v634
    %2236 = vmatpush.bf16.msra.mxu0 %v626
    %2237 = vmatpush.bf16.msra.mxu0 %v618
    %2238 = vmatpush.bf16.msra.mxu0 %v610
    %2239 = vmatpush.bf16.msra.mxu0 %v602
    %2240 = vmatpush.bf16.msra.mxu0 %v594
    %2241 = vmatpush.bf16.msra.mxu0 %v586
    %2242 = vmatpush.bf16.msra.mxu0 %v578
    %2243 = vmatmul.bf16.gmra.mxu0 %v2229
    %v2244 = vpop.f32.mrf.mxu0
    %v2245 = vadd.f32 0.0, %v2244
    %v2246 = vpop.f32.mrf.mxu0
    %2247 = vdwg.mxu0
    %2248 = vmatpush.bf16.msra.mxu0 0
    %2249 = vmatpush.bf16.msra.mxu0 0
    %2250 = vmatpush.bf16.msra.mxu0 0
    %2251 = vmatpush.bf16.msra.mxu0 0
    %2252 = vmatpush.bf16.msra.mxu0 0
    %2253 = vmatpush.bf16.msra.mxu0 0
    %2254 = vmatpush.bf16.msra.mxu0 %v650
    %2255 = vmatpush.bf16.msra.mxu0 %v642
    %2256 = vmatmul.bf16.gmra.mxu0 %v2233
    %v2257 = vpop.f32.mrf.mxu0
    %v2258 = vadd.f32 %v2245, %v2257
    %v2259 = vpop.f32.mrf.mxu0
    %2260 = vdwg.mxu0
    %2261 = vmatpush.bf16.msra.mxu0 %v635
    %2262 = vmatpush.bf16.msra.mxu0 %v627
    %2263 = vmatpush.bf16.msra.mxu0 %v619
    %2264 = vmatpush.bf16.msra.mxu0 %v611
    %2265 = vmatpush.bf16.msra.mxu0 %v603
    %2266 = vmatpush.bf16.msra.mxu0 %v595
    %2267 = vmatpush.bf16.msra.mxu0 %v587
    %2268 = vmatpush.bf16.msra.mxu0 %v579
    %2269 = vmatmul.bf16.gmra.mxu0 %v2229
    %v2270 = vpop.f32.mrf.mxu0
    %v2271 = vadd.f32 0.0, %v2270
    %v2272 = vpop.f32.mrf.mxu0
    %2273 = vdwg.mxu0
    %2274 = vmatpush.bf16.msra.mxu0 0
    %2275 = vmatpush.bf16.msra.mxu0 0
    %2276 = vmatpush.bf16.msra.mxu0 0
    %2277 = vmatpush.bf16.msra.mxu0 0
    %2278 = vmatpush.bf16.msra.mxu0 0
    %2279 = vmatpush.bf16.msra.mxu0 0
    %2280 = vmatpush.bf16.msra.mxu0 %v651
    %2281 = vmatpush.bf16.msra.mxu0 %v643
    %2282 = vmatmul.bf16.gmra.mxu0 %v2233
    %v2283 = vpop.f32.mrf.mxu0
    %v2284 = vadd.f32 %v2271, %v2283
    %v2285 = vpop.f32.mrf.mxu0
    %2286 = vdwg.mxu0
    %2287 = vmatpush.bf16.msra.mxu0 %v636
    %2288 = vmatpush.bf16.msra.mxu0 %v628
    %2289 = vmatpush.bf16.msra.mxu0 %v620
    %2290 = vmatpush.bf16.msra.mxu0 %v612
    %2291 = vmatpush.bf16.msra.mxu0 %v604
    %2292 = vmatpush.bf16.msra.mxu0 %v596
    %2293 = vmatpush.bf16.msra.mxu0 %v588
    %2294 = vmatpush.bf16.msra.mxu0 %v580
    %2295 = vmatmul.bf16.gmra.mxu0 %v2229
    %v2296 = vpop.f32.mrf.mxu0
    %v2297 = vadd.f32 0.0, %v2296
    %v2298 = vpop.f32.mrf.mxu0
    %2299 = vdwg.mxu0
    %2300 = vmatpush.bf16.msra.mxu0 0
    %2301 = vmatpush.bf16.msra.mxu0 0
    %2302 = vmatpush.bf16.msra.mxu0 0
    %2303 = vmatpush.bf16.msra.mxu0 0
    %2304 = vmatpush.bf16.msra.mxu0 0
    %2305 = vmatpush.bf16.msra.mxu0 0
    %2306 = vmatpush.bf16.msra.mxu0 %v652
    %2307 = vmatpush.bf16.msra.mxu0 %v644
    %2308 = vmatmul.bf16.gmra.mxu0 %v2233
    %v2309 = vpop.f32.mrf.mxu0
    %v2310 = vadd.f32 %v2297, %v2309
    %v2311 = vpop.f32.mrf.mxu0
    %2312 = vdwg.mxu0
    %2313 = vmatpush.bf16.msra.mxu0 %v637
    %2314 = vmatpush.bf16.msra.mxu0 %v629
    %2315 = vmatpush.bf16.msra.mxu0 %v621
    %2316 = vmatpush.bf16.msra.mxu0 %v613
    %2317 = vmatpush.bf16.msra.mxu0 %v605
    %2318 = vmatpush.bf16.msra.mxu0 %v597
    %2319 = vmatpush.bf16.msra.mxu0 %v589
    %2320 = vmatpush.bf16.msra.mxu0 %v581
    %2321 = vmatmul.bf16.gmra.mxu0 %v2229
    %v2322 = vpop.f32.mrf.mxu0
    %v2323 = vadd.f32 0.0, %v2322
    %v2324 = vpop.f32.mrf.mxu0
    %2325 = vdwg.mxu0
    %2326 = vmatpush.bf16.msra.mxu0 0
    %2327 = vmatpush.bf16.msra.mxu0 0
    %2328 = vmatpush.bf16.msra.mxu0 0
    %2329 = vmatpush.bf16.msra.mxu0 0
    %2330 = vmatpush.bf16.msra.mxu0 0
    %2331 = vmatpush.bf16.msra.mxu0 0
    %2332 = vmatpush.bf16.msra.mxu0 %v653
    %2333 = vmatpush.bf16.msra.mxu0 %v645
    %2334 = vmatmul.bf16.gmra.mxu0 %v2233
    %v2335 = vpop.f32.mrf.mxu0
    %v2336 = vadd.f32 %v2323, %v2335
    %v2337 = vpop.f32.mrf.mxu0
    %2338 = vdwg.mxu0
    %2339 = vmatpush.bf16.msra.mxu0 %v638
    %2340 = vmatpush.bf16.msra.mxu0 %v630
    %2341 = vmatpush.bf16.msra.mxu0 %v622
    %2342 = vmatpush.bf16.msra.mxu0 %v614
    %2343 = vmatpush.bf16.msra.mxu0 %v606
    %2344 = vmatpush.bf16.msra.mxu0 %v598
    %2345 = vmatpush.bf16.msra.mxu0 %v590
    %2346 = vmatpush.bf16.msra.mxu0 %v582
    %2347 = vmatmul.bf16.gmra.mxu0 %v2229
    %v2348 = vpop.f32.mrf.mxu0
    %v2349 = vadd.f32 0.0, %v2348
    %v2350 = vpop.f32.mrf.mxu0
    %2351 = vdwg.mxu0
    %2352 = vmatpush.bf16.msra.mxu0 0
    %2353 = vmatpush.bf16.msra.mxu0 0
    %2354 = vmatpush.bf16.msra.mxu0 0
    %2355 = vmatpush.bf16.msra.mxu0 0
    %2356 = vmatpush.bf16.msra.mxu0 0
    %2357 = vmatpush.bf16.msra.mxu0 0
    %2358 = vmatpush.bf16.msra.mxu0 %v654
    %2359 = vmatpush.bf16.msra.mxu0 %v646
    %2360 = vmatmul.bf16.gmra.mxu0 %v2233
    %v2361 = vpop.f32.mrf.mxu0
    %v2362 = vadd.f32 %v2349, %v2361
    %v2363 = vpop.f32.mrf.mxu0
    %2364 = vdwg.mxu0
    %2365 = vmatpush.bf16.msra.mxu0 %v639
    %2366 = vmatpush.bf16.msra.mxu0 %v631
    %2367 = vmatpush.bf16.msra.mxu0 %v623
    %2368 = vmatpush.bf16.msra.mxu0 %v615
    %2369 = vmatpush.bf16.msra.mxu0 %v607
    %2370 = vmatpush.bf16.msra.mxu0 %v599
    %2371 = vmatpush.bf16.msra.mxu0 %v591
    %2372 = vmatpush.bf16.msra.mxu0 %v583
    %2373 = vmatmul.bf16.gmra.mxu0 %v2229
    %v2374 = vpop.f32.mrf.mxu0
    %v2375 = vadd.f32 0.0, %v2374
    %v2376 = vpop.f32.mrf.mxu0
    %2377 = vdwg.mxu0
    %2378 = vmatpush.bf16.msra.mxu0 0
    %2379 = vmatpush.bf16.msra.mxu0 0
    %2380 = vmatpush.bf16.msra.mxu0 0
    %2381 = vmatpush.bf16.msra.mxu0 0
    %2382 = vmatpush.bf16.msra.mxu0 0
    %2383 = vmatpush.bf16.msra.mxu0 0
    %2384 = vmatpush.bf16.msra.mxu0 %v655
    %2385 = vmatpush.bf16.msra.mxu0 %v647
    %2386 = vmatmul.bf16.gmra.mxu0 %v2233
    %v2387 = vpop.f32.mrf.mxu0
    %v2388 = vadd.f32 %v2375, %v2387
    %v2389 = vpop.f32.mrf.mxu0
    %2390 = vdwg.mxu0
    %2391 = vmatpush.bf16.msra.mxu0 %v640
    %2392 = vmatpush.bf16.msra.mxu0 %v632
    %2393 = vmatpush.bf16.msra.mxu0 %v624
    %2394 = vmatpush.bf16.msra.mxu0 %v616
    %2395 = vmatpush.bf16.msra.mxu0 %v608
    %2396 = vmatpush.bf16.msra.mxu0 %v600
    %2397 = vmatpush.bf16.msra.mxu0 %v592
    %2398 = vmatpush.bf16.msra.mxu0 %v584
    %2399 = vmatmul.bf16.gmra.mxu0 %v2229
    %v2400 = vpop.f32.mrf.mxu0
    %v2401 = vadd.f32 0.0, %v2400
    %v2402 = vpop.f32.mrf.mxu0
    %2403 = vdwg.mxu0
    %2404 = vmatpush.bf16.msra.mxu0 0
    %2405 = vmatpush.bf16.msra.mxu0 0
    %2406 = vmatpush.bf16.msra.mxu0 0
    %2407 = vmatpush.bf16.msra.mxu0 0
    %2408 = vmatpush.bf16.msra.mxu0 0
    %2409 = vmatpush.bf16.msra.mxu0 0
    %2410 = vmatpush.bf16.msra.mxu0 %v656
    %2411 = vmatpush.bf16.msra.mxu0 %v648
    %2412 = vmatmul.bf16.gmra.mxu0 %v2233
    %v2413 = vpop.f32.mrf.mxu0
    %v2414 = vadd.f32 %v2401, %v2413
    %v2415 = vpop.f32.mrf.mxu0
    %2416 = vdwg.mxu0
    %2417 = vmatpush.bf16.msra.mxu0 %v641
    %2418 = vmatpush.bf16.msra.mxu0 %v633
    %2419 = vmatpush.bf16.msra.mxu0 %v625
    %2420 = vmatpush.bf16.msra.mxu0 %v617
    %2421 = vmatpush.bf16.msra.mxu0 %v609
    %2422 = vmatpush.bf16.msra.mxu0 %v601
    %2423 = vmatpush.bf16.msra.mxu0 %v593
    %2424 = vmatpush.bf16.msra.mxu0 %v585
    %2425 = vmatmul.bf16.gmra.mxu0 %v2229
    %v2426 = vpop.f32.mrf.mxu0
    %v2427 = vadd.f32 0.0, %v2426
    %v2428 = vpop.f32.mrf.mxu0
    %2429 = vdwg.mxu0
    %2430 = vmatpush.bf16.msra.mxu0 0
    %2431 = vmatpush.bf16.msra.mxu0 0
    %2432 = vmatpush.bf16.msra.mxu0 0
    %2433 = vmatpush.bf16.msra.mxu0 0
    %2434 = vmatpush.bf16.msra.mxu0 0
    %2435 = vmatpush.bf16.msra.mxu0 0
    %2436 = vmatpush.bf16.msra.mxu0 %v657
    %2437 = vmatpush.bf16.msra.mxu0 %v649
    %2438 = vmatmul.bf16.gmra.mxu0 %v2233
    %v2439 = vpop.f32.mrf.mxu0
    %v2440 = vadd.f32 %v2427, %v2439
    %v2441 = vpop.f32.mrf.mxu0
    %2442 = vdwg.mxu0
    %v2443 = vadd.f32 %v158, %v2258
    %v2444 = vadd.f32 %v172, %v2284
    %v2445 = vadd.f32 %v186, %v2310
    %v2446 = vadd.f32 %v200, %v2336
    %v2447 = vadd.f32 %v214, %v2362
    %v2448 = vadd.f32 %v228, %v2388
    %v2449 = vadd.f32 %v242, %v2414
    %v2450 = vadd.f32 %v256, %v2440
    %v2451 = vxor.u32 %v2443, 2147483648
    %v2452 = vxor.u32 %v2444, 2147483648
    %v2453 = vxor.u32 %v2445, 2147483648
    %v2454 = vxor.u32 %v2446, 2147483648
    %v2455 = vxor.u32 %v2447, 2147483648
    %v2456 = vxor.u32 %v2448, 2147483648
    %v2457 = vmul.f32 %v2451, 1.442695
    %v2458 = vpow.pop %v2457
    %v2459 = vmul.f32 %v2452, 1.442695
    %v2460 = vpow.pop %v2459
    %v2461 = vmul.f32 %v2453, 1.442695
    %v2462 = vpow.pop %v2461
    %v2463 = vmul.f32 %v2454, 1.442695
    %v2464 = vpow.pop %v2463
    %v2465 = vmul.f32 %v2455, 1.442695
    %v2466 = vpow.pop %v2465
    %v2467 = vmul.f32 %v2456, 1.442695
    %v2468 = vpow.pop %v2467
    %v2469 = vadd.f32 %v2458, 1.0
    %v2470 = vadd.f32 %v2460, 1.0
    %v2471 = vadd.f32 %v2462, 1.0
    %v2472 = vadd.f32 %v2464, 1.0
    %v2473 = vadd.f32 %v2466, 1.0
    %v2474 = vadd.f32 %v2468, 1.0
    %v2475 = vrcp.pop %v2469
    %v2476 = vmul.f32 %v2469, %v2475
    %v2477 = vsub.f32 1.0, %v2476
    %v2478 = vmul.f32 %v2475, %v2477
    %v2479 = vadd.f32 %v2475, %v2478
    %vm2480 = vweird.f32 %v2469
    %vm2481 = vweird.f32 %v2475
    %vm2482 = vmor %vm2480, %vm2481
    %v2483 = vsel %vm2482, %v2475, %v2479
    %v2484 = vand.u32 2147483647, %v2469
    %vm2485 = vcmp.eq.f32.partialorder %v2484, 8.507059e+37
    %v2486 = vand.u32 %v2469, 2147483648
    %v2487 = vor.u32 1.1754944e-38, %v2486
    %v2488 = vsel %vm2485, %v2487, %v2483
    %v2489 = vmul.f32 1.0, %v2488
    %v2490 = vrcp.pop %v2470
    %v2491 = vmul.f32 %v2470, %v2490
    %v2492 = vsub.f32 1.0, %v2491
    %v2493 = vmul.f32 %v2490, %v2492
    %v2494 = vadd.f32 %v2490, %v2493
    %vm2495 = vweird.f32 %v2470
    %vm2496 = vweird.f32 %v2490
    %vm2497 = vmor %vm2495, %vm2496
    %v2498 = vsel %vm2497, %v2490, %v2494
    %v2499 = vand.u32 2147483647, %v2470
    %vm2500 = vcmp.eq.f32.partialorder %v2499, 8.507059e+37
    %v2501 = vand.u32 %v2470, 2147483648
    %v2502 = vor.u32 1.1754944e-38, %v2501
    %v2503 = vsel %vm2500, %v2502, %v2498
    %v2504 = vmul.f32 1.0, %v2503
    %v2505 = vrcp.pop %v2471
    %v2506 = vmul.f32 %v2471, %v2505
    %v2507 = vsub.f32 1.0, %v2506
    %v2508 = vmul.f32 %v2505, %v2507
    %v2509 = vadd.f32 %v2505, %v2508
    %vm2510 = vweird.f32 %v2471
    %vm2511 = vweird.f32 %v2505
    %vm2512 = vmor %vm2510, %vm2511
    %v2513 = vsel %vm2512, %v2505, %v2509
    %v2514 = vand.u32 2147483647, %v2471
    %vm2515 = vcmp.eq.f32.partialorder %v2514, 8.507059e+37
    %v2516 = vand.u32 %v2471, 2147483648
    %v2517 = vor.u32 1.1754944e-38, %v2516
    %v2518 = vsel %vm2515, %v2517, %v2513
    %v2519 = vmul.f32 1.0, %v2518
    %v2520 = vrcp.pop %v2472
    %v2521 = vmul.f32 %v2472, %v2520
    %v2522 = vsub.f32 1.0, %v2521
    %v2523 = vmul.f32 %v2520, %v2522
    %v2524 = vadd.f32 %v2520, %v2523
    %vm2525 = vweird.f32 %v2472
    %vm2526 = vweird.f32 %v2520
    %vm2527 = vmor %vm2525, %vm2526
    %v2528 = vsel %vm2527, %v2520, %v2524
    %v2529 = vand.u32 2147483647, %v2472
    %vm2530 = vcmp.eq.f32.partialorder %v2529, 8.507059e+37
    %v2531 = vand.u32 %v2472, 2147483648
    %v2532 = vor.u32 1.1754944e-38, %v2531
    %v2533 = vsel %vm2530, %v2532, %v2528
    %v2534 = vmul.f32 1.0, %v2533
    %v2535 = vrcp.pop %v2473
    %v2536 = vmul.f32 %v2473, %v2535
    %v2537 = vsub.f32 1.0, %v2536
    %v2538 = vmul.f32 %v2535, %v2537
    %v2539 = vadd.f32 %v2535, %v2538
    %vm2540 = vweird.f32 %v2473
    %vm2541 = vweird.f32 %v2535
    %vm2542 = vmor %vm2540, %vm2541
    %v2543 = vsel %vm2542, %v2535, %v2539
    %v2544 = vand.u32 2147483647, %v2473
    %vm2545 = vcmp.eq.f32.partialorder %v2544, 8.507059e+37
    %v2546 = vand.u32 %v2473, 2147483648
    %v2547 = vor.u32 1.1754944e-38, %v2546
    %v2548 = vsel %vm2545, %v2547, %v2543
    %v2549 = vmul.f32 1.0, %v2548
    %v2550 = vrcp.pop %v2474
    %v2551 = vmul.f32 %v2474, %v2550
    %v2552 = vsub.f32 1.0, %v2551
    %v2553 = vmul.f32 %v2550, %v2552
    %v2554 = vadd.f32 %v2550, %v2553
    %vm2555 = vweird.f32 %v2474
    %vm2556 = vweird.f32 %v2550
    %vm2557 = vmor %vm2555, %vm2556
    %v2558 = vsel %vm2557, %v2550, %v2554
    %v2559 = vand.u32 2147483647, %v2474
    %vm2560 = vcmp.eq.f32.partialorder %v2559, 8.507059e+37
    %v2561 = vand.u32 %v2474, 2147483648
    %v2562 = vor.u32 1.1754944e-38, %v2561
    %v2563 = vsel %vm2560, %v2562, %v2558
    %v2564 = vmul.f32 1.0, %v2563
    %v2565 = vtanh.pop %v2449
    %v2566 = vtanh.pop %v2450
    %v2569 = vrot.slane %v2219, 6
    %v2570 = vrot.slane %v2220, 6
    %v2573 = vmul.f32 %v2519, %v2569
    %v2574 = vmul.f32 %v2534, %v2570
    %v2575 = vmul.f32 %v2489, %v2565
    %v2576 = vmul.f32 %v2504, %v2566
    %v2577 = vadd.f32 %v2573, %v2575
    %v2578 = vadd.f32 %v2574, %v2576
    %v2579 = vtanh.pop %v2577
    %v2580 = vtanh.pop %v2578
    %v2581 = vmul.f32 %v2549, %v2579
    %v2582 = vmul.f32 %v2564, %v2580
    %v2583 = vpack.c.bf16 %v2581, %v2581
    %v2584 = vpack.c.bf16 %v2582, %v2582
    %v2586 = vsel %vm738, %v2584, 0
    %2588 = vmatpush.bf16.msra.mxu0 %v634
    %2589 = vmatpush.bf16.msra.mxu0 %v626
    %2590 = vmatpush.bf16.msra.mxu0 %v618
    %2591 = vmatpush.bf16.msra.mxu0 %v610
    %2592 = vmatpush.bf16.msra.mxu0 %v602
    %2593 = vmatpush.bf16.msra.mxu0 %v594
    %2594 = vmatpush.bf16.msra.mxu0 %v586
    %2595 = vmatpush.bf16.msra.mxu0 %v578
    %2596 = vmatmul.bf16.gmra.mxu0 %v2583
    %v2597 = vpop.f32.mrf.mxu0
    %v2598 = vadd.f32 0.0, %v2597
    %v2599 = vpop.f32.mrf.mxu0
    %2600 = vdwg.mxu0
    %2601 = vmatpush.bf16.msra.mxu0 0
    %2602 = vmatpush.bf16.msra.mxu0 0
    %2603 = vmatpush.bf16.msra.mxu0 0
    %2604 = vmatpush.bf16.msra.mxu0 0
    %2605 = vmatpush.bf16.msra.mxu0 0
    %2606 = vmatpush.bf16.msra.mxu0 0
    %2607 = vmatpush.bf16.msra.mxu0 %v650
    %2608 = vmatpush.bf16.msra.mxu0 %v642
    %2609 = vmatmul.bf16.gmra.mxu0 %v2586
    %v2610 = vpop.f32.mrf.mxu0
    %v2611 = vadd.f32 %v2598, %v2610
    %v2612 = vpop.f32.mrf.mxu0
    %2613 = vdwg.mxu0
    %2614 = vmatpush.bf16.msra.mxu0 %v635
    %2615 = vmatpush.bf16.msra.mxu0 %v627
    %2616 = vmatpush.bf16.msra.mxu0 %v619
    %2617 = vmatpush.bf16.msra.mxu0 %v611
    %2618 = vmatpush.bf16.msra.mxu0 %v603
    %2619 = vmatpush.bf16.msra.mxu0 %v595
    %2620 = vmatpush.bf16.msra.mxu0 %v587
    %2621 = vmatpush.bf16.msra.mxu0 %v579
    %2622 = vmatmul.bf16.gmra.mxu0 %v2583
    %v2623 = vpop.f32.mrf.mxu0
    %v2624 = vadd.f32 0.0, %v2623
    %v2625 = vpop.f32.mrf.mxu0
    %2626 = vdwg.mxu0
    %2627 = vmatpush.bf16.msra.mxu0 0
    %2628 = vmatpush.bf16.msra.mxu0 0
    %2629 = vmatpush.bf16.msra.mxu0 0
    %2630 = vmatpush.bf16.msra.mxu0 0
    %2631 = vmatpush.bf16.msra.mxu0 0
    %2632 = vmatpush.bf16.msra.mxu0 0
    %2633 = vmatpush.bf16.msra.mxu0 %v651
    %2634 = vmatpush.bf16.msra.mxu0 %v643
    %2635 = vmatmul.bf16.gmra.mxu0 %v2586
    %v2636 = vpop.f32.mrf.mxu0
    %v2637 = vadd.f32 %v2624, %v2636
    %v2638 = vpop.f32.mrf.mxu0
    %2639 = vdwg.mxu0
    %2640 = vmatpush.bf16.msra.mxu0 %v636
    %2641 = vmatpush.bf16.msra.mxu0 %v628
    %2642 = vmatpush.bf16.msra.mxu0 %v620
    %2643 = vmatpush.bf16.msra.mxu0 %v612
    %2644 = vmatpush.bf16.msra.mxu0 %v604
    %2645 = vmatpush.bf16.msra.mxu0 %v596
    %2646 = vmatpush.bf16.msra.mxu0 %v588
    %2647 = vmatpush.bf16.msra.mxu0 %v580
    %2648 = vmatmul.bf16.gmra.mxu0 %v2583
    %v2649 = vpop.f32.mrf.mxu0
    %v2650 = vadd.f32 0.0, %v2649
    %v2651 = vpop.f32.mrf.mxu0
    %2652 = vdwg.mxu0
    %2653 = vmatpush.bf16.msra.mxu0 0
    %2654 = vmatpush.bf16.msra.mxu0 0
    %2655 = vmatpush.bf16.msra.mxu0 0
    %2656 = vmatpush.bf16.msra.mxu0 0
    %2657 = vmatpush.bf16.msra.mxu0 0
    %2658 = vmatpush.bf16.msra.mxu0 0
    %2659 = vmatpush.bf16.msra.mxu0 %v652
    %2660 = vmatpush.bf16.msra.mxu0 %v644
    %2661 = vmatmul.bf16.gmra.mxu0 %v2586
    %v2662 = vpop.f32.mrf.mxu0
    %v2663 = vadd.f32 %v2650, %v2662
    %v2664 = vpop.f32.mrf.mxu0
    %2665 = vdwg.mxu0
    %2666 = vmatpush.bf16.msra.mxu0 %v637
    %2667 = vmatpush.bf16.msra.mxu0 %v629
    %2668 = vmatpush.bf16.msra.mxu0 %v621
    %2669 = vmatpush.bf16.msra.mxu0 %v613
    %2670 = vmatpush.bf16.msra.mxu0 %v605
    %2671 = vmatpush.bf16.msra.mxu0 %v597
    %2672 = vmatpush.bf16.msra.mxu0 %v589
    %2673 = vmatpush.bf16.msra.mxu0 %v581
    %2674 = vmatmul.bf16.gmra.mxu0 %v2583
    %v2675 = vpop.f32.mrf.mxu0
    %v2676 = vadd.f32 0.0, %v2675
    %v2677 = vpop.f32.mrf.mxu0
    %2678 = vdwg.mxu0
    %2679 = vmatpush.bf16.msra.mxu0 0
    %2680 = vmatpush.bf16.msra.mxu0 0
    %2681 = vmatpush.bf16.msra.mxu0 0
    %2682 = vmatpush.bf16.msra.mxu0 0
    %2683 = vmatpush.bf16.msra.mxu0 0
    %2684 = vmatpush.bf16.msra.mxu0 0
    %2685 = vmatpush.bf16.msra.mxu0 %v653
    %2686 = vmatpush.bf16.msra.mxu0 %v645
    %2687 = vmatmul.bf16.gmra.mxu0 %v2586
    %v2688 = vpop.f32.mrf.mxu0
    %v2689 = vadd.f32 %v2676, %v2688
    %v2690 = vpop.f32.mrf.mxu0
    %2691 = vdwg.mxu0
    %2692 = vmatpush.bf16.msra.mxu0 %v638
    %2693 = vmatpush.bf16.msra.mxu0 %v630
    %2694 = vmatpush.bf16.msra.mxu0 %v622
    %2695 = vmatpush.bf16.msra.mxu0 %v614
    %2696 = vmatpush.bf16.msra.mxu0 %v606
    %2697 = vmatpush.bf16.msra.mxu0 %v598
    %2698 = vmatpush.bf16.msra.mxu0 %v590
    %2699 = vmatpush.bf16.msra.mxu0 %v582
    %2700 = vmatmul.bf16.gmra.mxu0 %v2583
    %v2701 = vpop.f32.mrf.mxu0
    %v2702 = vadd.f32 0.0, %v2701
    %v2703 = vpop.f32.mrf.mxu0
    %2704 = vdwg.mxu0
    %2705 = vmatpush.bf16.msra.mxu0 0
    %2706 = vmatpush.bf16.msra.mxu0 0
    %2707 = vmatpush.bf16.msra.mxu0 0
    %2708 = vmatpush.bf16.msra.mxu0 0
    %2709 = vmatpush.bf16.msra.mxu0 0
    %2710 = vmatpush.bf16.msra.mxu0 0
    %2711 = vmatpush.bf16.msra.mxu0 %v654
    %2712 = vmatpush.bf16.msra.mxu0 %v646
    %2713 = vmatmul.bf16.gmra.mxu0 %v2586
    %v2714 = vpop.f32.mrf.mxu0
    %v2715 = vadd.f32 %v2702, %v2714
    %v2716 = vpop.f32.mrf.mxu0
    %2717 = vdwg.mxu0
    %2718 = vmatpush.bf16.msra.mxu0 %v639
    %2719 = vmatpush.bf16.msra.mxu0 %v631
    %2720 = vmatpush.bf16.msra.mxu0 %v623
    %2721 = vmatpush.bf16.msra.mxu0 %v615
    %2722 = vmatpush.bf16.msra.mxu0 %v607
    %2723 = vmatpush.bf16.msra.mxu0 %v599
    %2724 = vmatpush.bf16.msra.mxu0 %v591
    %2725 = vmatpush.bf16.msra.mxu0 %v583
    %2726 = vmatmul.bf16.gmra.mxu0 %v2583
    %v2727 = vpop.f32.mrf.mxu0
    %v2728 = vadd.f32 0.0, %v2727
    %v2729 = vpop.f32.mrf.mxu0
    %2730 = vdwg.mxu0
    %2731 = vmatpush.bf16.msra.mxu0 0
    %2732 = vmatpush.bf16.msra.mxu0 0
    %2733 = vmatpush.bf16.msra.mxu0 0
    %2734 = vmatpush.bf16.msra.mxu0 0
    %2735 = vmatpush.bf16.msra.mxu0 0
    %2736 = vmatpush.bf16.msra.mxu0 0
    %2737 = vmatpush.bf16.msra.mxu0 %v655
    %2738 = vmatpush.bf16.msra.mxu0 %v647
    %2739 = vmatmul.bf16.gmra.mxu0 %v2586
    %v2740 = vpop.f32.mrf.mxu0
    %v2741 = vadd.f32 %v2728, %v2740
    %v2742 = vpop.f32.mrf.mxu0
    %2743 = vdwg.mxu0
    %2744 = vmatpush.bf16.msra.mxu0 %v640
    %2745 = vmatpush.bf16.msra.mxu0 %v632
    %2746 = vmatpush.bf16.msra.mxu0 %v624
    %2747 = vmatpush.bf16.msra.mxu0 %v616
    %2748 = vmatpush.bf16.msra.mxu0 %v608
    %2749 = vmatpush.bf16.msra.mxu0 %v600
    %2750 = vmatpush.bf16.msra.mxu0 %v592
    %2751 = vmatpush.bf16.msra.mxu0 %v584
    %2752 = vmatmul.bf16.gmra.mxu0 %v2583
    %v2753 = vpop.f32.mrf.mxu0
    %v2754 = vadd.f32 0.0, %v2753
    %v2755 = vpop.f32.mrf.mxu0
    %2756 = vdwg.mxu0
    %2757 = vmatpush.bf16.msra.mxu0 0
    %2758 = vmatpush.bf16.msra.mxu0 0
    %2759 = vmatpush.bf16.msra.mxu0 0
    %2760 = vmatpush.bf16.msra.mxu0 0
    %2761 = vmatpush.bf16.msra.mxu0 0
    %2762 = vmatpush.bf16.msra.mxu0 0
    %2763 = vmatpush.bf16.msra.mxu0 %v656
    %2764 = vmatpush.bf16.msra.mxu0 %v648
    %2765 = vmatmul.bf16.gmra.mxu0 %v2586
    %v2766 = vpop.f32.mrf.mxu0
    %v2767 = vadd.f32 %v2754, %v2766
    %v2768 = vpop.f32.mrf.mxu0
    %2769 = vdwg.mxu0
    %2770 = vmatpush.bf16.msra.mxu0 %v641
    %2771 = vmatpush.bf16.msra.mxu0 %v633
    %2772 = vmatpush.bf16.msra.mxu0 %v625
    %2773 = vmatpush.bf16.msra.mxu0 %v617
    %2774 = vmatpush.bf16.msra.mxu0 %v609
    %2775 = vmatpush.bf16.msra.mxu0 %v601
    %2776 = vmatpush.bf16.msra.mxu0 %v593
    %2777 = vmatpush.bf16.msra.mxu0 %v585
    %2778 = vmatmul.bf16.gmra.mxu0 %v2583
    %v2779 = vpop.f32.mrf.mxu0
    %v2780 = vadd.f32 0.0, %v2779
    %v2781 = vpop.f32.mrf.mxu0
    %2782 = vdwg.mxu0
    %2783 = vmatpush.bf16.msra.mxu0 0
    %2784 = vmatpush.bf16.msra.mxu0 0
    %2785 = vmatpush.bf16.msra.mxu0 0
    %2786 = vmatpush.bf16.msra.mxu0 0
    %2787 = vmatpush.bf16.msra.mxu0 0
    %2788 = vmatpush.bf16.msra.mxu0 0
    %2789 = vmatpush.bf16.msra.mxu0 %v657
    %2790 = vmatpush.bf16.msra.mxu0 %v649
    %2791 = vmatmul.bf16.gmra.mxu0 %v2586
    %v2792 = vpop.f32.mrf.mxu0
    %v2793 = vadd.f32 %v2780, %v2792
    %v2794 = vpop.f32.mrf.mxu0
    %2795 = vdwg.mxu0
    %v2804 = vrot.slane %v2611, 6
    %v2805 = vrot.slane %v2637, 6
    %v2806 = vrot.slane %v2663, 6
    %v2807 = vrot.slane %v2689, 6
    %v2808 = vrot.slane %v2715, 6
    %v2809 = vrot.slane %v2741, 6
    %v2810 = vrot.slane %v2767, 6
    %v2811 = vrot.slane %v2793, 6
    %v2820 = vadd.f32 %v158, %v2804
    %v2821 = vadd.f32 %v172, %v2805
    %v2822 = vadd.f32 %v186, %v2806
    %v2823 = vadd.f32 %v200, %v2807
    %v2824 = vadd.f32 %v214, %v2808
    %v2825 = vadd.f32 %v228, %v2809
    %v2826 = vadd.f32 %v242, %v2810
    %v2827 = vadd.f32 %v256, %v2811
    %v2828 = vxor.u32 %v2820, 2147483648
    %v2829 = vxor.u32 %v2821, 2147483648
    %v2830 = vxor.u32 %v2822, 2147483648
    %v2831 = vxor.u32 %v2823, 2147483648
    %v2832 = vxor.u32 %v2824, 2147483648
    %v2833 = vxor.u32 %v2825, 2147483648
    %v2834 = vmul.f32 %v2828, 1.442695
    %v2835 = vpow.pop %v2834
    %v2836 = vmul.f32 %v2829, 1.442695
    %v2837 = vpow.pop %v2836
    %v2838 = vmul.f32 %v2830, 1.442695
    %v2839 = vpow.pop %v2838
    %v2840 = vmul.f32 %v2831, 1.442695
    %v2841 = vpow.pop %v2840
    %v2842 = vmul.f32 %v2832, 1.442695
    %v2843 = vpow.pop %v2842
    %v2844 = vmul.f32 %v2833, 1.442695
    %v2845 = vpow.pop %v2844
    %v2846 = vadd.f32 %v2835, 1.0
    %v2847 = vadd.f32 %v2837, 1.0
    %v2848 = vadd.f32 %v2839, 1.0
    %v2849 = vadd.f32 %v2841, 1.0
    %v2850 = vadd.f32 %v2843, 1.0
    %v2851 = vadd.f32 %v2845, 1.0
    %v2852 = vrcp.pop %v2846
    %v2853 = vmul.f32 %v2846, %v2852
    %v2854 = vsub.f32 1.0, %v2853
    %v2855 = vmul.f32 %v2852, %v2854
    %v2856 = vadd.f32 %v2852, %v2855
    %vm2857 = vweird.f32 %v2846
    %vm2858 = vweird.f32 %v2852
    %vm2859 = vmor %vm2857, %vm2858
    %v2860 = vsel %vm2859, %v2852, %v2856
    %v2861 = vand.u32 2147483647, %v2846
    %vm2862 = vcmp.eq.f32.partialorder %v2861, 8.507059e+37
    %v2863 = vand.u32 %v2846, 2147483648
    %v2864 = vor.u32 1.1754944e-38, %v2863
    %v2865 = vsel %vm2862, %v2864, %v2860
    %v2866 = vmul.f32 1.0, %v2865
    %v2867 = vrcp.pop %v2847
    %v2868 = vmul.f32 %v2847, %v2867
    %v2869 = vsub.f32 1.0, %v2868
    %v2870 = vmul.f32 %v2867, %v2869
    %v2871 = vadd.f32 %v2867, %v2870
    %vm2872 = vweird.f32 %v2847
    %vm2873 = vweird.f32 %v2867
    %vm2874 = vmor %vm2872, %vm2873
    %v2875 = vsel %vm2874, %v2867, %v2871
    %v2876 = vand.u32 2147483647, %v2847
    %vm2877 = vcmp.eq.f32.partialorder %v2876, 8.507059e+37
    %v2878 = vand.u32 %v2847, 2147483648
    %v2879 = vor.u32 1.1754944e-38, %v2878
    %v2880 = vsel %vm2877, %v2879, %v2875
    %v2881 = vmul.f32 1.0, %v2880
    %v2882 = vrcp.pop %v2848
    %v2883 = vmul.f32 %v2848, %v2882
    %v2884 = vsub.f32 1.0, %v2883
    %v2885 = vmul.f32 %v2882, %v2884
    %v2886 = vadd.f32 %v2882, %v2885
    %vm2887 = vweird.f32 %v2848
    %vm2888 = vweird.f32 %v2882
    %vm2889 = vmor %vm2887, %vm2888
    %v2890 = vsel %vm2889, %v2882, %v2886
    %v2891 = vand.u32 2147483647, %v2848
    %vm2892 = vcmp.eq.f32.partialorder %v2891, 8.507059e+37
    %v2893 = vand.u32 %v2848, 2147483648
    %v2894 = vor.u32 1.1754944e-38, %v2893
    %v2895 = vsel %vm2892, %v2894, %v2890
    %v2896 = vmul.f32 1.0, %v2895
    %v2897 = vrcp.pop %v2849
    %v2898 = vmul.f32 %v2849, %v2897
    %v2899 = vsub.f32 1.0, %v2898
    %v2900 = vmul.f32 %v2897, %v2899
    %v2901 = vadd.f32 %v2897, %v2900
    %vm2902 = vweird.f32 %v2849
    %vm2903 = vweird.f32 %v2897
    %vm2904 = vmor %vm2902, %vm2903
    %v2905 = vsel %vm2904, %v2897, %v2901
    %v2906 = vand.u32 2147483647, %v2849
    %vm2907 = vcmp.eq.f32.partialorder %v2906, 8.507059e+37
    %v2908 = vand.u32 %v2849, 2147483648
    %v2909 = vor.u32 1.1754944e-38, %v2908
    %v2910 = vsel %vm2907, %v2909, %v2905
    %v2911 = vmul.f32 1.0, %v2910
    %v2912 = vrcp.pop %v2850
    %v2913 = vmul.f32 %v2850, %v2912
    %v2914 = vsub.f32 1.0, %v2913
    %v2915 = vmul.f32 %v2912, %v2914
    %v2916 = vadd.f32 %v2912, %v2915
    %vm2917 = vweird.f32 %v2850
    %vm2918 = vweird.f32 %v2912
    %vm2919 = vmor %vm2917, %vm2918
    %v2920 = vsel %vm2919, %v2912, %v2916
    %v2921 = vand.u32 2147483647, %v2850
    %vm2922 = vcmp.eq.f32.partialorder %v2921, 8.507059e+37
    %v2923 = vand.u32 %v2850, 2147483648
    %v2924 = vor.u32 1.1754944e-38, %v2923
    %v2925 = vsel %vm2922, %v2924, %v2920
    %v2926 = vmul.f32 1.0, %v2925
    %v2927 = vrcp.pop %v2851
    %v2928 = vmul.f32 %v2851, %v2927
    %v2929 = vsub.f32 1.0, %v2928
    %v2930 = vmul.f32 %v2927, %v2929
    %v2931 = vadd.f32 %v2927, %v2930
    %vm2932 = vweird.f32 %v2851
    %vm2933 = vweird.f32 %v2927
    %vm2934 = vmor %vm2932, %vm2933
    %v2935 = vsel %vm2934, %v2927, %v2931
    %v2936 = vand.u32 2147483647, %v2851
    %vm2937 = vcmp.eq.f32.partialorder %v2936, 8.507059e+37
    %v2938 = vand.u32 %v2851, 2147483648
    %v2939 = vor.u32 1.1754944e-38, %v2938
    %v2940 = vsel %vm2937, %v2939, %v2935
    %v2941 = vmul.f32 1.0, %v2940
    %v2942 = vtanh.pop %v2826
    %v2943 = vtanh.pop %v2827
    %v2946 = vrot.slane %v2577, 6
    %v2947 = vrot.slane %v2578, 6
    %v2950 = vmul.f32 %v2896, %v2946
    %v2951 = vmul.f32 %v2911, %v2947
    %v2952 = vmul.f32 %v2866, %v2942
    %v2953 = vmul.f32 %v2881, %v2943
    %v2954 = vadd.f32 %v2950, %v2952
    %v2955 = vadd.f32 %v2951, %v2953
    %v2956 = vtanh.pop %v2954
    %v2957 = vtanh.pop %v2955
    %v2958 = vmul.f32 %v2926, %v2956
    %v2959 = vmul.f32 %v2941, %v2957
    %v2960 = vpack.c.bf16 %v2958, %v2958
    %v2961 = vpack.c.bf16 %v2959, %v2959
    %v2964 = vrot.slane %v2960, 1
    %v2965 = vrot.slane %v2961, 1
    %v2968 = vsel %vm738, %v2965, 0
    %2970 = vmatpush.bf16.msra.mxu0 %v634
    %2971 = vmatpush.bf16.msra.mxu0 %v626
    %2972 = vmatpush.bf16.msra.mxu0 %v618
    %2973 = vmatpush.bf16.msra.mxu0 %v610
    %2974 = vmatpush.bf16.msra.mxu0 %v602
    %2975 = vmatpush.bf16.msra.mxu0 %v594
    %2976 = vmatpush.bf16.msra.mxu0 %v586
    %2977 = vmatpush.bf16.msra.mxu0 %v578
    %2978 = vmatmul.bf16.gmra.mxu0 %v2964
    %v2979 = vpop.f32.mrf.mxu0
    %v2980 = vadd.f32 0.0, %v2979
    %v2981 = vpop.f32.mrf.mxu0
    %2982 = vdwg.mxu0
    %2983 = vmatpush.bf16.msra.mxu0 0
    %2984 = vmatpush.bf16.msra.mxu0 0
    %2985 = vmatpush.bf16.msra.mxu0 0
    %2986 = vmatpush.bf16.msra.mxu0 0
    %2987 = vmatpush.bf16.msra.mxu0 0
    %2988 = vmatpush.bf16.msra.mxu0 0
    %2989 = vmatpush.bf16.msra.mxu0 %v650
    %2990 = vmatpush.bf16.msra.mxu0 %v642
    %2991 = vmatmul.bf16.gmra.mxu0 %v2968
    %v2992 = vpop.f32.mrf.mxu0
    %v2993 = vadd.f32 %v2980, %v2992
    %v2994 = vpop.f32.mrf.mxu0
    %2995 = vdwg.mxu0
    %2996 = vmatpush.bf16.msra.mxu0 %v635
    %2997 = vmatpush.bf16.msra.mxu0 %v627
    %2998 = vmatpush.bf16.msra.mxu0 %v619
    %2999 = vmatpush.bf16.msra.mxu0 %v611
    %3000 = vmatpush.bf16.msra.mxu0 %v603
    %3001 = vmatpush.bf16.msra.mxu0 %v595
    %3002 = vmatpush.bf16.msra.mxu0 %v587
    %3003 = vmatpush.bf16.msra.mxu0 %v579
    %3004 = vmatmul.bf16.gmra.mxu0 %v2964
    %v3005 = vpop.f32.mrf.mxu0
    %v3006 = vadd.f32 0.0, %v3005
    %v3007 = vpop.f32.mrf.mxu0
    %3008 = vdwg.mxu0
    %3009 = vmatpush.bf16.msra.mxu0 0
    %3010 = vmatpush.bf16.msra.mxu0 0
    %3011 = vmatpush.bf16.msra.mxu0 0
    %3012 = vmatpush.bf16.msra.mxu0 0
    %3013 = vmatpush.bf16.msra.mxu0 0
    %3014 = vmatpush.bf16.msra.mxu0 0
    %3015 = vmatpush.bf16.msra.mxu0 %v651
    %3016 = vmatpush.bf16.msra.mxu0 %v643
    %3017 = vmatmul.bf16.gmra.mxu0 %v2968
    %v3018 = vpop.f32.mrf.mxu0
    %v3019 = vadd.f32 %v3006, %v3018
    %v3020 = vpop.f32.mrf.mxu0
    %3021 = vdwg.mxu0
    %3022 = vmatpush.bf16.msra.mxu0 %v636
    %3023 = vmatpush.bf16.msra.mxu0 %v628
    %3024 = vmatpush.bf16.msra.mxu0 %v620
    %3025 = vmatpush.bf16.msra.mxu0 %v612
    %3026 = vmatpush.bf16.msra.mxu0 %v604
    %3027 = vmatpush.bf16.msra.mxu0 %v596
    %3028 = vmatpush.bf16.msra.mxu0 %v588
    %3029 = vmatpush.bf16.msra.mxu0 %v580
    %3030 = vmatmul.bf16.gmra.mxu0 %v2964
    %v3031 = vpop.f32.mrf.mxu0
    %v3032 = vadd.f32 0.0, %v3031
    %v3033 = vpop.f32.mrf.mxu0
    %3034 = vdwg.mxu0
    %3035 = vmatpush.bf16.msra.mxu0 0
    %3036 = vmatpush.bf16.msra.mxu0 0
    %3037 = vmatpush.bf16.msra.mxu0 0
    %3038 = vmatpush.bf16.msra.mxu0 0
    %3039 = vmatpush.bf16.msra.mxu0 0
    %3040 = vmatpush.bf16.msra.mxu0 0
    %3041 = vmatpush.bf16.msra.mxu0 %v652
    %3042 = vmatpush.bf16.msra.mxu0 %v644
    %3043 = vmatmul.bf16.gmra.mxu0 %v2968
    %v3044 = vpop.f32.mrf.mxu0
    %v3045 = vadd.f32 %v3032, %v3044
    %v3046 = vpop.f32.mrf.mxu0
    %3047 = vdwg.mxu0
    %3048 = vmatpush.bf16.msra.mxu0 %v637
    %3049 = vmatpush.bf16.msra.mxu0 %v629
    %3050 = vmatpush.bf16.msra.mxu0 %v621
    %3051 = vmatpush.bf16.msra.mxu0 %v613
    %3052 = vmatpush.bf16.msra.mxu0 %v605
    %3053 = vmatpush.bf16.msra.mxu0 %v597
    %3054 = vmatpush.bf16.msra.mxu0 %v589
    %3055 = vmatpush.bf16.msra.mxu0 %v581
    %3056 = vmatmul.bf16.gmra.mxu0 %v2964
    %v3057 = vpop.f32.mrf.mxu0
    %v3058 = vadd.f32 0.0, %v3057
    %v3059 = vpop.f32.mrf.mxu0
    %3060 = vdwg.mxu0
    %3061 = vmatpush.bf16.msra.mxu0 0
    %3062 = vmatpush.bf16.msra.mxu0 0
    %3063 = vmatpush.bf16.msra.mxu0 0
    %3064 = vmatpush.bf16.msra.mxu0 0
    %3065 = vmatpush.bf16.msra.mxu0 0
    %3066 = vmatpush.bf16.msra.mxu0 0
    %3067 = vmatpush.bf16.msra.mxu0 %v653
    %3068 = vmatpush.bf16.msra.mxu0 %v645
    %3069 = vmatmul.bf16.gmra.mxu0 %v2968
    %v3070 = vpop.f32.mrf.mxu0
    %v3071 = vadd.f32 %v3058, %v3070
    %v3072 = vpop.f32.mrf.mxu0
    %3073 = vdwg.mxu0
    %3074 = vmatpush.bf16.msra.mxu0 %v638
    %3075 = vmatpush.bf16.msra.mxu0 %v630
    %3076 = vmatpush.bf16.msra.mxu0 %v622
    %3077 = vmatpush.bf16.msra.mxu0 %v614
    %3078 = vmatpush.bf16.msra.mxu0 %v606
    %3079 = vmatpush.bf16.msra.mxu0 %v598
    %3080 = vmatpush.bf16.msra.mxu0 %v590
    %3081 = vmatpush.bf16.msra.mxu0 %v582
    %3082 = vmatmul.bf16.gmra.mxu0 %v2964
    %v3083 = vpop.f32.mrf.mxu0
    %v3084 = vadd.f32 0.0, %v3083
    %v3085 = vpop.f32.mrf.mxu0
    %3086 = vdwg.mxu0
    %3087 = vmatpush.bf16.msra.mxu0 0
    %3088 = vmatpush.bf16.msra.mxu0 0
    %3089 = vmatpush.bf16.msra.mxu0 0
    %3090 = vmatpush.bf16.msra.mxu0 0
    %3091 = vmatpush.bf16.msra.mxu0 0
    %3092 = vmatpush.bf16.msra.mxu0 0
    %3093 = vmatpush.bf16.msra.mxu0 %v654
    %3094 = vmatpush.bf16.msra.mxu0 %v646
    %3095 = vmatmul.bf16.gmra.mxu0 %v2968
    %v3096 = vpop.f32.mrf.mxu0
    %v3097 = vadd.f32 %v3084, %v3096
    %v3098 = vpop.f32.mrf.mxu0
    %3099 = vdwg.mxu0
    %3100 = vmatpush.bf16.msra.mxu0 %v639
    %3101 = vmatpush.bf16.msra.mxu0 %v631
    %3102 = vmatpush.bf16.msra.mxu0 %v623
    %3103 = vmatpush.bf16.msra.mxu0 %v615
    %3104 = vmatpush.bf16.msra.mxu0 %v607
    %3105 = vmatpush.bf16.msra.mxu0 %v599
    %3106 = vmatpush.bf16.msra.mxu0 %v591
    %3107 = vmatpush.bf16.msra.mxu0 %v583
    %3108 = vmatmul.bf16.gmra.mxu0 %v2964
    %v3109 = vpop.f32.mrf.mxu0
    %v3110 = vadd.f32 0.0, %v3109
    %v3111 = vpop.f32.mrf.mxu0
    %3112 = vdwg.mxu0
    %3113 = vmatpush.bf16.msra.mxu0 0
    %3114 = vmatpush.bf16.msra.mxu0 0
    %3115 = vmatpush.bf16.msra.mxu0 0
    %3116 = vmatpush.bf16.msra.mxu0 0
    %3117 = vmatpush.bf16.msra.mxu0 0
    %3118 = vmatpush.bf16.msra.mxu0 0
    %3119 = vmatpush.bf16.msra.mxu0 %v655
    %3120 = vmatpush.bf16.msra.mxu0 %v647
    %3121 = vmatmul.bf16.gmra.mxu0 %v2968
    %v3122 = vpop.f32.mrf.mxu0
    %v3123 = vadd.f32 %v3110, %v3122
    %v3124 = vpop.f32.mrf.mxu0
    %3125 = vdwg.mxu0
    %3126 = vmatpush.bf16.msra.mxu0 %v640
    %3127 = vmatpush.bf16.msra.mxu0 %v632
    %3128 = vmatpush.bf16.msra.mxu0 %v624
    %3129 = vmatpush.bf16.msra.mxu0 %v616
    %3130 = vmatpush.bf16.msra.mxu0 %v608
    %3131 = vmatpush.bf16.msra.mxu0 %v600
    %3132 = vmatpush.bf16.msra.mxu0 %v592
    %3133 = vmatpush.bf16.msra.mxu0 %v584
    %3134 = vmatmul.bf16.gmra.mxu0 %v2964
    %v3135 = vpop.f32.mrf.mxu0
    %v3136 = vadd.f32 0.0, %v3135
    %v3137 = vpop.f32.mrf.mxu0
    %3138 = vdwg.mxu0
    %3139 = vmatpush.bf16.msra.mxu0 0
    %3140 = vmatpush.bf16.msra.mxu0 0
    %3141 = vmatpush.bf16.msra.mxu0 0
    %3142 = vmatpush.bf16.msra.mxu0 0
    %3143 = vmatpush.bf16.msra.mxu0 0
    %3144 = vmatpush.bf16.msra.mxu0 0
    %3145 = vmatpush.bf16.msra.mxu0 %v656
    %3146 = vmatpush.bf16.msra.mxu0 %v648
    %3147 = vmatmul.bf16.gmra.mxu0 %v2968
    %v3148 = vpop.f32.mrf.mxu0
    %v3149 = vadd.f32 %v3136, %v3148
    %v3150 = vpop.f32.mrf.mxu0
    %3151 = vdwg.mxu0
    %3152 = vmatpush.bf16.msra.mxu0 %v641
    %3153 = vmatpush.bf16.msra.mxu0 %v633
    %3154 = vmatpush.bf16.msra.mxu0 %v625
    %3155 = vmatpush.bf16.msra.mxu0 %v617
    %3156 = vmatpush.bf16.msra.mxu0 %v609
    %3157 = vmatpush.bf16.msra.mxu0 %v601
    %3158 = vmatpush.bf16.msra.mxu0 %v593
    %3159 = vmatpush.bf16.msra.mxu0 %v585
    %3160 = vmatmul.bf16.gmra.mxu0 %v2964
    %v3161 = vpop.f32.mrf.mxu0
    %v3162 = vadd.f32 0.0, %v3161
    %v3163 = vpop.f32.mrf.mxu0
    %3164 = vdwg.mxu0
    %3165 = vmatpush.bf16.msra.mxu0 0
    %3166 = vmatpush.bf16.msra.mxu0 0
    %3167 = vmatpush.bf16.msra.mxu0 0
    %3168 = vmatpush.bf16.msra.mxu0 0
    %3169 = vmatpush.bf16.msra.mxu0 0
    %3170 = vmatpush.bf16.msra.mxu0 0
    %3171 = vmatpush.bf16.msra.mxu0 %v657
    %3172 = vmatpush.bf16.msra.mxu0 %v649
    %3173 = vmatmul.bf16.gmra.mxu0 %v2968
    %v3174 = vpop.f32.mrf.mxu0
    %v3175 = vadd.f32 %v3162, %v3174
    %v3176 = vpop.f32.mrf.mxu0
    %3177 = vdwg.mxu0
    %v3186 = vrot.slane %v2993, 4
    %v3187 = vrot.slane %v3019, 4
    %v3188 = vrot.slane %v3045, 4
    %v3189 = vrot.slane %v3071, 4
    %v3190 = vrot.slane %v3097, 4
    %v3191 = vrot.slane %v3123, 4
    %v3192 = vrot.slane %v3149, 4
    %v3193 = vrot.slane %v3175, 4
    %v3202 = vadd.f32 %v158, %v3186
    %v3203 = vadd.f32 %v172, %v3187
    %v3204 = vadd.f32 %v186, %v3188
    %v3205 = vadd.f32 %v200, %v3189
    %v3206 = vadd.f32 %v214, %v3190
    %v3207 = vadd.f32 %v228, %v3191
    %v3208 = vadd.f32 %v242, %v3192
    %v3209 = vadd.f32 %v256, %v3193
    %v3210 = vxor.u32 %v3202, 2147483648
    %v3211 = vxor.u32 %v3203, 2147483648
    %v3212 = vxor.u32 %v3204, 2147483648
    %v3213 = vxor.u32 %v3205, 2147483648
    %v3214 = vxor.u32 %v3206, 2147483648
    %v3215 = vxor.u32 %v3207, 2147483648
    %v3216 = vmul.f32 %v3210, 1.442695
    %v3217 = vpow.pop %v3216
    %v3218 = vmul.f32 %v3211, 1.442695
    %v3219 = vpow.pop %v3218
    %v3220 = vmul.f32 %v3212, 1.442695
    %v3221 = vpow.pop %v3220
    %v3222 = vmul.f32 %v3213, 1.442695
    %v3223 = vpow.pop %v3222
    %v3224 = vmul.f32 %v3214, 1.442695
    %v3225 = vpow.pop %v3224
    %v3226 = vmul.f32 %v3215, 1.442695
    %v3227 = vpow.pop %v3226
    %v3228 = vadd.f32 %v3217, 1.0
    %v3229 = vadd.f32 %v3219, 1.0
    %v3230 = vadd.f32 %v3221, 1.0
    %v3231 = vadd.f32 %v3223, 1.0
    %v3232 = vadd.f32 %v3225, 1.0
    %v3233 = vadd.f32 %v3227, 1.0
    %v3234 = vrcp.pop %v3228
    %v3235 = vmul.f32 %v3228, %v3234
    %v3236 = vsub.f32 1.0, %v3235
    %v3237 = vmul.f32 %v3234, %v3236
    %v3238 = vadd.f32 %v3234, %v3237
    %vm3239 = vweird.f32 %v3228
    %vm3240 = vweird.f32 %v3234
    %vm3241 = vmor %vm3239, %vm3240
    %v3242 = vsel %vm3241, %v3234, %v3238
    %v3243 = vand.u32 2147483647, %v3228
    %vm3244 = vcmp.eq.f32.partialorder %v3243, 8.507059e+37
    %v3245 = vand.u32 %v3228, 2147483648
    %v3246 = vor.u32 1.1754944e-38, %v3245
    %v3247 = vsel %vm3244, %v3246, %v3242
    %v3248 = vmul.f32 1.0, %v3247
    %v3249 = vrcp.pop %v3229
    %v3250 = vmul.f32 %v3229, %v3249
    %v3251 = vsub.f32 1.0, %v3250
    %v3252 = vmul.f32 %v3249, %v3251
    %v3253 = vadd.f32 %v3249, %v3252
    %vm3254 = vweird.f32 %v3229
    %vm3255 = vweird.f32 %v3249
    %vm3256 = vmor %vm3254, %vm3255
    %v3257 = vsel %vm3256, %v3249, %v3253
    %v3258 = vand.u32 2147483647, %v3229
    %vm3259 = vcmp.eq.f32.partialorder %v3258, 8.507059e+37
    %v3260 = vand.u32 %v3229, 2147483648
    %v3261 = vor.u32 1.1754944e-38, %v3260
    %v3262 = vsel %vm3259, %v3261, %v3257
    %v3263 = vmul.f32 1.0, %v3262
    %v3264 = vrcp.pop %v3230
    %v3265 = vmul.f32 %v3230, %v3264
    %v3266 = vsub.f32 1.0, %v3265
    %v3267 = vmul.f32 %v3264, %v3266
    %v3268 = vadd.f32 %v3264, %v3267
    %vm3269 = vweird.f32 %v3230
    %vm3270 = vweird.f32 %v3264
    %vm3271 = vmor %vm3269, %vm3270
    %v3272 = vsel %vm3271, %v3264, %v3268
    %v3273 = vand.u32 2147483647, %v3230
    %vm3274 = vcmp.eq.f32.partialorder %v3273, 8.507059e+37
    %v3275 = vand.u32 %v3230, 2147483648
    %v3276 = vor.u32 1.1754944e-38, %v3275
    %v3277 = vsel %vm3274, %v3276, %v3272
    %v3278 = vmul.f32 1.0, %v3277
    %v3279 = vrcp.pop %v3231
    %v3280 = vmul.f32 %v3231, %v3279
    %v3281 = vsub.f32 1.0, %v3280
    %v3282 = vmul.f32 %v3279, %v3281
    %v3283 = vadd.f32 %v3279, %v3282
    %vm3284 = vweird.f32 %v3231
    %vm3285 = vweird.f32 %v3279
    %vm3286 = vmor %vm3284, %vm3285
    %v3287 = vsel %vm3286, %v3279, %v3283
    %v3288 = vand.u32 2147483647, %v3231
    %vm3289 = vcmp.eq.f32.partialorder %v3288, 8.507059e+37
    %v3290 = vand.u32 %v3231, 2147483648
    %v3291 = vor.u32 1.1754944e-38, %v3290
    %v3292 = vsel %vm3289, %v3291, %v3287
    %v3293 = vmul.f32 1.0, %v3292
    %v3294 = vrcp.pop %v3232
    %v3295 = vmul.f32 %v3232, %v3294
    %v3296 = vsub.f32 1.0, %v3295
    %v3297 = vmul.f32 %v3294, %v3296
    %v3298 = vadd.f32 %v3294, %v3297
    %vm3299 = vweird.f32 %v3232
    %vm3300 = vweird.f32 %v3294
    %vm3301 = vmor %vm3299, %vm3300
    %v3302 = vsel %vm3301, %v3294, %v3298
    %v3303 = vand.u32 2147483647, %v3232
    %vm3304 = vcmp.eq.f32.partialorder %v3303, 8.507059e+37
    %v3305 = vand.u32 %v3232, 2147483648
    %v3306 = vor.u32 1.1754944e-38, %v3305
    %v3307 = vsel %vm3304, %v3306, %v3302
    %v3308 = vmul.f32 1.0, %v3307
    %v3309 = vrcp.pop %v3233
    %v3310 = vmul.f32 %v3233, %v3309
    %v3311 = vsub.f32 1.0, %v3310
    %v3312 = vmul.f32 %v3309, %v3311
    %v3313 = vadd.f32 %v3309, %v3312
    %vm3314 = vweird.f32 %v3233
    %vm3315 = vweird.f32 %v3309
    %vm3316 = vmor %vm3314, %vm3315
    %v3317 = vsel %vm3316, %v3309, %v3313
    %v3318 = vand.u32 2147483647, %v3233
    %vm3319 = vcmp.eq.f32.partialorder %v3318, 8.507059e+37
    %v3320 = vand.u32 %v3233, 2147483648
    %v3321 = vor.u32 1.1754944e-38, %v3320
    %v3322 = vsel %vm3319, %v3321, %v3317
    %v3323 = vmul.f32 1.0, %v3322
    %v3324 = vtanh.pop %v3208
    %v3325 = vtanh.pop %v3209
    %v3328 = vrot.slane %v2954, 6
    %v3329 = vrot.slane %v2955, 6
    %v3332 = vmul.f32 %v3278, %v3328
    %v3333 = vmul.f32 %v3293, %v3329
    %v3334 = vmul.f32 %v3248, %v3324
    %v3335 = vmul.f32 %v3263, %v3325
    %v3336 = vadd.f32 %v3332, %v3334
    %v3337 = vadd.f32 %v3333, %v3335
    %v3338 = vtanh.pop %v3336
    %v3339 = vtanh.pop %v3337
    %v3340 = vmul.f32 %v3308, %v3338
    %v3341 = vmul.f32 %v3323, %v3339
    %v3342 = vpack.c.bf16 %v3340, %v3340
    %v3343 = vpack.c.bf16 %v3341, %v3341
    %v3346 = vrot.slane %v3342, 2
    %v3347 = vrot.slane %v3343, 2
    %v3350 = vsel %vm738, %v3347, 0
    %3352 = vmatpush.bf16.msra.mxu0 %v634
    %3353 = vmatpush.bf16.msra.mxu0 %v626
    %3354 = vmatpush.bf16.msra.mxu0 %v618
    %3355 = vmatpush.bf16.msra.mxu0 %v610
    %3356 = vmatpush.bf16.msra.mxu0 %v602
    %3357 = vmatpush.bf16.msra.mxu0 %v594
    %3358 = vmatpush.bf16.msra.mxu0 %v586
    %3359 = vmatpush.bf16.msra.mxu0 %v578
    %3360 = vmatmul.bf16.gmra.mxu0 %v3346
    %v3361 = vpop.f32.mrf.mxu0
    %v3362 = vadd.f32 0.0, %v3361
    %v3363 = vpop.f32.mrf.mxu0
    %3364 = vdwg.mxu0
    %3365 = vmatpush.bf16.msra.mxu0 0
    %3366 = vmatpush.bf16.msra.mxu0 0
    %3367 = vmatpush.bf16.msra.mxu0 0
    %3368 = vmatpush.bf16.msra.mxu0 0
    %3369 = vmatpush.bf16.msra.mxu0 0
    %3370 = vmatpush.bf16.msra.mxu0 0
    %3371 = vmatpush.bf16.msra.mxu0 %v650
    %3372 = vmatpush.bf16.msra.mxu0 %v642
    %3373 = vmatmul.bf16.gmra.mxu0 %v3350
    %v3374 = vpop.f32.mrf.mxu0
    %v3375 = vadd.f32 %v3362, %v3374
    %v3376 = vpop.f32.mrf.mxu0
    %3377 = vdwg.mxu0
    %3378 = vmatpush.bf16.msra.mxu0 %v635
    %3379 = vmatpush.bf16.msra.mxu0 %v627
    %3380 = vmatpush.bf16.msra.mxu0 %v619
    %3381 = vmatpush.bf16.msra.mxu0 %v611
    %3382 = vmatpush.bf16.msra.mxu0 %v603
    %3383 = vmatpush.bf16.msra.mxu0 %v595
    %3384 = vmatpush.bf16.msra.mxu0 %v587
    %3385 = vmatpush.bf16.msra.mxu0 %v579
    %3386 = vmatmul.bf16.gmra.mxu0 %v3346
    %v3387 = vpop.f32.mrf.mxu0
    %v3388 = vadd.f32 0.0, %v3387
    %v3389 = vpop.f32.mrf.mxu0
    %3390 = vdwg.mxu0
    %3391 = vmatpush.bf16.msra.mxu0 0
    %3392 = vmatpush.bf16.msra.mxu0 0
    %3393 = vmatpush.bf16.msra.mxu0 0
    %3394 = vmatpush.bf16.msra.mxu0 0
    %3395 = vmatpush.bf16.msra.mxu0 0
    %3396 = vmatpush.bf16.msra.mxu0 0
    %3397 = vmatpush.bf16.msra.mxu0 %v651
    %3398 = vmatpush.bf16.msra.mxu0 %v643
    %3399 = vmatmul.bf16.gmra.mxu0 %v3350
    %v3400 = vpop.f32.mrf.mxu0
    %v3401 = vadd.f32 %v3388, %v3400
    %v3402 = vpop.f32.mrf.mxu0
    %3403 = vdwg.mxu0
    %3404 = vmatpush.bf16.msra.mxu0 %v636
    %3405 = vmatpush.bf16.msra.mxu0 %v628
    %3406 = vmatpush.bf16.msra.mxu0 %v620
    %3407 = vmatpush.bf16.msra.mxu0 %v612
    %3408 = vmatpush.bf16.msra.mxu0 %v604
    %3409 = vmatpush.bf16.msra.mxu0 %v596
    %3410 = vmatpush.bf16.msra.mxu0 %v588
    %3411 = vmatpush.bf16.msra.mxu0 %v580
    %3412 = vmatmul.bf16.gmra.mxu0 %v3346
    %v3413 = vpop.f32.mrf.mxu0
    %v3414 = vadd.f32 0.0, %v3413
    %v3415 = vpop.f32.mrf.mxu0
    %3416 = vdwg.mxu0
    %3417 = vmatpush.bf16.msra.mxu0 0
    %3418 = vmatpush.bf16.msra.mxu0 0
    %3419 = vmatpush.bf16.msra.mxu0 0
    %3420 = vmatpush.bf16.msra.mxu0 0
    %3421 = vmatpush.bf16.msra.mxu0 0
    %3422 = vmatpush.bf16.msra.mxu0 0
    %3423 = vmatpush.bf16.msra.mxu0 %v652
    %3424 = vmatpush.bf16.msra.mxu0 %v644
    %3425 = vmatmul.bf16.gmra.mxu0 %v3350
    %v3426 = vpop.f32.mrf.mxu0
    %v3427 = vadd.f32 %v3414, %v3426
    %v3428 = vpop.f32.mrf.mxu0
    %3429 = vdwg.mxu0
    %3430 = vmatpush.bf16.msra.mxu0 %v637
    %3431 = vmatpush.bf16.msra.mxu0 %v629
    %3432 = vmatpush.bf16.msra.mxu0 %v621
    %3433 = vmatpush.bf16.msra.mxu0 %v613
    %3434 = vmatpush.bf16.msra.mxu0 %v605
    %3435 = vmatpush.bf16.msra.mxu0 %v597
    %3436 = vmatpush.bf16.msra.mxu0 %v589
    %3437 = vmatpush.bf16.msra.mxu0 %v581
    %3438 = vmatmul.bf16.gmra.mxu0 %v3346
    %v3439 = vpop.f32.mrf.mxu0
    %v3440 = vadd.f32 0.0, %v3439
    %v3441 = vpop.f32.mrf.mxu0
    %3442 = vdwg.mxu0
    %3443 = vmatpush.bf16.msra.mxu0 0
    %3444 = vmatpush.bf16.msra.mxu0 0
    %3445 = vmatpush.bf16.msra.mxu0 0
    %3446 = vmatpush.bf16.msra.mxu0 0
    %3447 = vmatpush.bf16.msra.mxu0 0
    %3448 = vmatpush.bf16.msra.mxu0 0
    %3449 = vmatpush.bf16.msra.mxu0 %v653
    %3450 = vmatpush.bf16.msra.mxu0 %v645
    %3451 = vmatmul.bf16.gmra.mxu0 %v3350
    %v3452 = vpop.f32.mrf.mxu0
    %v3453 = vadd.f32 %v3440, %v3452
    %v3454 = vpop.f32.mrf.mxu0
    %3455 = vdwg.mxu0
    %3456 = vmatpush.bf16.msra.mxu0 %v638
    %3457 = vmatpush.bf16.msra.mxu0 %v630
    %3458 = vmatpush.bf16.msra.mxu0 %v622
    %3459 = vmatpush.bf16.msra.mxu0 %v614
    %3460 = vmatpush.bf16.msra.mxu0 %v606
    %3461 = vmatpush.bf16.msra.mxu0 %v598
    %3462 = vmatpush.bf16.msra.mxu0 %v590
    %3463 = vmatpush.bf16.msra.mxu0 %v582
    %3464 = vmatmul.bf16.gmra.mxu0 %v3346
    %v3465 = vpop.f32.mrf.mxu0
    %v3466 = vadd.f32 0.0, %v3465
    %v3467 = vpop.f32.mrf.mxu0
    %3468 = vdwg.mxu0
    %3469 = vmatpush.bf16.msra.mxu0 0
    %3470 = vmatpush.bf16.msra.mxu0 0
    %3471 = vmatpush.bf16.msra.mxu0 0
    %3472 = vmatpush.bf16.msra.mxu0 0
    %3473 = vmatpush.bf16.msra.mxu0 0
    %3474 = vmatpush.bf16.msra.mxu0 0
    %3475 = vmatpush.bf16.msra.mxu0 %v654
    %3476 = vmatpush.bf16.msra.mxu0 %v646
    %3477 = vmatmul.bf16.gmra.mxu0 %v3350
    %v3478 = vpop.f32.mrf.mxu0
    %v3479 = vadd.f32 %v3466, %v3478
    %v3480 = vpop.f32.mrf.mxu0
    %3481 = vdwg.mxu0
    %3482 = vmatpush.bf16.msra.mxu0 %v639
    %3483 = vmatpush.bf16.msra.mxu0 %v631
    %3484 = vmatpush.bf16.msra.mxu0 %v623
    %3485 = vmatpush.bf16.msra.mxu0 %v615
    %3486 = vmatpush.bf16.msra.mxu0 %v607
    %3487 = vmatpush.bf16.msra.mxu0 %v599
    %3488 = vmatpush.bf16.msra.mxu0 %v591
    %3489 = vmatpush.bf16.msra.mxu0 %v583
    %3490 = vmatmul.bf16.gmra.mxu0 %v3346
    %v3491 = vpop.f32.mrf.mxu0
    %v3492 = vadd.f32 0.0, %v3491
    %v3493 = vpop.f32.mrf.mxu0
    %3494 = vdwg.mxu0
    %3495 = vmatpush.bf16.msra.mxu0 0
    %3496 = vmatpush.bf16.msra.mxu0 0
    %3497 = vmatpush.bf16.msra.mxu0 0
    %3498 = vmatpush.bf16.msra.mxu0 0
    %3499 = vmatpush.bf16.msra.mxu0 0
    %3500 = vmatpush.bf16.msra.mxu0 0
    %3501 = vmatpush.bf16.msra.mxu0 %v655
    %3502 = vmatpush.bf16.msra.mxu0 %v647
    %3503 = vmatmul.bf16.gmra.mxu0 %v3350
    %v3504 = vpop.f32.mrf.mxu0
    %v3505 = vadd.f32 %v3492, %v3504
    %v3506 = vpop.f32.mrf.mxu0
    %3507 = vdwg.mxu0
    %3508 = vmatpush.bf16.msra.mxu0 %v640
    %3509 = vmatpush.bf16.msra.mxu0 %v632
    %3510 = vmatpush.bf16.msra.mxu0 %v624
    %3511 = vmatpush.bf16.msra.mxu0 %v616
    %3512 = vmatpush.bf16.msra.mxu0 %v608
    %3513 = vmatpush.bf16.msra.mxu0 %v600
    %3514 = vmatpush.bf16.msra.mxu0 %v592
    %3515 = vmatpush.bf16.msra.mxu0 %v584
    %3516 = vmatmul.bf16.gmra.mxu0 %v3346
    %v3517 = vpop.f32.mrf.mxu0
    %v3518 = vadd.f32 0.0, %v3517
    %v3519 = vpop.f32.mrf.mxu0
    %3520 = vdwg.mxu0
    %3521 = vmatpush.bf16.msra.mxu0 0
    %3522 = vmatpush.bf16.msra.mxu0 0
    %3523 = vmatpush.bf16.msra.mxu0 0
    %3524 = vmatpush.bf16.msra.mxu0 0
    %3525 = vmatpush.bf16.msra.mxu0 0
    %3526 = vmatpush.bf16.msra.mxu0 0
    %3527 = vmatpush.bf16.msra.mxu0 %v656
    %3528 = vmatpush.bf16.msra.mxu0 %v648
    %3529 = vmatmul.bf16.gmra.mxu0 %v3350
    %v3530 = vpop.f32.mrf.mxu0
    %v3531 = vadd.f32 %v3518, %v3530
    %v3532 = vpop.f32.mrf.mxu0
    %3533 = vdwg.mxu0
    %3534 = vmatpush.bf16.msra.mxu0 %v641
    %3535 = vmatpush.bf16.msra.mxu0 %v633
    %3536 = vmatpush.bf16.msra.mxu0 %v625
    %3537 = vmatpush.bf16.msra.mxu0 %v617
    %3538 = vmatpush.bf16.msra.mxu0 %v609
    %3539 = vmatpush.bf16.msra.mxu0 %v601
    %3540 = vmatpush.bf16.msra.mxu0 %v593
    %3541 = vmatpush.bf16.msra.mxu0 %v585
    %3542 = vmatmul.bf16.gmra.mxu0 %v3346
    %v3543 = vpop.f32.mrf.mxu0
    %v3544 = vadd.f32 0.0, %v3543
    %v3545 = vpop.f32.mrf.mxu0
    %3546 = vdwg.mxu0
    %3547 = vmatpush.bf16.msra.mxu0 0
    %3548 = vmatpush.bf16.msra.mxu0 0
    %3549 = vmatpush.bf16.msra.mxu0 0
    %3550 = vmatpush.bf16.msra.mxu0 0
    %3551 = vmatpush.bf16.msra.mxu0 0
    %3552 = vmatpush.bf16.msra.mxu0 0
    %3553 = vmatpush.bf16.msra.mxu0 %v657
    %3554 = vmatpush.bf16.msra.mxu0 %v649
    %3555 = vmatmul.bf16.gmra.mxu0 %v3350
    %v3556 = vpop.f32.mrf.mxu0
    %v3557 = vadd.f32 %v3544, %v3556
    %v3558 = vpop.f32.mrf.mxu0
    %3559 = vdwg.mxu0
    %v3568 = vrot.slane %v3375, 2
    %v3569 = vrot.slane %v3401, 2
    %v3570 = vrot.slane %v3427, 2
    %v3571 = vrot.slane %v3453, 2
    %v3572 = vrot.slane %v3479, 2
    %v3573 = vrot.slane %v3505, 2
    %v3574 = vrot.slane %v3531, 2
    %v3575 = vrot.slane %v3557, 2
    %v3584 = vadd.f32 %v158, %v3568
    %v3585 = vadd.f32 %v172, %v3569
    %v3586 = vadd.f32 %v186, %v3570
    %v3587 = vadd.f32 %v200, %v3571
    %v3588 = vadd.f32 %v214, %v3572
    %v3589 = vadd.f32 %v228, %v3573
    %v3590 = vadd.f32 %v242, %v3574
    %v3591 = vadd.f32 %v256, %v3575
    %v3592 = vxor.u32 %v3584, 2147483648
    %v3593 = vxor.u32 %v3585, 2147483648
    %v3594 = vxor.u32 %v3586, 2147483648
    %v3595 = vxor.u32 %v3587, 2147483648
    %v3596 = vxor.u32 %v3588, 2147483648
    %v3597 = vxor.u32 %v3589, 2147483648
    %v3598 = vmul.f32 %v3592, 1.442695
    %v3599 = vpow.pop %v3598
    %v3600 = vmul.f32 %v3593, 1.442695
    %v3601 = vpow.pop %v3600
    %v3602 = vmul.f32 %v3594, 1.442695
    %v3603 = vpow.pop %v3602
    %v3604 = vmul.f32 %v3595, 1.442695
    %v3605 = vpow.pop %v3604
    %v3606 = vmul.f32 %v3596, 1.442695
    %v3607 = vpow.pop %v3606
    %v3608 = vmul.f32 %v3597, 1.442695
    %v3609 = vpow.pop %v3608
    %v3610 = vadd.f32 %v3599, 1.0
    %v3611 = vadd.f32 %v3601, 1.0
    %v3612 = vadd.f32 %v3603, 1.0
    %v3613 = vadd.f32 %v3605, 1.0
    %v3614 = vadd.f32 %v3607, 1.0
    %v3615 = vadd.f32 %v3609, 1.0
    %v3616 = vrcp.pop %v3610
    %v3617 = vmul.f32 %v3610, %v3616
    %v3618 = vsub.f32 1.0, %v3617
    %v3619 = vmul.f32 %v3616, %v3618
    %v3620 = vadd.f32 %v3616, %v3619
    %vm3621 = vweird.f32 %v3610
    %vm3622 = vweird.f32 %v3616
    %vm3623 = vmor %vm3621, %vm3622
    %v3624 = vsel %vm3623, %v3616, %v3620
    %v3625 = vand.u32 2147483647, %v3610
    %vm3626 = vcmp.eq.f32.partialorder %v3625, 8.507059e+37
    %v3627 = vand.u32 %v3610, 2147483648
    %v3628 = vor.u32 1.1754944e-38, %v3627
    %v3629 = vsel %vm3626, %v3628, %v3624
    %v3630 = vmul.f32 1.0, %v3629
    %v3631 = vrcp.pop %v3611
    %v3632 = vmul.f32 %v3611, %v3631
    %v3633 = vsub.f32 1.0, %v3632
    %v3634 = vmul.f32 %v3631, %v3633
    %v3635 = vadd.f32 %v3631, %v3634
    %vm3636 = vweird.f32 %v3611
    %vm3637 = vweird.f32 %v3631
    %vm3638 = vmor %vm3636, %vm3637
    %v3639 = vsel %vm3638, %v3631, %v3635
    %v3640 = vand.u32 2147483647, %v3611
    %vm3641 = vcmp.eq.f32.partialorder %v3640, 8.507059e+37
    %v3642 = vand.u32 %v3611, 2147483648
    %v3643 = vor.u32 1.1754944e-38, %v3642
    %v3644 = vsel %vm3641, %v3643, %v3639
    %v3645 = vmul.f32 1.0, %v3644
    %v3646 = vrcp.pop %v3612
    %v3647 = vmul.f32 %v3612, %v3646
    %v3648 = vsub.f32 1.0, %v3647
    %v3649 = vmul.f32 %v3646, %v3648
    %v3650 = vadd.f32 %v3646, %v3649
    %vm3651 = vweird.f32 %v3612
    %vm3652 = vweird.f32 %v3646
    %vm3653 = vmor %vm3651, %vm3652
    %v3654 = vsel %vm3653, %v3646, %v3650
    %v3655 = vand.u32 2147483647, %v3612
    %vm3656 = vcmp.eq.f32.partialorder %v3655, 8.507059e+37
    %v3657 = vand.u32 %v3612, 2147483648
    %v3658 = vor.u32 1.1754944e-38, %v3657
    %v3659 = vsel %vm3656, %v3658, %v3654
    %v3660 = vmul.f32 1.0, %v3659
    %v3661 = vrcp.pop %v3613
    %v3662 = vmul.f32 %v3613, %v3661
    %v3663 = vsub.f32 1.0, %v3662
    %v3664 = vmul.f32 %v3661, %v3663
    %v3665 = vadd.f32 %v3661, %v3664
    %vm3666 = vweird.f32 %v3613
    %vm3667 = vweird.f32 %v3661
    %vm3668 = vmor %vm3666, %vm3667
    %v3669 = vsel %vm3668, %v3661, %v3665
    %v3670 = vand.u32 2147483647, %v3613
    %vm3671 = vcmp.eq.f32.partialorder %v3670, 8.507059e+37
    %v3672 = vand.u32 %v3613, 2147483648
    %v3673 = vor.u32 1.1754944e-38, %v3672
    %v3674 = vsel %vm3671, %v3673, %v3669
    %v3675 = vmul.f32 1.0, %v3674
    %v3676 = vrcp.pop %v3614
    %v3677 = vmul.f32 %v3614, %v3676
    %v3678 = vsub.f32 1.0, %v3677
    %v3679 = vmul.f32 %v3676, %v3678
    %v3680 = vadd.f32 %v3676, %v3679
    %vm3681 = vweird.f32 %v3614
    %vm3682 = vweird.f32 %v3676
    %vm3683 = vmor %vm3681, %vm3682
    %v3684 = vsel %vm3683, %v3676, %v3680
    %v3685 = vand.u32 2147483647, %v3614
    %vm3686 = vcmp.eq.f32.partialorder %v3685, 8.507059e+37
    %v3687 = vand.u32 %v3614, 2147483648
    %v3688 = vor.u32 1.1754944e-38, %v3687
    %v3689 = vsel %vm3686, %v3688, %v3684
    %v3690 = vmul.f32 1.0, %v3689
    %v3691 = vrcp.pop %v3615
    %v3692 = vmul.f32 %v3615, %v3691
    %v3693 = vsub.f32 1.0, %v3692
    %v3694 = vmul.f32 %v3691, %v3693
    %v3695 = vadd.f32 %v3691, %v3694
    %vm3696 = vweird.f32 %v3615
    %vm3697 = vweird.f32 %v3691
    %vm3698 = vmor %vm3696, %vm3697
    %v3699 = vsel %vm3698, %v3691, %v3695
    %v3700 = vand.u32 2147483647, %v3615
    %vm3701 = vcmp.eq.f32.partialorder %v3700, 8.507059e+37
    %v3702 = vand.u32 %v3615, 2147483648
    %v3703 = vor.u32 1.1754944e-38, %v3702
    %v3704 = vsel %vm3701, %v3703, %v3699
    %v3705 = vmul.f32 1.0, %v3704
    %v3706 = vtanh.pop %v3590
    %v3707 = vtanh.pop %v3591
    %v3710 = vrot.slane %v3336, 6
    %v3711 = vrot.slane %v3337, 6
    %v3714 = vmul.f32 %v3660, %v3710
    %v3715 = vmul.f32 %v3675, %v3711
    %v3716 = vmul.f32 %v3630, %v3706
    %v3717 = vmul.f32 %v3645, %v3707
    %v3718 = vadd.f32 %v3714, %v3716
    %v3719 = vadd.f32 %v3715, %v3717
    %v3720 = vtanh.pop %v3718
    %v3721 = vtanh.pop %v3719
    %v3722 = vmul.f32 %v3690, %v3720
    %v3723 = vmul.f32 %v3705, %v3721
    %v3724 = vsel %vm118, %v1082, %v1459
    %v3725 = vsel %vm118, %v1083, %v1460
    %vm3726 = vcmask 1043456
    %v3727 = vsel %vm3726, %v3724, %v1841
    %v3728 = vsel %vm3726, %v3725, %v1842
    %vm3729 = vcmask 1045504
    %v3730 = vsel %vm3729, %v3727, %v2223
    %v3731 = vsel %vm3729, %v3728, %v2224
    %v3732 = vsel %vm118, %v2581, %v2958
    %v3733 = vsel %vm118, %v2582, %v2959
    %v3734 = vsel %vm3726, %v3732, %v3340
    %v3735 = vsel %vm3726, %v3733, %v3341
    %v3736 = vsel %vm3729, %v3734, %v3722
    %v3737 = vsel %vm3729, %v3735, %v3723
    %v3738 = vpack.c.bf16 %v3736, %v3730
    %v3739 = vpack.c.bf16 %v3737, %v3731
    %v3740 = vld [vmem:[#allocation6] sm:$0xf]
    %v3741 = vld [vmem:[#allocation6 + $0x4] sm:$0xf]
    %v3742 = vld [vmem:[#allocation6 + $0x8] sm:$0xf]
    %v3743 = vld [vmem:[#allocation6 + $0xc] sm:$0xf]
    %v3744 = vld [vmem:[#allocation6 + $0x10] sm:$0xf]
    %v3745 = vld [vmem:[#allocation6 + $0x14] sm:$0xf]
    %v3746 = vld [vmem:[#allocation6 + $0x18] sm:$0xf]
    %v3747 = vld [vmem:[#allocation6 + $0x1c] sm:$0xf]
    %v3748 = vld [vmem:[#allocation6 + $0x20] sm:$0xf]
    %v3749 = vld [vmem:[#allocation6 + $0x24] sm:$0xf]
    %v3750 = vld [vmem:[#allocation6 + $0x28] sm:$0xf]
    %v3751 = vld [vmem:[#allocation6 + $0x2c] sm:$0xf]
    %v3752 = vld [vmem:[#allocation6 + $0x30] sm:$0xf]
    %v3753 = vld [vmem:[#allocation6 + $0x34] sm:$0xf]
    %v3754 = vld [vmem:[#allocation6 + $0x38] sm:$0xf]
    %v3755 = vld [vmem:[#allocation6 + $0x3c] sm:$0xf]
    %v3756 = vld [vmem:[#allocation6 + $0x40] sm:$0xf]
    %v3757 = vld [vmem:[#allocation6 + $0x44] sm:$0xf]
    %v3758 = vld [vmem:[#allocation6 + $0x48] sm:$0xf]
    %v3759 = vld [vmem:[#allocation6 + $0x4c] sm:$0xf]
    %v3760 = vld [vmem:[%s5] sm:$0x1]
    %v3762 = vperm.slane %v3760, 0
    %v3784 = vunpack.c.l.b16 %v3740
    %v3785 = vunpack.c.l.b16 %v3741
    %v3786 = vunpack.c.l.b16 %v3742
    %v3787 = vunpack.c.l.b16 %v3743
    %v3788 = vunpack.c.l.b16 %v3744
    %v3789 = vunpack.c.l.b16 %v3745
    %v3790 = vunpack.c.l.b16 %v3746
    %v3791 = vunpack.c.l.b16 %v3747
    %v3792 = vunpack.c.l.b16 %v3748
    %v3793 = vunpack.c.l.b16 %v3749
    %v3794 = vunpack.c.l.b16 %v3750
    %v3795 = vunpack.c.l.b16 %v3751
    %v3796 = vunpack.c.l.b16 %v3752
    %v3797 = vunpack.c.l.b16 %v3753
    %v3798 = vunpack.c.l.b16 %v3754
    %v3799 = vunpack.c.l.b16 %v3755
    %v3800 = vunpack.c.l.b16 %v3756
    %v3801 = vunpack.c.l.b16 %v3757
    %v3802 = vunpack.c.l.b16 %v3758
    %v3803 = vunpack.c.l.b16 %v3759
    %v3804 = vpack.c.b16 %v3785, %v3784
    %v3805 = vpack.c.b16 %v3787, %v3786
    %v3806 = vpack.c.b16 %v3789, %v3788
    %v3807 = vpack.c.b16 %v3791, %v3790
    %v3808 = vpack.c.b16 %v3793, %v3792
    %v3809 = vpack.c.b16 %v3795, %v3794
    %v3810 = vpack.c.b16 %v3797, %v3796
    %v3811 = vpack.c.b16 %v3799, %v3798
    %v3812 = vpack.c.b16 %v3801, %v3800
    %v3813 = vpack.c.b16 %v3803, %v3802
    %v3825 = vsel %vm738, %v3739, 0
    %3827 = vmatpush.bf16.msra.mxu0 %v3811
    %3828 = vmatpush.bf16.msra.mxu0 %v3810
    %3829 = vmatpush.bf16.msra.mxu0 %v3809
    %3830 = vmatpush.bf16.msra.mxu0 %v3808
    %3831 = vmatpush.bf16.msra.mxu0 %v3807
    %3832 = vmatpush.bf16.msra.mxu0 %v3806
    %3833 = vmatpush.bf16.msra.mxu0 %v3805
    %3834 = vmatpush.bf16.msra.mxu0 %v3804
    %3835 = vmatmul.bf16.gmra.mxu0 %v3738
    %v3836 = vpop.f32.mrf.mxu0
    %v3837 = vadd.f32 %v3762, %v3836
    %v3838 = vpop.f32.mrf.mxu0
    %v3839 = vadd.f32 %v3762, %v3838
    %3840 = vdwg.mxu0
    %3841 = vmatpush.bf16.msra.mxu0 0
    %3842 = vmatpush.bf16.msra.mxu0 0
    %3843 = vmatpush.bf16.msra.mxu0 0
    %3844 = vmatpush.bf16.msra.mxu0 0
    %3845 = vmatpush.bf16.msra.mxu0 0
    %3846 = vmatpush.bf16.msra.mxu0 0
    %3847 = vmatpush.bf16.msra.mxu0 %v3813
    %3848 = vmatpush.bf16.msra.mxu0 %v3812
    %3849 = vmatmul.bf16.gmra.mxu0 %v3825
    %v3850 = vpop.f32.mrf.mxu0
    %v3851 = vadd.f32 %v3837, %v3850
    %v3852 = vpop.f32.mrf.mxu0
    %v3853 = vadd.f32 %v3839, %v3852
    %3854 = vdwg.mxu0
    %3855 = vst [vmem:[%s6] sm:$0xff] %v3851
    %3856 = vst [vmem:[%s6 + $0x8] sm:$0xff] %v3853
    // Predicated region
    $region38: #{net_forward.1} parent=1 // pred_check
      _
    $region39: #{net_forward.1} parent=1 // pred_check_branch
      %3858 = sbr.rel (0) target = $region41
    $region40: #{net_forward.1} parent=1 // pred_region
      _
    $region41: #{net_forward.1} parent=1 // pred_fallthru
      _
    // Predicated region
    $region42: #{net_forward.1} parent=1 // pred_check
      _
    $region43: #{net_forward.1} parent=1 // pred_check_branch
      %3860 = sbr.rel (0) target = $region45
    $region44: #{net_forward.1} parent=1 // pred_region
      _
    $region45: #{net_forward.1} parent=1 // pred_fallthru
      _
    %3861 = vsyncpa [#allocation3], 1
    %3862 = vsyncpa [#allocation5], 1

</llo_original>
